<compile_context>
chip_gen: v7x
topology: tpu7x:2x2x1
jax: 0.10.0
libtpu: 0.0.40
codegen_flags: <defaults>
</compile_context>

<pallas_src>
import jax
import jax.numpy as jnp
from jax.experimental import pallas as pl
from jax.experimental.pallas import tpu as pltpu

_VMEM_LIMIT = 48 * 1024 * 1024  # safe on v5e/v6e (128 MiB) and v7x (64 MiB) physical VMEM


def _round_up(x, m):
    return (x + m - 1) // m * m


def _largest_divisor_leq(n, target):
    d = min(target, n)
    while n % d:
        d -= 1
    return d


# ---------------------------------------------------------------------------
# Tiled matmul + bias:  out = x @ w + b   (bf16 MXU operands, f32 accumulate)
# ---------------------------------------------------------------------------
def _matmul_bias_kernel_1k(x_ref, w_ref, b_ref, o_ref):
    # K fits one tile: no accumulator RMW, no K grid axis, bias in the epilogue.
    acc = jnp.dot(x_ref[...].astype(jnp.bfloat16),
                  w_ref[...].astype(jnp.bfloat16),
                  preferred_element_type=jnp.float32)
    o_ref[...] = (acc + b_ref[...]).astype(o_ref.dtype)


def _matmul_bias_kernel_mk(x_ref, w_ref, b_ref, o_ref, acc_ref):
    # K-tiled path: bias folded into the accumulator init (no epilogue add).
    @pl.when(pl.program_id(2) == 0)
    def _():
        acc_ref[...] = jnp.broadcast_to(b_ref[...], acc_ref.shape)

    acc_ref[...] += jnp.dot(x_ref[...].astype(jnp.bfloat16),
                            w_ref[...].astype(jnp.bfloat16),
                            preferred_element_type=jnp.float32)

    @pl.when(pl.program_id(2) == pl.num_programs(2) - 1)
    def _():
        o_ref[...] = acc_ref[...].astype(o_ref.dtype)


def _matmul_bias(x, w, b, out_dtype=jnp.float32, tm=512, tn=512, tk=512):
    """x: (M, K), w: (K, N), b: (N,) -> (M, N) = x @ w + b."""
    M, K = x.shape
    K2, N = w.shape
    assert K == K2, (K, K2)
    b = jnp.asarray(b, jnp.float32).reshape(1, N)

    # 512-class tiles (multiples of 128/256 -> fine for both v5e and v6e MXUs),
    # clamped to the (aligned) problem size.
    tm = min(tm, _round_up(M, 8))
    tn = min(tn, _round_up(N, 128))
    tk = min(tk, _round_up(K, 128))
    Mp, Np, Kp = _round_up(M, tm), _round_up(N, tn), _round_up(K, tk)

    # Pad to tile multiples (handles arbitrary vocab sizes / T*B).
    if (Mp, Kp) != (M, K):
        x = jnp.pad(x, ((0, Mp - M), (0, Kp - K)))
    if (Kp, Np) != (K, N):
        w = jnp.pad(w, ((0, Kp - K), (0, Np - N)))
    if Np != N:
        b = jnp.pad(b, ((0, 0), (0, Np - N)))

    single_k = (Kp == tk)

    if single_k:
        out = pl.pallas_call(
            _matmul_bias_kernel_1k,
            out_shape=jax.ShapeDtypeStruct((Mp, Np), out_dtype),
            grid_spec=pltpu.PrefetchScalarGridSpec(
                num_scalar_prefetch=0,
                grid=(Mp // tm, Np // tn),
                in_specs=[
                    pl.BlockSpec((tm, Kp), lambda i, j: (i, 0)),
                    pl.BlockSpec((Kp, tn), lambda i, j: (0, j)),
                    pl.BlockSpec((1, tn), lambda i, j: (0, j)),
                ],
                out_specs=pl.BlockSpec((tm, tn), lambda i, j: (i, j)),
            ),
            compiler_params=pltpu.CompilerParams(
                dimension_semantics=("parallel", "parallel"),
                vmem_limit_bytes=_VMEM_LIMIT),
        )(x, w, b)
    else:
        out = pl.pallas_call(
            _matmul_bias_kernel_mk,
            out_shape=jax.ShapeDtypeStruct((Mp, Np), out_dtype),
            grid_spec=pltpu.PrefetchScalarGridSpec(
                num_scalar_prefetch=0,
                grid=(Mp // tm, Np // tn, Kp // tk),
                in_specs=[
                    pl.BlockSpec((tm, tk), lambda i, j, k: (i, k)),
                    pl.BlockSpec((tk, tn), lambda i, j, k: (k, j)),
                    pl.BlockSpec((1, tn), lambda i, j, k: (0, j)),
                ],
                out_specs=pl.BlockSpec((tm, tn), lambda i, j, k: (i, j)),
                scratch_shapes=[pltpu.VMEM((tm, tn), jnp.float32)],
            ),
            compiler_params=pltpu.CompilerParams(
                dimension_semantics=("parallel", "parallel", "arbitrary"),
                vmem_limit_bytes=_VMEM_LIMIT),
        )(x, w, b)

    if (Mp, Np) != (M, N):
        out = out[:M, :N]
    return out


# ---------------------------------------------------------------------------
# Sequential LSTM recurrence.
# gates_x = x @ W_ih^T + (b_ih + b_hh) is precomputed (bf16); each grid step
# processes a chunk of Tc timesteps, doing only h @ W_hh^T in the serial loop.
# ---------------------------------------------------------------------------
def _lstm_recurrence_kernel(gx_ref, whh_hbm, hout_ref, whh_vmem, h_ref, c_ref):
    hidden = h_ref.shape[1]
    tc = gx_ref.shape[0]

    # New batch block (first time chunk): stage the invariant W_hh^T once into a
    # SINGLE-buffered VMEM scratch and zero the recurrent state.
    @pl.when(pl.program_id(1) == 0)
    def _():
        pltpu.sync_copy(whh_hbm, whh_vmem)
        h_ref[...] = jnp.zeros_like(h_ref)
        c_ref[...] = jnp.zeros_like(c_ref)

    h = h_ref[...]                           # f32 state
    c = c_ref[...]

    # Static trip count -> straight-line code.  W_hh^T is re-read from VMEM at
    # every step (vld slots are cheap) instead of holding a (H, 4H) value live
    # across the whole unrolled chunk, which would spill vregs on the serial path.
    # TODO(synk): drive the MXU explicitly (pltpu.matmul_push_rhs once per chunk,
    # matmul_acc_lhs/matmul_pop per step) to keep W_hh^T staged in weight regs.
    for i in range(tc):
        gates = gx_ref[i].astype(jnp.float32) + jnp.dot(
            h.astype(jnp.bfloat16), whh_vmem[...],
            preferred_element_type=jnp.float32)
        # PyTorch gate order: input, forget, cell(g), output.
        i_g = jax.nn.sigmoid(gates[:, 0 * hidden:1 * hidden])
        f_g = jax.nn.sigmoid(gates[:, 1 * hidden:2 * hidden])
        g_g = jnp.tanh(gates[:, 2 * hidden:3 * hidden])
        o_g = jax.nn.sigmoid(gates[:, 3 * hidden:4 * hidden])
        c = f_g * c + i_g * g_g
        h = o_g * jnp.tanh(c)
        hout_ref[i] = h.astype(hout_ref.dtype)

    h_ref[...] = h
    c_ref[...] = c


def _lstm_recurrence(gates_x, w_hh_t, tc_target=16):
    """gates_x: (T, B, 4H) bf16, w_hh_t: (H, 4H) bf16 -> h_all (T, B, H)."""
    T, B, H4 = gates_x.shape
    H = H4 // 4

    tc = _largest_divisor_leq(T, tc_target)
    # Split the batch across the two v7x TensorCores when each half stays
    # sublane-aligned (multiple of 8 rows); otherwise keep the full batch.
    bb = B // 2 if (B % 16 == 0) else B
    nb = B // bb
    # For small per-step row counts an (bb, H) f32 store is a full vreg, whereas
    # a sub-16-row bf16 store is a masked half-tile store inside the serial loop.
    hout_dtype = jnp.bfloat16 if bb >= 16 else jnp.float32

    return pl.pallas_call(
        _lstm_recurrence_kernel,
        out_shape=jax.ShapeDtypeStruct((T, B, H), hout_dtype),
        grid_spec=pltpu.PrefetchScalarGridSpec(
            num_scalar_prefetch=0,
            grid=(nb, T // tc),
            in_specs=[
                pl.BlockSpec((tc, bb, 4 * H), lambda b, s: (s, b, 0)),  # gates_x chunk
                pl.BlockSpec(memory_space=pl.ANY),                      # W_hh^T raw HBM
            ],
            out_specs=pl.BlockSpec((tc, bb, H), lambda b, s: (s, b, 0)),
            scratch_shapes=[
                pltpu.VMEM((H, 4 * H), jnp.bfloat16),   # single-buffered resident W_hh^T
                pltpu.VMEM((bb, H), jnp.float32),       # h state
                pltpu.VMEM((bb, H), jnp.float32),       # c state
            ],
        ),
        compiler_params=pltpu.CompilerParams(
            dimension_semantics=("parallel", "arbitrary"),  # batch parallel, time serial
            vmem_limit_bytes=_VMEM_LIMIT),
    )(gates_x, w_hh_t)


# ---------------------------------------------------------------------------
# Full forward
# ---------------------------------------------------------------------------
def lm_lstm_forward(token_ids, params):
    emb_table = params["emb"].astype(jnp.bfloat16)                   # (V, E) bf16 once
    w_ih_t = params["w_ih"].T.astype(jnp.bfloat16)                   # (E, 4H)
    w_hh_t = params["w_hh"].T.astype(jnp.bfloat16)                   # (H, 4H)
    bias = (params["b_ih"] + params["b_hh"]).astype(jnp.float32)     # (4H,)
    w_out_t = params["w_out"].T.astype(jnp.bfloat16)                 # (H, V)
    b_out = params["b_out"].astype(jnp.float32)                      # (V,)

    B, T = token_ids.shape
    V, E = emb_table.shape
    H = params["w_hh"].shape[1]
    assert H % 128 == 0, "hidden_size must be a multiple of 128 (lane-aligned gate slices)"

    # Embedding gather fused with bf16 cast + time-major transpose: gather with
    # transposed ids so (T, B, E) bf16 comes out directly (padding row is zero).
    emb_tm = jnp.take(emb_table, token_ids.T, axis=0)                # (T, B, E) bf16

    # 1) Input projection hoisted out of the recurrence (bias folded in), bf16 out.
    gates_x = _matmul_bias(emb_tm.reshape(T * B, E), w_ih_t, bias,
                           out_dtype=jnp.bfloat16)                   # (T*B, 4H)
    gates_x = gates_x.reshape(T, B, 4 * H)

    # 2) Serial recurrence: only h @ W_hh^T inside the time loop.
    h_all = _lstm_recurrence(gates_x, w_hh_t)                        # (T, B, H)

    # 3) Output projection as a big parallel matmul with bias folded in.
    logits = _matmul_bias(h_all.reshape(T * B, H), w_out_t, b_out,
                          out_dtype=jnp.float32)                     # (T*B, V)
    logits = logits.reshape(T, B, V)

    # Matches PyTorch's .permute(0, 2, 1) on the (B, T, V) linear output.
    # TODO(synk): when T % 128 == 0, fuse this permute into the output matmul's
    # out_specs (lane-dense only for T >= 128); for small T keep the XLA transpose.
    return jnp.transpose(logits, (1, 2, 0))                          # (B, V, T)


# ---------------------------------------------------------------------------
# Pure-JAX f32 reference mirroring the PyTorch forward.
# ---------------------------------------------------------------------------
def ref_forward(token_ids, params):
    emb = jnp.take(params["emb"], token_ids, axis=0)                 # (B, T, E)
    w_ih, w_hh = params["w_ih"], params["w_hh"]
    b = params["b_ih"] + params["b_hh"]
    H = w_hh.shape[1]
    B = token_ids.shape[0]

    def step(carry, x_t):
        h, c = carry
        gates = x_t @ w_ih.T + h @ w_hh.T + b
        i = jax.nn.sigmoid(gates[:, 0 * H:1 * H])
        f = jax.nn.sigmoid(gates[:, 1 * H:2 * H])
        g = jnp.tanh(gates[:, 2 * H:3 * H])
        o = jax.nn.sigmoid(gates[:, 3 * H:4 * H])
        c = f * c + i * g
        h = o * jnp.tanh(c)
        return (h, c), h

    h0 = jnp.zeros((B, H), jnp.float32)
    c0 = jnp.zeros((B, H), jnp.float32)
    _, hs = jax.lax.scan(step, (h0, c0), jnp.transpose(emb, (1, 0, 2)))  # (T, B, H)
    logits = hs @ params["w_out"].T + params["b_out"]                # (T, B, V)
    return jnp.transpose(logits, (1, 2, 0))                          # (B, V, T)


def init_params(key, emb_size, hidden_size, output_size, pad_index=0):
    ks = jax.random.split(key, 7)
    bound = 1.0 / jnp.sqrt(hidden_size)
    emb = jax.random.normal(ks[0], (output_size, emb_size), jnp.float32)
    emb = emb.at[pad_index].set(0.0)                                 # padding_idx row zero
    u = lambda k, shape: jax.random.uniform(k, shape, jnp.float32, -bound, bound)
    return {
        "emb": emb,
        "w_ih": u(ks[1], (4 * hidden_size, emb_size)),
        "w_hh": u(ks[2], (4 * hidden_size, hidden_size)),
        "b_ih": u(ks[3], (4 * hidden_size,)),
        "b_hh": u(ks[4], (4 * hidden_size,)),
        "w_out": u(ks[5], (output_size, hidden_size)),
        "b_out": u(ks[6], (output_size,)),
    }


if __name__ == "__main__":
    # Small lane/sublane-friendly shapes: B multiple of 8, E/H multiples of 128.
    B, T = 8, 16
    EMB, HID, VOCAB, PAD = 128, 128, 256, 0

    key = jax.random.PRNGKey(0)
    k_tok, k_param = jax.random.split(key)
    params = init_params(k_param, EMB, HID, VOCAB, PAD)
    token_ids = jax.random.randint(k_tok, (B, T), 0, VOCAB, dtype=jnp.int32)

    out = jax.block_until_ready(jax.jit(lm_lstm_forward)(token_ids, params))
    ref = jax.block_until_ready(ref_forward(token_ids, params))

    assert out.shape == (B, VOCAB, T), out.shape
    # bf16 MXU operands / bf16 gates_x vs f32 reference -> loosened tolerance.
    max_err = float(jnp.max(jnp.abs(out - ref)))
    assert max_err < 3e-2, max_err
    print("KERNEL_OK")
</pallas_src>

<mosaic_0001>
module attributes {stable_mosaic.version = 11 : i64} {
  func.func @_matmul_bias_kernel_1k(%arg0: i32, %arg1: i32, %arg2: memref<128x128xbf16, #tpu.memory_space<vmem>>, %arg3: memref<128x512xbf16, #tpu.memory_space<vmem>>, %arg4: memref<1x512xf32, #tpu.memory_space<vmem>>, %arg5: memref<128x512xbf16, #tpu.memory_space<vmem>>) attributes {dimension_semantics = [#tpu.dimension_semantics<parallel>, #tpu.dimension_semantics<parallel>], iteration_bounds = array<i64: 1, 1>, scalar_prefetch = 0 : i64, scratch_operands = 0 : i64, tpu.core_type = #tpu.core_type<tc>, window_params = [{transform_indices = @transform_0, window_bounds = array<i64: 128, 128>}, {transform_indices = @transform_1, window_bounds = array<i64: 128, 512>}, {transform_indices = @transform_2, window_bounds = array<i64: 1, 512>}, {transform_indices = @transform_3, window_bounds = array<i64: 128, 512>}]} {
    %c0 = arith.constant 0 : index
    %c0_0 = arith.constant 0 : index
    %0 = vector.load %arg2[%c0, %c0_0] : memref<128x128xbf16, #tpu.memory_space<vmem>>, vector<128x128xbf16>
    %c0_1 = arith.constant 0 : index
    %c0_2 = arith.constant 0 : index
    %1 = vector.load %arg3[%c0_1, %c0_2] : memref<128x512xbf16, #tpu.memory_space<vmem>>, vector<128x512xbf16>
    %cst = arith.constant dense<0.000000e+00> : vector<128x512xf32>
    %2 = tpu.matmul %0, %1, %cst {dimension_numbers = #tpu.dot_dimension_numbers<[1], [0], [0], [1], [0, 0, 1, 1], [], []>} : vector<128x128xbf16>, vector<128x512xbf16>, vector<128x512xf32> -> vector<128x512xf32>
    %c0_3 = arith.constant 0 : index
    %c0_4 = arith.constant 0 : index
    %3 = vector.load %arg4[%c0_3, %c0_4] : memref<1x512xf32, #tpu.memory_space<vmem>>, vector<1x512xf32>
    %4 = vector.broadcast %3 : vector<1x512xf32> to vector<128x512xf32>
    %5 = arith.addf %2, %4 : vector<128x512xf32>
    %6 = arith.truncf %5 : vector<128x512xf32> to vector<128x512xbf16>
    %c0_5 = arith.constant 0 : index
    %c0_6 = arith.constant 0 : index
    %7 = vector.load %arg5[%c0_5, %c0_6] : memref<128x512xbf16, #tpu.memory_space<vmem>>, vector<128x512xbf16>
    tpu.vector_store %arg5[%c0_5, %c0_6], %6 {strides = array<i32>} : memref<128x512xbf16, #tpu.memory_space<vmem>>, vector<128x512xbf16>,
    return
  }
  func.func @transform_0(%arg0: i32, %arg1: i32) -> (i32, i32) {
    %c0_i32 = arith.constant 0 : i32
    %c0_i32_0 = arith.constant 0 : i32
    return %arg0, %c0_i32 : i32, i32
  }
  func.func @transform_1(%arg0: i32, %arg1: i32) -> (i32, i32) {
    %c0_i32 = arith.constant 0 : i32
    %c0_i32_0 = arith.constant 0 : i32
    return %c0_i32, %arg1 : i32, i32
  }
  func.func @transform_2(%arg0: i32, %arg1: i32) -> (i32, i32) {
    %c0_i32 = arith.constant 0 : i32
    %c0_i32_0 = arith.constant 0 : i32
    return %c0_i32, %arg1 : i32, i32
  }
  func.func @transform_3(%arg0: i32, %arg1: i32) -> (i32, i32) {
    %c0_i32 = arith.constant 0 : i32
    return %arg0, %arg1 : i32, i32
  }
}

module attributes {stable_mosaic.version = 11 : i64} {
  func.func @_lstm_recurrence_kernel(%arg0: i32, %arg1: i32, %arg2: memref<16x8x512xbf16, #tpu.memory_space<vmem>>, %arg3: memref<128x512xbf16, #tpu.memory_space<any>>, %arg4: memref<16x8x128xf32, #tpu.memory_space<vmem>>, %arg5: memref<128x512xbf16, #tpu.memory_space<vmem>>, %arg6: memref<8x128xf32, #tpu.memory_space<vmem>>, %arg7: memref<8x128xf32, #tpu.memory_space<vmem>>) attributes {dimension_semantics = [#tpu.dimension_semantics<parallel>, #tpu.dimension_semantics<arbitrary>], iteration_bounds = array<i64: 1, 1>, scalar_prefetch = 0 : i64, scratch_operands = 3 : i64, tpu.core_type = #tpu.core_type<tc>, window_params = [{transform_indices = @transform_0, window_bounds = array<i64: 16, 8, 512>}, {}, {transform_indices = @transform_2, window_bounds = array<i64: 16, 8, 128>}]} {
    %c0_i32 = arith.constant 0 : i32
    %0 = arith.cmpi eq, %arg1, %c0_i32 : i32
    %1 = arith.extui %0 : i1 to i32
    %c0_i32_0 = arith.constant 0 : i32
    %2 = arith.cmpi ne, %1, %c0_i32_0 : i32
    scf.if %2 {
      "tpu.region"() ({
        %571 = tpu.sem_alloc : memref<!tpu.dma_semaphore, #tpu.memory_space<semaphore_mem>>
        tpu.enqueue_dma source(%arg3 : memref<128x512xbf16, #tpu.memory_space<any>>) target(%arg5 : memref<128x512xbf16, #tpu.memory_space<vmem>>) target_semaphore(%571 : memref<!tpu.dma_semaphore, #tpu.memory_space<semaphore_mem>>)
        tpu.wait_dma2 semaphore(%571 : memref<!tpu.dma_semaphore, #tpu.memory_space<semaphore_mem>>) src(%arg3 : memref<128x512xbf16, #tpu.memory_space<any>>) dst(%arg5 : memref<128x512xbf16, #tpu.memory_space<vmem>>)
        tpu.yield
      }) : () -> ()
      %cst_184 = arith.constant 0.000000e+00 : f32
      %567 = vector.broadcast %cst_184 : f32 to vector<8x128xf32>
      %c0_185 = arith.constant 0 : index
      %c0_186 = arith.constant 0 : index
      %568 = vector.load %arg6[%c0_185, %c0_186] : memref<8x128xf32, #tpu.memory_space<vmem>>, vector<8x128xf32>
      tpu.vector_store %arg6[%c0_185, %c0_186], %567 {strides = array<i32>} : memref<8x128xf32, #tpu.memory_space<vmem>>, vector<8x128xf32>,
      %cst_187 = arith.constant 0.000000e+00 : f32
      %569 = vector.broadcast %cst_187 : f32 to vector<8x128xf32>
      %c0_188 = arith.constant 0 : index
      %c0_189 = arith.constant 0 : index
      %570 = vector.load %arg7[%c0_188, %c0_189] : memref<8x128xf32, #tpu.memory_space<vmem>>, vector<8x128xf32>
      tpu.vector_store %arg7[%c0_188, %c0_189], %569 {strides = array<i32>} : memref<8x128xf32, #tpu.memory_space<vmem>>, vector<8x128xf32>,
    } else {
    }
    %c0 = arith.constant 0 : index
    %c0_1 = arith.constant 0 : index
    %3 = vector.load %arg6[%c0, %c0_1] : memref<8x128xf32, #tpu.memory_space<vmem>>, vector<8x128xf32>
    %c0_2 = arith.constant 0 : index
    %c0_3 = arith.constant 0 : index
    %4 = vector.load %arg7[%c0_2, %c0_3] : memref<8x128xf32, #tpu.memory_space<vmem>>, vector<8x128xf32>
    %c0_4 = arith.constant 0 : index
    %c0_5 = arith.constant 0 : index
    %c0_6 = arith.constant 0 : index
    %5 = vector.load %arg2[%c0_4, %c0_5, %c0_6] : memref<16x8x512xbf16, #tpu.memory_space<vmem>>, vector<1x8x512xbf16>
    %6 = vector.shape_cast %5 : vector<1x8x512xbf16> to vector<8x512xbf16>
    %7 = arith.extf %6 : vector<8x512xbf16> to vector<8x512xf32>
    %8 = arith.truncf %3 : vector<8x128xf32> to vector<8x128xbf16>
    %c0_7 = arith.constant 0 : index
    %c0_8 = arith.constant 0 : index
    %9 = vector.load %arg5[%c0_7, %c0_8] : memref<128x512xbf16, #tpu.memory_space<vmem>>, vector<128x512xbf16>
    %cst = arith.constant dense<0.000000e+00> : vector<8x512xf32>
    %10 = tpu.matmul %8, %9, %cst {dimension_numbers = #tpu.dot_dimension_numbers<[1], [0], [0], [1], [0, 0, 1, 1], [], []>} : vector<8x128xbf16>, vector<128x512xbf16>, vector<8x512xf32> -> vector<8x512xf32>
    %11 = arith.addf %7, %10 : vector<8x512xf32>
    %12 = vector.extract_strided_slice %11 {offsets = [0, 0], sizes = [8, 128], strides = [1, 1]} : vector<8x512xf32> to vector<8x128xf32>
    %13 = arith.negf %12 : vector<8x128xf32>
    %14 = math.exp %13 : vector<8x128xf32>
    %cst_9 = arith.constant 1.000000e+00 : f32
    %15 = vector.broadcast %cst_9 : f32 to vector<8x128xf32>
    %16 = arith.addf %15, %14 : vector<8x128xf32>
    %17 = arith.divf %15, %16 : vector<8x128xf32>
    %18 = vector.extract_strided_slice %11 {offsets = [0, 128], sizes = [8, 128], strides = [1, 1]} : vector<8x512xf32> to vector<8x128xf32>
    %19 = arith.negf %18 : vector<8x128xf32>
    %20 = math.exp %19 : vector<8x128xf32>
    %cst_10 = arith.constant 1.000000e+00 : f32
    %21 = vector.broadcast %cst_10 : f32 to vector<8x128xf32>
    %22 = arith.addf %21, %20 : vector<8x128xf32>
    %23 = arith.divf %21, %22 : vector<8x128xf32>
    %24 = vector.extract_strided_slice %11 {offsets = [0, 256], sizes = [8, 128], strides = [1, 1]} : vector<8x512xf32> to vector<8x128xf32>
    %25 = math.tanh %24 : vector<8x128xf32>
    %26 = vector.extract_strided_slice %11 {offsets = [0, 384], sizes = [8, 128], strides = [1, 1]} : vector<8x512xf32> to vector<8x128xf32>
    %27 = arith.negf %26 : vector<8x128xf32>
    %28 = math.exp %27 : vector<8x128xf32>
    %cst_11 = arith.constant 1.000000e+00 : f32
    %29 = vector.broadcast %cst_11 : f32 to vector<8x128xf32>
    %30 = arith.addf %29, %28 : vector<8x128xf32>
    %31 = arith.divf %29, %30 : vector<8x128xf32>
    %32 = arith.mulf %23, %4 : vector<8x128xf32>
    %33 = arith.mulf %17, %25 : vector<8x128xf32>
    %34 = arith.addf %32, %33 : vector<8x128xf32>
    %35 = math.tanh %34 : vector<8x128xf32>
    %36 = arith.mulf %31, %35 : vector<8x128xf32>
    %c0_12 = arith.constant 0 : index
    %c0_13 = arith.constant 0 : index
    %c0_14 = arith.constant 0 : index
    %37 = vector.load %arg4[%c0_12, %c0_13, %c0_14] : memref<16x8x128xf32, #tpu.memory_space<vmem>>, vector<1x8x128xf32>
    %38 = vector.shape_cast %37 : vector<1x8x128xf32> to vector<8x128xf32>
    %39 = vector.shape_cast %36 : vector<8x128xf32> to vector<1x8x128xf32>
    tpu.vector_store %arg4[%c0_12, %c0_13, %c0_14], %39 {strides = array<i32>} : memref<16x8x128xf32, #tpu.memory_space<vmem>>, vector<1x8x128xf32>,
    %c1 = arith.constant 1 : index
    %c0_15 = arith.constant 0 : index
    %c0_16 = arith.constant 0 : index
    %40 = vector.load %arg2[%c1, %c0_15, %c0_16] : memref<16x8x512xbf16, #tpu.memory_space<vmem>>, vector<1x8x512xbf16>
    %41 = vector.shape_cast %40 : vector<1x8x512xbf16> to vector<8x512xbf16>
    %42 = arith.extf %41 : vector<8x512xbf16> to vector<8x512xf32>
    %43 = arith.truncf %36 : vector<8x128xf32> to vector<8x128xbf16>
    %c0_17 = arith.constant 0 : index
    %c0_18 = arith.constant 0 : index
    %44 = vector.load %arg5[%c0_17, %c0_18] : memref<128x512xbf16, #tpu.memory_space<vmem>>, vector<128x512xbf16>
    %cst_19 = arith.constant dense<0.000000e+00> : vector<8x512xf32>
    %45 = tpu.matmul %43, %44, %cst_19 {dimension_numbers = #tpu.dot_dimension_numbers<[1], [0], [0], [1], [0, 0, 1, 1], [], []>} : vector<8x128xbf16>, vector<128x512xbf16>, vector<8x512xf32> -> vector<8x512xf32>
    %46 = arith.addf %42, %45 : vector<8x512xf32>
    %47 = vector.extract_strided_slice %46 {offsets = [0, 0], sizes = [8, 128], strides = [1, 1]} : vector<8x512xf32> to vector<8x128xf32>
    %48 = arith.negf %47 : vector<8x128xf32>
    %49 = math.exp %48 : vector<8x128xf32>
    %cst_20 = arith.constant 1.000000e+00 : f32
    %50 = vector.broadcast %cst_20 : f32 to vector<8x128xf32>
    %51 = arith.addf %50, %49 : vector<8x128xf32>
    %52 = arith.divf %50, %51 : vector<8x128xf32>
    %53 = vector.extract_strided_slice %46 {offsets = [0, 128], sizes = [8, 128], strides = [1, 1]} : vector<8x512xf32> to vector<8x128xf32>
    %54 = arith.negf %53 : vector<8x128xf32>
    %55 = math.exp %54 : vector<8x128xf32>
    %cst_21 = arith.constant 1.000000e+00 : f32
    %56 = vector.broadcast %cst_21 : f32 to vector<8x128xf32>
    %57 = arith.addf %56, %55 : vector<8x128xf32>
    %58 = arith.divf %56, %57 : vector<8x128xf32>
    %59 = vector.extract_strided_slice %46 {offsets = [0, 256], sizes = [8, 128], strides = [1, 1]} : vector<8x512xf32> to vector<8x128xf32>
    %60 = math.tanh %59 : vector<8x128xf32>
    %61 = vector.extract_strided_slice %46 {offsets = [0, 384], sizes = [8, 128], strides = [1, 1]} : vector<8x512xf32> to vector<8x128xf32>
    %62 = arith.negf %61 : vector<8x128xf32>
    %63 = math.exp %62 : vector<8x128xf32>
    %cst_22 = arith.constant 1.000000e+00 : f32
    %64 = vector.broadcast %cst_22 : f32 to vector<8x128xf32>
    %65 = arith.addf %64, %63 : vector<8x128xf32>
    %66 = arith.divf %64, %65 : vector<8x128xf32>
    %67 = arith.mulf %58, %34 : vector<8x128xf32>
    %68 = arith.mulf %52, %60 : vector<8x128xf32>
    %69 = arith.addf %67, %68 : vector<8x128xf32>
    %70 = math.tanh %69 : vector<8x128xf32>
    %71 = arith.mulf %66, %70 : vector<8x128xf32>
    %c1_23 = arith.constant 1 : index
    %c0_24 = arith.constant 0 : index
    %c0_25 = arith.constant 0 : index
    %72 = vector.load %arg4[%c1_23, %c0_24, %c0_25] : memref<16x8x128xf32, #tpu.memory_space<vmem>>, vector<1x8x128xf32>
    %73 = vector.shape_cast %72 : vector<1x8x128xf32> to vector<8x128xf32>
    %74 = vector.shape_cast %71 : vector<8x128xf32> to vector<1x8x128xf32>
    tpu.vector_store %arg4[%c1_23, %c0_24, %c0_25], %74 {strides = array<i32>} : memref<16x8x128xf32, #tpu.memory_space<vmem>>, vector<1x8x128xf32>,
    %c2 = arith.constant 2 : index
    %c0_26 = arith.constant 0 : index
    %c0_27 = arith.constant 0 : index
    %75 = vector.load %arg2[%c2, %c0_26, %c0_27] : memref<16x8x512xbf16, #tpu.memory_space<vmem>>, vector<1x8x512xbf16>
    %76 = vector.shape_cast %75 : vector<1x8x512xbf16> to vector<8x512xbf16>
    %77 = arith.extf %76 : vector<8x512xbf16> to vector<8x512xf32>
    %78 = arith.truncf %71 : vector<8x128xf32> to vector<8x128xbf16>
    %c0_28 = arith.constant 0 : index
    %c0_29 = arith.constant 0 : index
    %79 = vector.load %arg5[%c0_28, %c0_29] : memref<128x512xbf16, #tpu.memory_space<vmem>>, vector<128x512xbf16>
    %cst_30 = arith.constant dense<0.000000e+00> : vector<8x512xf32>
    %80 = tpu.matmul %78, %79, %cst_30 {dimension_numbers = #tpu.dot_dimension_numbers<[1], [0], [0], [1], [0, 0, 1, 1], [], []>} : vector<8x128xbf16>, vector<128x512xbf16>, vector<8x512xf32> -> vector<8x512xf32>
    %81 = arith.addf %77, %80 : vector<8x512xf32>
    %82 = vector.extract_strided_slice %81 {offsets = [0, 0], sizes = [8, 128], strides = [1, 1]} : vector<8x512xf32> to vector<8x128xf32>
    %83 = arith.negf %82 : vector<8x128xf32>
    %84 = math.exp %83 : vector<8x128xf32>
    %cst_31 = arith.constant 1.000000e+00 : f32
    %85 = vector.broadcast %cst_31 : f32 to vector<8x128xf32>
    %86 = arith.addf %85, %84 : vector<8x128xf32>
    %87 = arith.divf %85, %86 : vector<8x128xf32>
    %88 = vector.extract_strided_slice %81 {offsets = [0, 128], sizes = [8, 128], strides = [1, 1]} : vector<8x512xf32> to vector<8x128xf32>
    %89 = arith.negf %88 : vector<8x128xf32>
    %90 = math.exp %89 : vector<8x128xf32>
    %cst_32 = arith.constant 1.000000e+00 : f32
    %91 = vector.broadcast %cst_32 : f32 to vector<8x128xf32>
    %92 = arith.addf %91, %90 : vector<8x128xf32>
    %93 = arith.divf %91, %92 : vector<8x128xf32>
    %94 = vector.extract_strided_slice %81 {offsets = [0, 256], sizes = [8, 128], strides = [1, 1]} : vector<8x512xf32> to vector<8x128xf32>
    %95 = math.tanh %94 : vector<8x128xf32>
    %96 = vector.extract_strided_slice %81 {offsets = [0, 384], sizes = [8, 128], strides = [1, 1]} : vector<8x512xf32> to vector<8x128xf32>
    %97 = arith.negf %96 : vector<8x128xf32>
    %98 = math.exp %97 : vector<8x128xf32>
    %cst_33 = arith.constant 1.000000e+00 : f32
    %99 = vector.broadcast %cst_33 : f32 to vector<8x128xf32>
    %100 = arith.addf %99, %98 : vector<8x128xf32>
    %101 = arith.divf %99, %100 : vector<8x128xf32>
    %102 = arith.mulf %93, %69 : vector<8x128xf32>
    %103 = arith.mulf %87, %95 : vector<8x128xf32>
    %104 = arith.addf %102, %103 : vector<8x128xf32>
    %105 = math.tanh %104 : vector<8x128xf32>
    %106 = arith.mulf %101, %105 : vector<8x128xf32>
    %c2_34 = arith.constant 2 : index
    %c0_35 = arith.constant 0 : index
    %c0_36 = arith.constant 0 : index
    %107 = vector.load %arg4[%c2_34, %c0_35, %c0_36] : memref<16x8x128xf32, #tpu.memory_space<vmem>>, vector<1x8x128xf32>
    %108 = vector.shape_cast %107 : vector<1x8x128xf32> to vector<8x128xf32>
    %109 = vector.shape_cast %106 : vector<8x128xf32> to vector<1x8x128xf32>
    tpu.vector_store %arg4[%c2_34, %c0_35, %c0_36], %109 {strides = array<i32>} : memref<16x8x128xf32, #tpu.memory_space<vmem>>, vector<1x8x128xf32>,
    %c3 = arith.constant 3 : index
    %c0_37 = arith.constant 0 : index
    %c0_38 = arith.constant 0 : index
    %110 = vector.load %arg2[%c3, %c0_37, %c0_38] : memref<16x8x512xbf16, #tpu.memory_space<vmem>>, vector<1x8x512xbf16>
    %111 = vector.shape_cast %110 : vector<1x8x512xbf16> to vector<8x512xbf16>
    %112 = arith.extf %111 : vector<8x512xbf16> to vector<8x512xf32>
    %113 = arith.truncf %106 : vector<8x128xf32> to vector<8x128xbf16>
    %c0_39 = arith.constant 0 : index
    %c0_40 = arith.constant 0 : index
    %114 = vector.load %arg5[%c0_39, %c0_40] : memref<128x512xbf16, #tpu.memory_space<vmem>>, vector<128x512xbf16>
    %cst_41 = arith.constant dense<0.000000e+00> : vector<8x512xf32>
    %115 = tpu.matmul %113, %114, %cst_41 {dimension_numbers = #tpu.dot_dimension_numbers<[1], [0], [0], [1], [0, 0, 1, 1], [], []>} : vector<8x128xbf16>, vector<128x512xbf16>, vector<8x512xf32> -> vector<8x512xf32>
    %116 = arith.addf %112, %115 : vector<8x512xf32>
    %117 = vector.extract_strided_slice %116 {offsets = [0, 0], sizes = [8, 128], strides = [1, 1]} : vector<8x512xf32> to vector<8x128xf32>
    %118 = arith.negf %117 : vector<8x128xf32>
    %119 = math.exp %118 : vector<8x128xf32>
    %cst_42 = arith.constant 1.000000e+00 : f32
    %120 = vector.broadcast %cst_42 : f32 to vector<8x128xf32>
    %121 = arith.addf %120, %119 : vector<8x128xf32>
    %122 = arith.divf %120, %121 : vector<8x128xf32>
    %123 = vector.extract_strided_slice %116 {offsets = [0, 128], sizes = [8, 128], strides = [1, 1]} : vector<8x512xf32> to vector<8x128xf32>
    %124 = arith.negf %123 : vector<8x128xf32>
    %125 = math.exp %124 : vector<8x128xf32>
    %cst_43 = arith.constant 1.000000e+00 : f32
    %126 = vector.broadcast %cst_43 : f32 to vector<8x128xf32>
    %127 = arith.addf %126, %125 : vector<8x128xf32>
    %128 = arith.divf %126, %127 : vector<8x128xf32>
    %129 = vector.extract_strided_slice %116 {offsets = [0, 256], sizes = [8, 128], strides = [1, 1]} : vector<8x512xf32> to vector<8x128xf32>
    %130 = math.tanh %129 : vector<8x128xf32>
    %131 = vector.extract_strided_slice %116 {offsets = [0, 384], sizes = [8, 128], strides = [1, 1]} : vector<8x512xf32> to vector<8x128xf32>
    %132 = arith.negf %131 : vector<8x128xf32>
    %133 = math.exp %132 : vector<8x128xf32>
    %cst_44 = arith.constant 1.000000e+00 : f32
    %134 = vector.broadcast %cst_44 : f32 to vector<8x128xf32>
    %135 = arith.addf %134, %133 : vector<8x128xf32>
    %136 = arith.divf %134, %135 : vector<8x128xf32>
    %137 = arith.mulf %128, %104 : vector<8x128xf32>
    %138 = arith.mulf %122, %130 : vector<8x128xf32>
    %139 = arith.addf %137, %138 : vector<8x128xf32>
    %140 = math.tanh %139 : vector<8x128xf32>
    %141 = arith.mulf %136, %140 : vector<8x128xf32>
    %c3_45 = arith.constant 3 : index
    %c0_46 = arith.constant 0 : index
    %c0_47 = arith.constant 0 : index
    %142 = vector.load %arg4[%c3_45, %c0_46, %c0_47] : memref<16x8x128xf32, #tpu.memory_space<vmem>>, vector<1x8x128xf32>
    %143 = vector.shape_cast %142 : vector<1x8x128xf32> to vector<8x128xf32>
    %144 = vector.shape_cast %141 : vector<8x128xf32> to vector<1x8x128xf32>
    tpu.vector_store %arg4[%c3_45, %c0_46, %c0_47], %144 {strides = array<i32>} : memref<16x8x128xf32, #tpu.memory_space<vmem>>, vector<1x8x128xf32>,
    %c4 = arith.constant 4 : index
    %c0_48 = arith.constant 0 : index
    %c0_49 = arith.constant 0 : index
    %145 = vector.load %arg2[%c4, %c0_48, %c0_49] : memref<16x8x512xbf16, #tpu.memory_space<vmem>>, vector<1x8x512xbf16>
    %146 = vector.shape_cast %145 : vector<1x8x512xbf16> to vector<8x512xbf16>
    %147 = arith.extf %146 : vector<8x512xbf16> to vector<8x512xf32>
    %148 = arith.truncf %141 : vector<8x128xf32> to vector<8x128xbf16>
    %c0_50 = arith.constant 0 : index
    %c0_51 = arith.constant 0 : index
    %149 = vector.load %arg5[%c0_50, %c0_51] : memref<128x512xbf16, #tpu.memory_space<vmem>>, vector<128x512xbf16>
    %cst_52 = arith.constant dense<0.000000e+00> : vector<8x512xf32>
    %150 = tpu.matmul %148, %149, %cst_52 {dimension_numbers = #tpu.dot_dimension_numbers<[1], [0], [0], [1], [0, 0, 1, 1], [], []>} : vector<8x128xbf16>, vector<128x512xbf16>, vector<8x512xf32> -> vector<8x512xf32>
    %151 = arith.addf %147, %150 : vector<8x512xf32>
    %152 = vector.extract_strided_slice %151 {offsets = [0, 0], sizes = [8, 128], strides = [1, 1]} : vector<8x512xf32> to vector<8x128xf32>
    %153 = arith.negf %152 : vector<8x128xf32>
    %154 = math.exp %153 : vector<8x128xf32>
    %cst_53 = arith.constant 1.000000e+00 : f32
    %155 = vector.broadcast %cst_53 : f32 to vector<8x128xf32>
    %156 = arith.addf %155, %154 : vector<8x128xf32>
    %157 = arith.divf %155, %156 : vector<8x128xf32>
    %158 = vector.extract_strided_slice %151 {offsets = [0, 128], sizes = [8, 128], strides = [1, 1]} : vector<8x512xf32> to vector<8x128xf32>
    %159 = arith.negf %158 : vector<8x128xf32>
    %160 = math.exp %159 : vector<8x128xf32>
    %cst_54 = arith.constant 1.000000e+00 : f32
    %161 = vector.broadcast %cst_54 : f32 to vector<8x128xf32>
    %162 = arith.addf %161, %160 : vector<8x128xf32>
    %163 = arith.divf %161, %162 : vector<8x128xf32>
    %164 = vector.extract_strided_slice %151 {offsets = [0, 256], sizes = [8, 128], strides = [1, 1]} : vector<8x512xf32> to vector<8x128xf32>
    %165 = math.tanh %164 : vector<8x128xf32>
    %166 = vector.extract_strided_slice %151 {offsets = [0, 384], sizes = [8, 128], strides = [1, 1]} : vector<8x512xf32> to vector<8x128xf32>
    %167 = arith.negf %166 : vector<8x128xf32>
    %168 = math.exp %167 : vector<8x128xf32>
    %cst_55 = arith.constant 1.000000e+00 : f32
    %169 = vector.broadcast %cst_55 : f32 to vector<8x128xf32>
    %170 = arith.addf %169, %168 : vector<8x128xf32>
    %171 = arith.divf %169, %170 : vector<8x128xf32>
    %172 = arith.mulf %163, %139 : vector<8x128xf32>
    %173 = arith.mulf %157, %165 : vector<8x128xf32>
    %174 = arith.addf %172, %173 : vector<8x128xf32>
    %175 = math.tanh %174 : vector<8x128xf32>
    %176 = arith.mulf %171, %175 : vector<8x128xf32>
    %c4_56 = arith.constant 4 : index
    %c0_57 = arith.constant 0 : index
    %c0_58 = arith.constant 0 : index
    %177 = vector.load %arg4[%c4_56, %c0_57, %c0_58] : memref<16x8x128xf32, #tpu.memory_space<vmem>>, vector<1x8x128xf32>
    %178 = vector.shape_cast %177 : vector<1x8x128xf32> to vector<8x128xf32>
    %179 = vector.shape_cast %176 : vector<8x128xf32> to vector<1x8x128xf32>
    tpu.vector_store %arg4[%c4_56, %c0_57, %c0_58], %179 {strides = array<i32>} : memref<16x8x128xf32, #tpu.memory_space<vmem>>, vector<1x8x128xf32>,
    %c5 = arith.constant 5 : index
    %c0_59 = arith.constant 0 : index
    %c0_60 = arith.constant 0 : index
    %180 = vector.load %arg2[%c5, %c0_59, %c0_60] : memref<16x8x512xbf16, #tpu.memory_space<vmem>>, vector<1x8x512xbf16>
    %181 = vector.shape_cast %180 : vector<1x8x512xbf16> to vector<8x512xbf16>
    %182 = arith.extf %181 : vector<8x512xbf16> to vector<8x512xf32>
    %183 = arith.truncf %176 : vector<8x128xf32> to vector<8x128xbf16>
    %c0_61 = arith.constant 0 : index
    %c0_62 = arith.constant 0 : index
    %184 = vector.load %arg5[%c0_61, %c0_62] : memref<128x512xbf16, #tpu.memory_space<vmem>>, vector<128x512xbf16>
    %cst_63 = arith.constant dense<0.000000e+00> : vector<8x512xf32>
    %185 = tpu.matmul %183, %184, %cst_63 {dimension_numbers = #tpu.dot_dimension_numbers<[1], [0], [0], [1], [0, 0, 1, 1], [], []>} : vector<8x128xbf16>, vector<128x512xbf16>, vector<8x512xf32> -> vector<8x512xf32>
    %186 = arith.addf %182, %185 : vector<8x512xf32>
    %187 = vector.extract_strided_slice %186 {offsets = [0, 0], sizes = [8, 128], strides = [1, 1]} : vector<8x512xf32> to vector<8x128xf32>
    %188 = arith.negf %187 : vector<8x128xf32>
    %189 = math.exp %188 : vector<8x128xf32>
    %cst_64 = arith.constant 1.000000e+00 : f32
    %190 = vector.broadcast %cst_64 : f32 to vector<8x128xf32>
    %191 = arith.addf %190, %189 : vector<8x128xf32>
    %192 = arith.divf %190, %191 : vector<8x128xf32>
    %193 = vector.extract_strided_slice %186 {offsets = [0, 128], sizes = [8, 128], strides = [1, 1]} : vector<8x512xf32> to vector<8x128xf32>
    %194 = arith.negf %193 : vector<8x128xf32>
    %195 = math.exp %194 : vector<8x128xf32>
    %cst_65 = arith.constant 1.000000e+00 : f32
    %196 = vector.broadcast %cst_65 : f32 to vector<8x128xf32>
    %197 = arith.addf %196, %195 : vector<8x128xf32>
    %198 = arith.divf %196, %197 : vector<8x128xf32>
    %199 = vector.extract_strided_slice %186 {offsets = [0, 256], sizes = [8, 128], strides = [1, 1]} : vector<8x512xf32> to vector<8x128xf32>
    %200 = math.tanh %199 : vector<8x128xf32>
    %201 = vector.extract_strided_slice %186 {offsets = [0, 384], sizes = [8, 128], strides = [1, 1]} : vector<8x512xf32> to vector<8x128xf32>
    %202 = arith.negf %201 : vector<8x128xf32>
    %203 = math.exp %202 : vector<8x128xf32>
    %cst_66 = arith.constant 1.000000e+00 : f32
    %204 = vector.broadcast %cst_66 : f32 to vector<8x128xf32>
    %205 = arith.addf %204, %203 : vector<8x128xf32>
    %206 = arith.divf %204, %205 : vector<8x128xf32>
    %207 = arith.mulf %198, %174 : vector<8x128xf32>
    %208 = arith.mulf %192, %200 : vector<8x128xf32>
    %209 = arith.addf %207, %208 : vector<8x128xf32>
    %210 = math.tanh %209 : vector<8x128xf32>
    %211 = arith.mulf %206, %210 : vector<8x128xf32>
    %c5_67 = arith.constant 5 : index
    %c0_68 = arith.constant 0 : index
    %c0_69 = arith.constant 0 : index
    %212 = vector.load %arg4[%c5_67, %c0_68, %c0_69] : memref<16x8x128xf32, #tpu.memory_space<vmem>>, vector<1x8x128xf32>
    %213 = vector.shape_cast %212 : vector<1x8x128xf32> to vector<8x128xf32>
    %214 = vector.shape_cast %211 : vector<8x128xf32> to vector<1x8x128xf32>
    tpu.vector_store %arg4[%c5_67, %c0_68, %c0_69], %214 {strides = array<i32>} : memref<16x8x128xf32, #tpu.memory_space<vmem>>, vector<1x8x128xf32>,
    %c6 = arith.constant 6 : index
    %c0_70 = arith.constant 0 : index
    %c0_71 = arith.constant 0 : index
    %215 = vector.load %arg2[%c6, %c0_70, %c0_71] : memref<16x8x512xbf16, #tpu.memory_space<vmem>>, vector<1x8x512xbf16>
    %216 = vector.shape_cast %215 : vector<1x8x512xbf16> to vector<8x512xbf16>
    %217 = arith.extf %216 : vector<8x512xbf16> to vector<8x512xf32>
    %218 = arith.truncf %211 : vector<8x128xf32> to vector<8x128xbf16>
    %c0_72 = arith.constant 0 : index
    %c0_73 = arith.constant 0 : index
    %219 = vector.load %arg5[%c0_72, %c0_73] : memref<128x512xbf16, #tpu.memory_space<vmem>>, vector<128x512xbf16>
    %cst_74 = arith.constant dense<0.000000e+00> : vector<8x512xf32>
    %220 = tpu.matmul %218, %219, %cst_74 {dimension_numbers = #tpu.dot_dimension_numbers<[1], [0], [0], [1], [0, 0, 1, 1], [], []>} : vector<8x128xbf16>, vector<128x512xbf16>, vector<8x512xf32> -> vector<8x512xf32>
    %221 = arith.addf %217, %220 : vector<8x512xf32>
    %222 = vector.extract_strided_slice %221 {offsets = [0, 0], sizes = [8, 128], strides = [1, 1]} : vector<8x512xf32> to vector<8x128xf32>
    %223 = arith.negf %222 : vector<8x128xf32>
    %224 = math.exp %223 : vector<8x128xf32>
    %cst_75 = arith.constant 1.000000e+00 : f32
    %225 = vector.broadcast %cst_75 : f32 to vector<8x128xf32>
    %226 = arith.addf %225, %224 : vector<8x128xf32>
    %227 = arith.divf %225, %226 : vector<8x128xf32>
    %228 = vector.extract_strided_slice %221 {offsets = [0, 128], sizes = [8, 128], strides = [1, 1]} : vector<8x512xf32> to vector<8x128xf32>
    %229 = arith.negf %228 : vector<8x128xf32>
    %230 = math.exp %229 : vector<8x128xf32>
    %cst_76 = arith.constant 1.000000e+00 : f32
    %231 = vector.broadcast %cst_76 : f32 to vector<8x128xf32>
    %232 = arith.addf %231, %230 : vector<8x128xf32>
    %233 = arith.divf %231, %232 : vector<8x128xf32>
    %234 = vector.extract_strided_slice %221 {offsets = [0, 256], sizes = [8, 128], strides = [1, 1]} : vector<8x512xf32> to vector<8x128xf32>
    %235 = math.tanh %234 : vector<8x128xf32>
    %236 = vector.extract_strided_slice %221 {offsets = [0, 384], sizes = [8, 128], strides = [1, 1]} : vector<8x512xf32> to vector<8x128xf32>
    %237 = arith.negf %236 : vector<8x128xf32>
    %238 = math.exp %237 : vector<8x128xf32>
    %cst_77 = arith.constant 1.000000e+00 : f32
    %239 = vector.broadcast %cst_77 : f32 to vector<8x128xf32>
    %240 = arith.addf %239, %238 : vector<8x128xf32>
    %241 = arith.divf %239, %240 : vector<8x128xf32>
    %242 = arith.mulf %233, %209 : vector<8x128xf32>
    %243 = arith.mulf %227, %235 : vector<8x128xf32>
    %244 = arith.addf %242, %243 : vector<8x128xf32>
    %245 = math.tanh %244 : vector<8x128xf32>
    %246 = arith.mulf %241, %245 : vector<8x128xf32>
    %c6_78 = arith.constant 6 : index
    %c0_79 = arith.constant 0 : index
    %c0_80 = arith.constant 0 : index
    %247 = vector.load %arg4[%c6_78, %c0_79, %c0_80] : memref<16x8x128xf32, #tpu.memory_space<vmem>>, vector<1x8x128xf32>
    %248 = vector.shape_cast %247 : vector<1x8x128xf32> to vector<8x128xf32>
    %249 = vector.shape_cast %246 : vector<8x128xf32> to vector<1x8x128xf32>
    tpu.vector_store %arg4[%c6_78, %c0_79, %c0_80], %249 {strides = array<i32>} : memref<16x8x128xf32, #tpu.memory_space<vmem>>, vector<1x8x128xf32>,
    %c7 = arith.constant 7 : index
    %c0_81 = arith.constant 0 : index
    %c0_82 = arith.constant 0 : index
    %250 = vector.load %arg2[%c7, %c0_81, %c0_82] : memref<16x8x512xbf16, #tpu.memory_space<vmem>>, vector<1x8x512xbf16>
    %251 = vector.shape_cast %250 : vector<1x8x512xbf16> to vector<8x512xbf16>
    %252 = arith.extf %251 : vector<8x512xbf16> to vector<8x512xf32>
    %253 = arith.truncf %246 : vector<8x128xf32> to vector<8x128xbf16>
    %c0_83 = arith.constant 0 : index
    %c0_84 = arith.constant 0 : index
    %254 = vector.load %arg5[%c0_83, %c0_84] : memref<128x512xbf16, #tpu.memory_space<vmem>>, vector<128x512xbf16>
    %cst_85 = arith.constant dense<0.000000e+00> : vector<8x512xf32>
    %255 = tpu.matmul %253, %254, %cst_85 {dimension_numbers = #tpu.dot_dimension_numbers<[1], [0], [0], [1], [0, 0, 1, 1], [], []>} : vector<8x128xbf16>, vector<128x512xbf16>, vector<8x512xf32> -> vector<8x512xf32>
    %256 = arith.addf %252, %255 : vector<8x512xf32>
    %257 = vector.extract_strided_slice %256 {offsets = [0, 0], sizes = [8, 128], strides = [1, 1]} : vector<8x512xf32> to vector<8x128xf32>
    %258 = arith.negf %257 : vector<8x128xf32>
    %259 = math.exp %258 : vector<8x128xf32>
    %cst_86 = arith.constant 1.000000e+00 : f32
    %260 = vector.broadcast %cst_86 : f32 to vector<8x128xf32>
    %261 = arith.addf %260, %259 : vector<8x128xf32>
    %262 = arith.divf %260, %261 : vector<8x128xf32>
    %263 = vector.extract_strided_slice %256 {offsets = [0, 128], sizes = [8, 128], strides = [1, 1]} : vector<8x512xf32> to vector<8x128xf32>
    %264 = arith.negf %263 : vector<8x128xf32>
    %265 = math.exp %264 : vector<8x128xf32>
    %cst_87 = arith.constant 1.000000e+00 : f32
    %266 = vector.broadcast %cst_87 : f32 to vector<8x128xf32>
    %267 = arith.addf %266, %265 : vector<8x128xf32>
    %268 = arith.divf %266, %267 : vector<8x128xf32>
    %269 = vector.extract_strided_slice %256 {offsets = [0, 256], sizes = [8, 128], strides = [1, 1]} : vector<8x512xf32> to vector<8x128xf32>
    %270 = math.tanh %269 : vector<8x128xf32>
    %271 = vector.extract_strided_slice %256 {offsets = [0, 384], sizes = [8, 128], strides = [1, 1]} : vector<8x512xf32> to vector<8x128xf32>
    %272 = arith.negf %271 : vector<8x128xf32>
    %273 = math.exp %272 : vector<8x128xf32>
    %cst_88 = arith.constant 1.000000e+00 : f32
    %274 = vector.broadcast %cst_88 : f32 to vector<8x128xf32>
    %275 = arith.addf %274, %273 : vector<8x128xf32>
    %276 = arith.divf %274, %275 : vector<8x128xf32>
    %277 = arith.mulf %268, %244 : vector<8x128xf32>
    %278 = arith.mulf %262, %270 : vector<8x128xf32>
    %279 = arith.addf %277, %278 : vector<8x128xf32>
    %280 = math.tanh %279 : vector<8x128xf32>
    %281 = arith.mulf %276, %280 : vector<8x128xf32>
    %c7_89 = arith.constant 7 : index
    %c0_90 = arith.constant 0 : index
    %c0_91 = arith.constant 0 : index
    %282 = vector.load %arg4[%c7_89, %c0_90, %c0_91] : memref<16x8x128xf32, #tpu.memory_space<vmem>>, vector<1x8x128xf32>
    %283 = vector.shape_cast %282 : vector<1x8x128xf32> to vector<8x128xf32>
    %284 = vector.shape_cast %281 : vector<8x128xf32> to vector<1x8x128xf32>
    tpu.vector_store %arg4[%c7_89, %c0_90, %c0_91], %284 {strides = array<i32>} : memref<16x8x128xf32, #tpu.memory_space<vmem>>, vector<1x8x128xf32>,
    %c8 = arith.constant 8 : index
    %c0_92 = arith.constant 0 : index
    %c0_93 = arith.constant 0 : index
    %285 = vector.load %arg2[%c8, %c0_92, %c0_93] : memref<16x8x512xbf16, #tpu.memory_space<vmem>>, vector<1x8x512xbf16>
    %286 = vector.shape_cast %285 : vector<1x8x512xbf16> to vector<8x512xbf16>
    %287 = arith.extf %286 : vector<8x512xbf16> to vector<8x512xf32>
    %288 = arith.truncf %281 : vector<8x128xf32> to vector<8x128xbf16>
    %c0_94 = arith.constant 0 : index
    %c0_95 = arith.constant 0 : index
    %289 = vector.load %arg5[%c0_94, %c0_95] : memref<128x512xbf16, #tpu.memory_space<vmem>>, vector<128x512xbf16>
    %cst_96 = arith.constant dense<0.000000e+00> : vector<8x512xf32>
    %290 = tpu.matmul %288, %289, %cst_96 {dimension_numbers = #tpu.dot_dimension_numbers<[1], [0], [0], [1], [0, 0, 1, 1], [], []>} : vector<8x128xbf16>, vector<128x512xbf16>, vector<8x512xf32> -> vector<8x512xf32>
    %291 = arith.addf %287, %290 : vector<8x512xf32>
    %292 = vector.extract_strided_slice %291 {offsets = [0, 0], sizes = [8, 128], strides = [1, 1]} : vector<8x512xf32> to vector<8x128xf32>
    %293 = arith.negf %292 : vector<8x128xf32>
    %294 = math.exp %293 : vector<8x128xf32>
    %cst_97 = arith.constant 1.000000e+00 : f32
    %295 = vector.broadcast %cst_97 : f32 to vector<8x128xf32>
    %296 = arith.addf %295, %294 : vector<8x128xf32>
    %297 = arith.divf %295, %296 : vector<8x128xf32>
    %298 = vector.extract_strided_slice %291 {offsets = [0, 128], sizes = [8, 128], strides = [1, 1]} : vector<8x512xf32> to vector<8x128xf32>
    %299 = arith.negf %298 : vector<8x128xf32>
    %300 = math.exp %299 : vector<8x128xf32>
    %cst_98 = arith.constant 1.000000e+00 : f32
    %301 = vector.broadcast %cst_98 : f32 to vector<8x128xf32>
    %302 = arith.addf %301, %300 : vector<8x128xf32>
    %303 = arith.divf %301, %302 : vector<8x128xf32>
    %304 = vector.extract_strided_slice %291 {offsets = [0, 256], sizes = [8, 128], strides = [1, 1]} : vector<8x512xf32> to vector<8x128xf32>
    %305 = math.tanh %304 : vector<8x128xf32>
    %306 = vector.extract_strided_slice %291 {offsets = [0, 384], sizes = [8, 128], strides = [1, 1]} : vector<8x512xf32> to vector<8x128xf32>
    %307 = arith.negf %306 : vector<8x128xf32>
    %308 = math.exp %307 : vector<8x128xf32>
    %cst_99 = arith.constant 1.000000e+00 : f32
    %309 = vector.broadcast %cst_99 : f32 to vector<8x128xf32>
    %310 = arith.addf %309, %308 : vector<8x128xf32>
    %311 = arith.divf %309, %310 : vector<8x128xf32>
    %312 = arith.mulf %303, %279 : vector<8x128xf32>
    %313 = arith.mulf %297, %305 : vector<8x128xf32>
    %314 = arith.addf %312, %313 : vector<8x128xf32>
    %315 = math.tanh %314 : vector<8x128xf32>
    %316 = arith.mulf %311, %315 : vector<8x128xf32>
    %c8_100 = arith.constant 8 : index
    %c0_101 = arith.constant 0 : index
    %c0_102 = arith.constant 0 : index
    %317 = vector.load %arg4[%c8_100, %c0_101, %c0_102] : memref<16x8x128xf32, #tpu.memory_space<vmem>>, vector<1x8x128xf32>
    %318 = vector.shape_cast %317 : vector<1x8x128xf32> to vector<8x128xf32>
    %319 = vector.shape_cast %316 : vector<8x128xf32> to vector<1x8x128xf32>
    tpu.vector_store %arg4[%c8_100, %c0_101, %c0_102], %319 {strides = array<i32>} : memref<16x8x128xf32, #tpu.memory_space<vmem>>, vector<1x8x128xf32>,
    %c9 = arith.constant 9 : index
    %c0_103 = arith.constant 0 : index
    %c0_104 = arith.constant 0 : index
    %320 = vector.load %arg2[%c9, %c0_103, %c0_104] : memref<16x8x512xbf16, #tpu.memory_space<vmem>>, vector<1x8x512xbf16>
    %321 = vector.shape_cast %320 : vector<1x8x512xbf16> to vector<8x512xbf16>
    %322 = arith.extf %321 : vector<8x512xbf16> to vector<8x512xf32>
    %323 = arith.truncf %316 : vector<8x128xf32> to vector<8x128xbf16>
    %c0_105 = arith.constant 0 : index
    %c0_106 = arith.constant 0 : index
    %324 = vector.load %arg5[%c0_105, %c0_106] : memref<128x512xbf16, #tpu.memory_space<vmem>>, vector<128x512xbf16>
    %cst_107 = arith.constant dense<0.000000e+00> : vector<8x512xf32>
    %325 = tpu.matmul %323, %324, %cst_107 {dimension_numbers = #tpu.dot_dimension_numbers<[1], [0], [0], [1], [0, 0, 1, 1], [], []>} : vector<8x128xbf16>, vector<128x512xbf16>, vector<8x512xf32> -> vector<8x512xf32>
    %326 = arith.addf %322, %325 : vector<8x512xf32>
    %327 = vector.extract_strided_slice %326 {offsets = [0, 0], sizes = [8, 128], strides = [1, 1]} : vector<8x512xf32> to vector<8x128xf32>
    %328 = arith.negf %327 : vector<8x128xf32>
    %329 = math.exp %328 : vector<8x128xf32>
    %cst_108 = arith.constant 1.000000e+00 : f32
    %330 = vector.broadcast %cst_108 : f32 to vector<8x128xf32>
    %331 = arith.addf %330, %329 : vector<8x128xf32>
    %332 = arith.divf %330, %331 : vector<8x128xf32>
    %333 = vector.extract_strided_slice %326 {offsets = [0, 128], sizes = [8, 128], strides = [1, 1]} : vector<8x512xf32> to vector<8x128xf32>
    %334 = arith.negf %333 : vector<8x128xf32>
    %335 = math.exp %334 : vector<8x128xf32>
    %cst_109 = arith.constant 1.000000e+00 : f32
    %336 = vector.broadcast %cst_109 : f32 to vector<8x128xf32>
    %337 = arith.addf %336, %335 : vector<8x128xf32>
    %338 = arith.divf %336, %337 : vector<8x128xf32>
    %339 = vector.extract_strided_slice %326 {offsets = [0, 256], sizes = [8, 128], strides = [1, 1]} : vector<8x512xf32> to vector<8x128xf32>
    %340 = math.tanh %339 : vector<8x128xf32>
    %341 = vector.extract_strided_slice %326 {offsets = [0, 384], sizes = [8, 128], strides = [1, 1]} : vector<8x512xf32> to vector<8x128xf32>
    %342 = arith.negf %341 : vector<8x128xf32>
    %343 = math.exp %342 : vector<8x128xf32>
    %cst_110 = arith.constant 1.000000e+00 : f32
    %344 = vector.broadcast %cst_110 : f32 to vector<8x128xf32>
    %345 = arith.addf %344, %343 : vector<8x128xf32>
    %346 = arith.divf %344, %345 : vector<8x128xf32>
    %347 = arith.mulf %338, %314 : vector<8x128xf32>
    %348 = arith.mulf %332, %340 : vector<8x128xf32>
    %349 = arith.addf %347, %348 : vector<8x128xf32>
    %350 = math.tanh %349 : vector<8x128xf32>
    %351 = arith.mulf %346, %350 : vector<8x128xf32>
    %c9_111 = arith.constant 9 : index
    %c0_112 = arith.constant 0 : index
    %c0_113 = arith.constant 0 : index
    %352 = vector.load %arg4[%c9_111, %c0_112, %c0_113] : memref<16x8x128xf32, #tpu.memory_space<vmem>>, vector<1x8x128xf32>
    %353 = vector.shape_cast %352 : vector<1x8x128xf32> to vector<8x128xf32>
    %354 = vector.shape_cast %351 : vector<8x128xf32> to vector<1x8x128xf32>
    tpu.vector_store %arg4[%c9_111, %c0_112, %c0_113], %354 {strides = array<i32>} : memref<16x8x128xf32, #tpu.memory_space<vmem>>, vector<1x8x128xf32>,
    %c10 = arith.constant 10 : index
    %c0_114 = arith.constant 0 : index
    %c0_115 = arith.constant 0 : index
    %355 = vector.load %arg2[%c10, %c0_114, %c0_115] : memref<16x8x512xbf16, #tpu.memory_space<vmem>>, vector<1x8x512xbf16>
    %356 = vector.shape_cast %355 : vector<1x8x512xbf16> to vector<8x512xbf16>
    %357 = arith.extf %356 : vector<8x512xbf16> to vector<8x512xf32>
    %358 = arith.truncf %351 : vector<8x128xf32> to vector<8x128xbf16>
    %c0_116 = arith.constant 0 : index
    %c0_117 = arith.constant 0 : index
    %359 = vector.load %arg5[%c0_116, %c0_117] : memref<128x512xbf16, #tpu.memory_space<vmem>>, vector<128x512xbf16>
    %cst_118 = arith.constant dense<0.000000e+00> : vector<8x512xf32>
    %360 = tpu.matmul %358, %359, %cst_118 {dimension_numbers = #tpu.dot_dimension_numbers<[1], [0], [0], [1], [0, 0, 1, 1], [], []>} : vector<8x128xbf16>, vector<128x512xbf16>, vector<8x512xf32> -> vector<8x512xf32>
    %361 = arith.addf %357, %360 : vector<8x512xf32>
    %362 = vector.extract_strided_slice %361 {offsets = [0, 0], sizes = [8, 128], strides = [1, 1]} : vector<8x512xf32> to vector<8x128xf32>
    %363 = arith.negf %362 : vector<8x128xf32>
    %364 = math.exp %363 : vector<8x128xf32>
    %cst_119 = arith.constant 1.000000e+00 : f32
    %365 = vector.broadcast %cst_119 : f32 to vector<8x128xf32>
    %366 = arith.addf %365, %364 : vector<8x128xf32>
    %367 = arith.divf %365, %366 : vector<8x128xf32>
    %368 = vector.extract_strided_slice %361 {offsets = [0, 128], sizes = [8, 128], strides = [1, 1]} : vector<8x512xf32> to vector<8x128xf32>
    %369 = arith.negf %368 : vector<8x128xf32>
    %370 = math.exp %369 : vector<8x128xf32>
    %cst_120 = arith.constant 1.000000e+00 : f32
    %371 = vector.broadcast %cst_120 : f32 to vector<8x128xf32>
    %372 = arith.addf %371, %370 : vector<8x128xf32>
    %373 = arith.divf %371, %372 : vector<8x128xf32>
    %374 = vector.extract_strided_slice %361 {offsets = [0, 256], sizes = [8, 128], strides = [1, 1]} : vector<8x512xf32> to vector<8x128xf32>
    %375 = math.tanh %374 : vector<8x128xf32>
    %376 = vector.extract_strided_slice %361 {offsets = [0, 384], sizes = [8, 128], strides = [1, 1]} : vector<8x512xf32> to vector<8x128xf32>
    %377 = arith.negf %376 : vector<8x128xf32>
    %378 = math.exp %377 : vector<8x128xf32>
    %cst_121 = arith.constant 1.000000e+00 : f32
    %379 = vector.broadcast %cst_121 : f32 to vector<8x128xf32>
    %380 = arith.addf %379, %378 : vector<8x128xf32>
    %381 = arith.divf %379, %380 : vector<8x128xf32>
    %382 = arith.mulf %373, %349 : vector<8x128xf32>
    %383 = arith.mulf %367, %375 : vector<8x128xf32>
    %384 = arith.addf %382, %383 : vector<8x128xf32>
    %385 = math.tanh %384 : vector<8x128xf32>
    %386 = arith.mulf %381, %385 : vector<8x128xf32>
    %c10_122 = arith.constant 10 : index
    %c0_123 = arith.constant 0 : index
    %c0_124 = arith.constant 0 : index
    %387 = vector.load %arg4[%c10_122, %c0_123, %c0_124] : memref<16x8x128xf32, #tpu.memory_space<vmem>>, vector<1x8x128xf32>
    %388 = vector.shape_cast %387 : vector<1x8x128xf32> to vector<8x128xf32>
    %389 = vector.shape_cast %386 : vector<8x128xf32> to vector<1x8x128xf32>
    tpu.vector_store %arg4[%c10_122, %c0_123, %c0_124], %389 {strides = array<i32>} : memref<16x8x128xf32, #tpu.memory_space<vmem>>, vector<1x8x128xf32>,
    %c11 = arith.constant 11 : index
    %c0_125 = arith.constant 0 : index
    %c0_126 = arith.constant 0 : index
    %390 = vector.load %arg2[%c11, %c0_125, %c0_126] : memref<16x8x512xbf16, #tpu.memory_space<vmem>>, vector<1x8x512xbf16>
    %391 = vector.shape_cast %390 : vector<1x8x512xbf16> to vector<8x512xbf16>
    %392 = arith.extf %391 : vector<8x512xbf16> to vector<8x512xf32>
    %393 = arith.truncf %386 : vector<8x128xf32> to vector<8x128xbf16>
    %c0_127 = arith.constant 0 : index
    %c0_128 = arith.constant 0 : index
    %394 = vector.load %arg5[%c0_127, %c0_128] : memref<128x512xbf16, #tpu.memory_space<vmem>>, vector<128x512xbf16>
    %cst_129 = arith.constant dense<0.000000e+00> : vector<8x512xf32>
    %395 = tpu.matmul %393, %394, %cst_129 {dimension_numbers = #tpu.dot_dimension_numbers<[1], [0], [0], [1], [0, 0, 1, 1], [], []>} : vector<8x128xbf16>, vector<128x512xbf16>, vector<8x512xf32> -> vector<8x512xf32>
    %396 = arith.addf %392, %395 : vector<8x512xf32>
    %397 = vector.extract_strided_slice %396 {offsets = [0, 0], sizes = [8, 128], strides = [1, 1]} : vector<8x512xf32> to vector<8x128xf32>
    %398 = arith.negf %397 : vector<8x128xf32>
    %399 = math.exp %398 : vector<8x128xf32>
    %cst_130 = arith.constant 1.000000e+00 : f32
    %400 = vector.broadcast %cst_130 : f32 to vector<8x128xf32>
    %401 = arith.addf %400, %399 : vector<8x128xf32>
    %402 = arith.divf %400, %401 : vector<8x128xf32>
    %403 = vector.extract_strided_slice %396 {offsets = [0, 128], sizes = [8, 128], strides = [1, 1]} : vector<8x512xf32> to vector<8x128xf32>
    %404 = arith.negf %403 : vector<8x128xf32>
    %405 = math.exp %404 : vector<8x128xf32>
    %cst_131 = arith.constant 1.000000e+00 : f32
    %406 = vector.broadcast %cst_131 : f32 to vector<8x128xf32>
    %407 = arith.addf %406, %405 : vector<8x128xf32>
    %408 = arith.divf %406, %407 : vector<8x128xf32>
    %409 = vector.extract_strided_slice %396 {offsets = [0, 256], sizes = [8, 128], strides = [1, 1]} : vector<8x512xf32> to vector<8x128xf32>
    %410 = math.tanh %409 : vector<8x128xf32>
    %411 = vector.extract_strided_slice %396 {offsets = [0, 384], sizes = [8, 128], strides = [1, 1]} : vector<8x512xf32> to vector<8x128xf32>
    %412 = arith.negf %411 : vector<8x128xf32>
    %413 = math.exp %412 : vector<8x128xf32>
    %cst_132 = arith.constant 1.000000e+00 : f32
    %414 = vector.broadcast %cst_132 : f32 to vector<8x128xf32>
    %415 = arith.addf %414, %413 : vector<8x128xf32>
    %416 = arith.divf %414, %415 : vector<8x128xf32>
    %417 = arith.mulf %408, %384 : vector<8x128xf32>
    %418 = arith.mulf %402, %410 : vector<8x128xf32>
    %419 = arith.addf %417, %418 : vector<8x128xf32>
    %420 = math.tanh %419 : vector<8x128xf32>
    %421 = arith.mulf %416, %420 : vector<8x128xf32>
    %c11_133 = arith.constant 11 : index
    %c0_134 = arith.constant 0 : index
    %c0_135 = arith.constant 0 : index
    %422 = vector.load %arg4[%c11_133, %c0_134, %c0_135] : memref<16x8x128xf32, #tpu.memory_space<vmem>>, vector<1x8x128xf32>
    %423 = vector.shape_cast %422 : vector<1x8x128xf32> to vector<8x128xf32>
    %424 = vector.shape_cast %421 : vector<8x128xf32> to vector<1x8x128xf32>
    tpu.vector_store %arg4[%c11_133, %c0_134, %c0_135], %424 {strides = array<i32>} : memref<16x8x128xf32, #tpu.memory_space<vmem>>, vector<1x8x128xf32>,
    %c12 = arith.constant 12 : index
    %c0_136 = arith.constant 0 : index
    %c0_137 = arith.constant 0 : index
    %425 = vector.load %arg2[%c12, %c0_136, %c0_137] : memref<16x8x512xbf16, #tpu.memory_space<vmem>>, vector<1x8x512xbf16>
    %426 = vector.shape_cast %425 : vector<1x8x512xbf16> to vector<8x512xbf16>
    %427 = arith.extf %426 : vector<8x512xbf16> to vector<8x512xf32>
    %428 = arith.truncf %421 : vector<8x128xf32> to vector<8x128xbf16>
    %c0_138 = arith.constant 0 : index
    %c0_139 = arith.constant 0 : index
    %429 = vector.load %arg5[%c0_138, %c0_139] : memref<128x512xbf16, #tpu.memory_space<vmem>>, vector<128x512xbf16>
    %cst_140 = arith.constant dense<0.000000e+00> : vector<8x512xf32>
    %430 = tpu.matmul %428, %429, %cst_140 {dimension_numbers = #tpu.dot_dimension_numbers<[1], [0], [0], [1], [0, 0, 1, 1], [], []>} : vector<8x128xbf16>, vector<128x512xbf16>, vector<8x512xf32> -> vector<8x512xf32>
    %431 = arith.addf %427, %430 : vector<8x512xf32>
    %432 = vector.extract_strided_slice %431 {offsets = [0, 0], sizes = [8, 128], strides = [1, 1]} : vector<8x512xf32> to vector<8x128xf32>
    %433 = arith.negf %432 : vector<8x128xf32>
    %434 = math.exp %433 : vector<8x128xf32>
    %cst_141 = arith.constant 1.000000e+00 : f32
    %435 = vector.broadcast %cst_141 : f32 to vector<8x128xf32>
    %436 = arith.addf %435, %434 : vector<8x128xf32>
    %437 = arith.divf %435, %436 : vector<8x128xf32>
    %438 = vector.extract_strided_slice %431 {offsets = [0, 128], sizes = [8, 128], strides = [1, 1]} : vector<8x512xf32> to vector<8x128xf32>
    %439 = arith.negf %438 : vector<8x128xf32>
    %440 = math.exp %439 : vector<8x128xf32>
    %cst_142 = arith.constant 1.000000e+00 : f32
    %441 = vector.broadcast %cst_142 : f32 to vector<8x128xf32>
    %442 = arith.addf %441, %440 : vector<8x128xf32>
    %443 = arith.divf %441, %442 : vector<8x128xf32>
    %444 = vector.extract_strided_slice %431 {offsets = [0, 256], sizes = [8, 128], strides = [1, 1]} : vector<8x512xf32> to vector<8x128xf32>
    %445 = math.tanh %444 : vector<8x128xf32>
    %446 = vector.extract_strided_slice %431 {offsets = [0, 384], sizes = [8, 128], strides = [1, 1]} : vector<8x512xf32> to vector<8x128xf32>
    %447 = arith.negf %446 : vector<8x128xf32>
    %448 = math.exp %447 : vector<8x128xf32>
    %cst_143 = arith.constant 1.000000e+00 : f32
    %449 = vector.broadcast %cst_143 : f32 to vector<8x128xf32>
    %450 = arith.addf %449, %448 : vector<8x128xf32>
    %451 = arith.divf %449, %450 : vector<8x128xf32>
    %452 = arith.mulf %443, %419 : vector<8x128xf32>
    %453 = arith.mulf %437, %445 : vector<8x128xf32>
    %454 = arith.addf %452, %453 : vector<8x128xf32>
    %455 = math.tanh %454 : vector<8x128xf32>
    %456 = arith.mulf %451, %455 : vector<8x128xf32>
    %c12_144 = arith.constant 12 : index
    %c0_145 = arith.constant 0 : index
    %c0_146 = arith.constant 0 : index
    %457 = vector.load %arg4[%c12_144, %c0_145, %c0_146] : memref<16x8x128xf32, #tpu.memory_space<vmem>>, vector<1x8x128xf32>
    %458 = vector.shape_cast %457 : vector<1x8x128xf32> to vector<8x128xf32>
    %459 = vector.shape_cast %456 : vector<8x128xf32> to vector<1x8x128xf32>
    tpu.vector_store %arg4[%c12_144, %c0_145, %c0_146], %459 {strides = array<i32>} : memref<16x8x128xf32, #tpu.memory_space<vmem>>, vector<1x8x128xf32>,
    %c13 = arith.constant 13 : index
    %c0_147 = arith.constant 0 : index
    %c0_148 = arith.constant 0 : index
    %460 = vector.load %arg2[%c13, %c0_147, %c0_148] : memref<16x8x512xbf16, #tpu.memory_space<vmem>>, vector<1x8x512xbf16>
    %461 = vector.shape_cast %460 : vector<1x8x512xbf16> to vector<8x512xbf16>
    %462 = arith.extf %461 : vector<8x512xbf16> to vector<8x512xf32>
    %463 = arith.truncf %456 : vector<8x128xf32> to vector<8x128xbf16>
    %c0_149 = arith.constant 0 : index
    %c0_150 = arith.constant 0 : index
    %464 = vector.load %arg5[%c0_149, %c0_150] : memref<128x512xbf16, #tpu.memory_space<vmem>>, vector<128x512xbf16>
    %cst_151 = arith.constant dense<0.000000e+00> : vector<8x512xf32>
    %465 = tpu.matmul %463, %464, %cst_151 {dimension_numbers = #tpu.dot_dimension_numbers<[1], [0], [0], [1], [0, 0, 1, 1], [], []>} : vector<8x128xbf16>, vector<128x512xbf16>, vector<8x512xf32> -> vector<8x512xf32>
    %466 = arith.addf %462, %465 : vector<8x512xf32>
    %467 = vector.extract_strided_slice %466 {offsets = [0, 0], sizes = [8, 128], strides = [1, 1]} : vector<8x512xf32> to vector<8x128xf32>
    %468 = arith.negf %467 : vector<8x128xf32>
    %469 = math.exp %468 : vector<8x128xf32>
    %cst_152 = arith.constant 1.000000e+00 : f32
    %470 = vector.broadcast %cst_152 : f32 to vector<8x128xf32>
    %471 = arith.addf %470, %469 : vector<8x128xf32>
    %472 = arith.divf %470, %471 : vector<8x128xf32>
    %473 = vector.extract_strided_slice %466 {offsets = [0, 128], sizes = [8, 128], strides = [1, 1]} : vector<8x512xf32> to vector<8x128xf32>
    %474 = arith.negf %473 : vector<8x128xf32>
    %475 = math.exp %474 : vector<8x128xf32>
    %cst_153 = arith.constant 1.000000e+00 : f32
    %476 = vector.broadcast %cst_153 : f32 to vector<8x128xf32>
    %477 = arith.addf %476, %475 : vector<8x128xf32>
    %478 = arith.divf %476, %477 : vector<8x128xf32>
    %479 = vector.extract_strided_slice %466 {offsets = [0, 256], sizes = [8, 128], strides = [1, 1]} : vector<8x512xf32> to vector<8x128xf32>
    %480 = math.tanh %479 : vector<8x128xf32>
    %481 = vector.extract_strided_slice %466 {offsets = [0, 384], sizes = [8, 128], strides = [1, 1]} : vector<8x512xf32> to vector<8x128xf32>
    %482 = arith.negf %481 : vector<8x128xf32>
    %483 = math.exp %482 : vector<8x128xf32>
    %cst_154 = arith.constant 1.000000e+00 : f32
    %484 = vector.broadcast %cst_154 : f32 to vector<8x128xf32>
    %485 = arith.addf %484, %483 : vector<8x128xf32>
    %486 = arith.divf %484, %485 : vector<8x128xf32>
    %487 = arith.mulf %478, %454 : vector<8x128xf32>
    %488 = arith.mulf %472, %480 : vector<8x128xf32>
    %489 = arith.addf %487, %488 : vector<8x128xf32>
    %490 = math.tanh %489 : vector<8x128xf32>
    %491 = arith.mulf %486, %490 : vector<8x128xf32>
    %c13_155 = arith.constant 13 : index
    %c0_156 = arith.constant 0 : index
    %c0_157 = arith.constant 0 : index
    %492 = vector.load %arg4[%c13_155, %c0_156, %c0_157] : memref<16x8x128xf32, #tpu.memory_space<vmem>>, vector<1x8x128xf32>
    %493 = vector.shape_cast %492 : vector<1x8x128xf32> to vector<8x128xf32>
    %494 = vector.shape_cast %491 : vector<8x128xf32> to vector<1x8x128xf32>
    tpu.vector_store %arg4[%c13_155, %c0_156, %c0_157], %494 {strides = array<i32>} : memref<16x8x128xf32, #tpu.memory_space<vmem>>, vector<1x8x128xf32>,
    %c14 = arith.constant 14 : index
    %c0_158 = arith.constant 0 : index
    %c0_159 = arith.constant 0 : index
    %495 = vector.load %arg2[%c14, %c0_158, %c0_159] : memref<16x8x512xbf16, #tpu.memory_space<vmem>>, vector<1x8x512xbf16>
    %496 = vector.shape_cast %495 : vector<1x8x512xbf16> to vector<8x512xbf16>
    %497 = arith.extf %496 : vector<8x512xbf16> to vector<8x512xf32>
    %498 = arith.truncf %491 : vector<8x128xf32> to vector<8x128xbf16>
    %c0_160 = arith.constant 0 : index
    %c0_161 = arith.constant 0 : index
    %499 = vector.load %arg5[%c0_160, %c0_161] : memref<128x512xbf16, #tpu.memory_space<vmem>>, vector<128x512xbf16>
    %cst_162 = arith.constant dense<0.000000e+00> : vector<8x512xf32>
    %500 = tpu.matmul %498, %499, %cst_162 {dimension_numbers = #tpu.dot_dimension_numbers<[1], [0], [0], [1], [0, 0, 1, 1], [], []>} : vector<8x128xbf16>, vector<128x512xbf16>, vector<8x512xf32> -> vector<8x512xf32>
    %501 = arith.addf %497, %500 : vector<8x512xf32>
    %502 = vector.extract_strided_slice %501 {offsets = [0, 0], sizes = [8, 128], strides = [1, 1]} : vector<8x512xf32> to vector<8x128xf32>
    %503 = arith.negf %502 : vector<8x128xf32>
    %504 = math.exp %503 : vector<8x128xf32>
    %cst_163 = arith.constant 1.000000e+00 : f32
    %505 = vector.broadcast %cst_163 : f32 to vector<8x128xf32>
    %506 = arith.addf %505, %504 : vector<8x128xf32>
    %507 = arith.divf %505, %506 : vector<8x128xf32>
    %508 = vector.extract_strided_slice %501 {offsets = [0, 128], sizes = [8, 128], strides = [1, 1]} : vector<8x512xf32> to vector<8x128xf32>
    %509 = arith.negf %508 : vector<8x128xf32>
    %510 = math.exp %509 : vector<8x128xf32>
    %cst_164 = arith.constant 1.000000e+00 : f32
    %511 = vector.broadcast %cst_164 : f32 to vector<8x128xf32>
    %512 = arith.addf %511, %510 : vector<8x128xf32>
    %513 = arith.divf %511, %512 : vector<8x128xf32>
    %514 = vector.extract_strided_slice %501 {offsets = [0, 256], sizes = [8, 128], strides = [1, 1]} : vector<8x512xf32> to vector<8x128xf32>
    %515 = math.tanh %514 : vector<8x128xf32>
    %516 = vector.extract_strided_slice %501 {offsets = [0, 384], sizes = [8, 128], strides = [1, 1]} : vector<8x512xf32> to vector<8x128xf32>
    %517 = arith.negf %516 : vector<8x128xf32>
    %518 = math.exp %517 : vector<8x128xf32>
    %cst_165 = arith.constant 1.000000e+00 : f32
    %519 = vector.broadcast %cst_165 : f32 to vector<8x128xf32>
    %520 = arith.addf %519, %518 : vector<8x128xf32>
    %521 = arith.divf %519, %520 : vector<8x128xf32>
    %522 = arith.mulf %513, %489 : vector<8x128xf32>
    %523 = arith.mulf %507, %515 : vector<8x128xf32>
    %524 = arith.addf %522, %523 : vector<8x128xf32>
    %525 = math.tanh %524 : vector<8x128xf32>
    %526 = arith.mulf %521, %525 : vector<8x128xf32>
    %c14_166 = arith.constant 14 : index
    %c0_167 = arith.constant 0 : index
    %c0_168 = arith.constant 0 : index
    %527 = vector.load %arg4[%c14_166, %c0_167, %c0_168] : memref<16x8x128xf32, #tpu.memory_space<vmem>>, vector<1x8x128xf32>
    %528 = vector.shape_cast %527 : vector<1x8x128xf32> to vector<8x128xf32>
    %529 = vector.shape_cast %526 : vector<8x128xf32> to vector<1x8x128xf32>
    tpu.vector_store %arg4[%c14_166, %c0_167, %c0_168], %529 {strides = array<i32>} : memref<16x8x128xf32, #tpu.memory_space<vmem>>, vector<1x8x128xf32>,
    %c15 = arith.constant 15 : index
    %c0_169 = arith.constant 0 : index
    %c0_170 = arith.constant 0 : index
    %530 = vector.load %arg2[%c15, %c0_169, %c0_170] : memref<16x8x512xbf16, #tpu.memory_space<vmem>>, vector<1x8x512xbf16>
    %531 = vector.shape_cast %530 : vector<1x8x512xbf16> to vector<8x512xbf16>
    %532 = arith.extf %531 : vector<8x512xbf16> to vector<8x512xf32>
    %533 = arith.truncf %526 : vector<8x128xf32> to vector<8x128xbf16>
    %c0_171 = arith.constant 0 : index
    %c0_172 = arith.constant 0 : index
    %534 = vector.load %arg5[%c0_171, %c0_172] : memref<128x512xbf16, #tpu.memory_space<vmem>>, vector<128x512xbf16>
    %cst_173 = arith.constant dense<0.000000e+00> : vector<8x512xf32>
    %535 = tpu.matmul %533, %534, %cst_173 {dimension_numbers = #tpu.dot_dimension_numbers<[1], [0], [0], [1], [0, 0, 1, 1], [], []>} : vector<8x128xbf16>, vector<128x512xbf16>, vector<8x512xf32> -> vector<8x512xf32>
    %536 = arith.addf %532, %535 : vector<8x512xf32>
    %537 = vector.extract_strided_slice %536 {offsets = [0, 0], sizes = [8, 128], strides = [1, 1]} : vector<8x512xf32> to vector<8x128xf32>
    %538 = arith.negf %537 : vector<8x128xf32>
    %539 = math.exp %538 : vector<8x128xf32>
    %cst_174 = arith.constant 1.000000e+00 : f32
    %540 = vector.broadcast %cst_174 : f32 to vector<8x128xf32>
    %541 = arith.addf %540, %539 : vector<8x128xf32>
    %542 = arith.divf %540, %541 : vector<8x128xf32>
    %543 = vector.extract_strided_slice %536 {offsets = [0, 128], sizes = [8, 128], strides = [1, 1]} : vector<8x512xf32> to vector<8x128xf32>
    %544 = arith.negf %543 : vector<8x128xf32>
    %545 = math.exp %544 : vector<8x128xf32>
    %cst_175 = arith.constant 1.000000e+00 : f32
    %546 = vector.broadcast %cst_175 : f32 to vector<8x128xf32>
    %547 = arith.addf %546, %545 : vector<8x128xf32>
    %548 = arith.divf %546, %547 : vector<8x128xf32>
    %549 = vector.extract_strided_slice %536 {offsets = [0, 256], sizes = [8, 128], strides = [1, 1]} : vector<8x512xf32> to vector<8x128xf32>
    %550 = math.tanh %549 : vector<8x128xf32>
    %551 = vector.extract_strided_slice %536 {offsets = [0, 384], sizes = [8, 128], strides = [1, 1]} : vector<8x512xf32> to vector<8x128xf32>
    %552 = arith.negf %551 : vector<8x128xf32>
    %553 = math.exp %552 : vector<8x128xf32>
    %cst_176 = arith.constant 1.000000e+00 : f32
    %554 = vector.broadcast %cst_176 : f32 to vector<8x128xf32>
    %555 = arith.addf %554, %553 : vector<8x128xf32>
    %556 = arith.divf %554, %555 : vector<8x128xf32>
    %557 = arith.mulf %548, %524 : vector<8x128xf32>
    %558 = arith.mulf %542, %550 : vector<8x128xf32>
    %559 = arith.addf %557, %558 : vector<8x128xf32>
    %560 = math.tanh %559 : vector<8x128xf32>
    %561 = arith.mulf %556, %560 : vector<8x128xf32>
    %c15_177 = arith.constant 15 : index
    %c0_178 = arith.constant 0 : index
    %c0_179 = arith.constant 0 : index
    %562 = vector.load %arg4[%c15_177, %c0_178, %c0_179] : memref<16x8x128xf32, #tpu.memory_space<vmem>>, vector<1x8x128xf32>
    %563 = vector.shape_cast %562 : vector<1x8x128xf32> to vector<8x128xf32>
    %564 = vector.shape_cast %561 : vector<8x128xf32> to vector<1x8x128xf32>
    tpu.vector_store %arg4[%c15_177, %c0_178, %c0_179], %564 {strides = array<i32>} : memref<16x8x128xf32, #tpu.memory_space<vmem>>, vector<1x8x128xf32>,
    %c0_180 = arith.constant 0 : index
    %c0_181 = arith.constant 0 : index
    %565 = vector.load %arg6[%c0_180, %c0_181] : memref<8x128xf32, #tpu.memory_space<vmem>>, vector<8x128xf32>
    tpu.vector_store %arg6[%c0_180, %c0_181], %561 {strides = array<i32>} : memref<8x128xf32, #tpu.memory_space<vmem>>, vector<8x128xf32>,
    %c0_182 = arith.constant 0 : index
    %c0_183 = arith.constant 0 : index
    %566 = vector.load %arg7[%c0_182, %c0_183] : memref<8x128xf32, #tpu.memory_space<vmem>>, vector<8x128xf32>
    tpu.vector_store %arg7[%c0_182, %c0_183], %559 {strides = array<i32>} : memref<8x128xf32, #tpu.memory_space<vmem>>, vector<8x128xf32>,
    return
  }
  func.func @transform_0(%arg0: i32, %arg1: i32) -> (i32, i32, i32) {
    %c0_i32 = arith.constant 0 : i32
    %c0_i32_0 = arith.constant 0 : i32
    return %arg1, %arg0, %c0_i32 : i32, i32, i32
  }
  func.func @transform_2(%arg0: i32, %arg1: i32) -> (i32, i32, i32) {
    %c0_i32 = arith.constant 0 : i32
    %c0_i32_0 = arith.constant 0 : i32
    return %arg1, %arg0, %c0_i32 : i32, i32, i32
  }
}

module attributes {stable_mosaic.version = 11 : i64} {
  func.func @_matmul_bias_kernel_1k(%arg0: i32, %arg1: i32, %arg2: memref<128x128xf32, #tpu.memory_space<vmem>>, %arg3: memref<128x256xbf16, #tpu.memory_space<vmem>>, %arg4: memref<1x256xf32, #tpu.memory_space<vmem>>, %arg5: memref<128x256xf32, #tpu.memory_space<vmem>>) attributes {dimension_semantics = [#tpu.dimension_semantics<parallel>, #tpu.dimension_semantics<parallel>], iteration_bounds = array<i64: 1, 1>, scalar_prefetch = 0 : i64, scratch_operands = 0 : i64, tpu.core_type = #tpu.core_type<tc>, window_params = [{transform_indices = @transform_0, window_bounds = array<i64: 128, 128>}, {transform_indices = @transform_1, window_bounds = array<i64: 128, 256>}, {transform_indices = @transform_2, window_bounds = array<i64: 1, 256>}, {transform_indices = @transform_3, window_bounds = array<i64: 128, 256>}]} {
    %c0 = arith.constant 0 : index
    %c0_0 = arith.constant 0 : index
    %0 = vector.load %arg2[%c0, %c0_0] : memref<128x128xf32, #tpu.memory_space<vmem>>, vector<128x128xf32>
    %1 = arith.truncf %0 : vector<128x128xf32> to vector<128x128xbf16>
    %c0_1 = arith.constant 0 : index
    %c0_2 = arith.constant 0 : index
    %2 = vector.load %arg3[%c0_1, %c0_2] : memref<128x256xbf16, #tpu.memory_space<vmem>>, vector<128x256xbf16>
    %cst = arith.constant dense<0.000000e+00> : vector<128x256xf32>
    %3 = tpu.matmul %1, %2, %cst {dimension_numbers = #tpu.dot_dimension_numbers<[1], [0], [0], [1], [0, 0, 1, 1], [], []>} : vector<128x128xbf16>, vector<128x256xbf16>, vector<128x256xf32> -> vector<128x256xf32>
    %c0_3 = arith.constant 0 : index
    %c0_4 = arith.constant 0 : index
    %4 = vector.load %arg4[%c0_3, %c0_4] : memref<1x256xf32, #tpu.memory_space<vmem>>, vector<1x256xf32>
    %5 = vector.broadcast %4 : vector<1x256xf32> to vector<128x256xf32>
    %6 = arith.addf %3, %5 : vector<128x256xf32>
    %c0_5 = arith.constant 0 : index
    %c0_6 = arith.constant 0 : index
    %7 = vector.load %arg5[%c0_5, %c0_6] : memref<128x256xf32, #tpu.memory_space<vmem>>, vector<128x256xf32>
    tpu.vector_store %arg5[%c0_5, %c0_6], %6 {strides = array<i32>} : memref<128x256xf32, #tpu.memory_space<vmem>>, vector<128x256xf32>,
    return
  }
  func.func @transform_0(%arg0: i32, %arg1: i32) -> (i32, i32) {
    %c0_i32 = arith.constant 0 : i32
    %c0_i32_0 = arith.constant 0 : i32
    return %arg0, %c0_i32 : i32, i32
  }
  func.func @transform_1(%arg0: i32, %arg1: i32) -> (i32, i32) {
    %c0_i32 = arith.constant 0 : i32
    %c0_i32_0 = arith.constant 0 : i32
    return %c0_i32, %arg1 : i32, i32
  }
  func.func @transform_2(%arg0: i32, %arg1: i32) -> (i32, i32) {
    %c0_i32 = arith.constant 0 : i32
    %c0_i32_0 = arith.constant 0 : i32
    return %c0_i32, %arg1 : i32, i32
  }
  func.func @transform_3(%arg0: i32, %arg1: i32) -> (i32, i32) {
    %c0_i32 = arith.constant 0 : i32
    return %arg0, %arg1 : i32, i32
  }
}

</mosaic_0001>

<llo_original>
// kernel: lm_lstm_forward.5
$region0: #{lm_lstm_forward.5}
  #allocation0 [shape = 'u32[]', space=smem, size = 0x4, offset = 0x4, fixed_abs, tag = 'smem constant byte address 0x4 - core index']
  #allocation1 [shape = 'u32[144,128]{1,0:T(1,128)}', space=vmem, size = 0x12000, scoped, tag = 'internal scratch']
  %s0 = inlined_call_operand.vmem [shape: f32[128,128], index: 0, kind: input, shape index: {}]
  %s1 = inlined_call_operand.vmem [shape: bf16[128,256], index: 1, kind: input, shape index: {}]
  %s2 = inlined_call_operand.vmem [shape: f32[1,256], index: 2, kind: input, shape index: {}]
  %s3 = inlined_call_operand.vmem [shape: f32[128,256], index: 3, kind: output, shape index: {}]
  %s4 = sld [smem:[#allocation0]]
  $region22: #{lm_lstm_forward.5} parent=0
    _
  %s6 = ssub.s32 1, %s4
  %s7 = scalar_select 0, %s6, %s4
  // Predicated region
  $region2: #{lm_lstm_forward.5} parent=0 // pred_check
    _
  $region3: #{lm_lstm_forward.5} parent=0 // pred_check_branch
    %9 = sbr.rel (0) target = $region5
  $region4: #{lm_lstm_forward.5} parent=0 // pred_region
    _
  $region5: #{lm_lstm_forward.5} parent=0 // pred_fallthru
    _
  // Predicated region
  $region6: #{lm_lstm_forward.5} parent=0 // pred_check
    _
  $region7: #{lm_lstm_forward.5} parent=0 // pred_check_branch
    %11 = sbr.rel (0) target = $region9
  $region8: #{lm_lstm_forward.5} parent=0 // pred_region
    _
  $region9: #{lm_lstm_forward.5} parent=0 // pred_fallthru
    _
  // Predicated region
  $region10: #{lm_lstm_forward.5} parent=0 // pred_check
    _
  $region11: #{lm_lstm_forward.5} parent=0 // pred_check_branch
    %13 = sbr.rel (0) target = $region13
  $region12: #{lm_lstm_forward.5} parent=0 // pred_region
    _
  $region13: #{lm_lstm_forward.5} parent=0 // pred_fallthru
    _
  %v15 = vld [vmem:[%s0] sm:$0xff]
  %v16 = vld [vmem:[%s0 + $0x8] sm:$0xff]
  %v17 = vld [vmem:[%s0 + $0x10] sm:$0xff]
  %v18 = vld [vmem:[%s0 + $0x18] sm:$0xff]
  %v19 = vld [vmem:[%s0 + $0x20] sm:$0xff]
  %v20 = vld [vmem:[%s0 + $0x28] sm:$0xff]
  %v21 = vld [vmem:[%s0 + $0x30] sm:$0xff]
  %v22 = vld [vmem:[%s0 + $0x38] sm:$0xff]
  %v23 = vld [vmem:[%s0 + $0x40] sm:$0xff]
  %v24 = vld [vmem:[%s0 + $0x48] sm:$0xff]
  %v25 = vld [vmem:[%s0 + $0x50] sm:$0xff]
  %v26 = vld [vmem:[%s0 + $0x58] sm:$0xff]
  %v27 = vld [vmem:[%s0 + $0x60] sm:$0xff]
  %v28 = vld [vmem:[%s0 + $0x68] sm:$0xff]
  %v29 = vld [vmem:[%s0 + $0x70] sm:$0xff]
  %v30 = vld [vmem:[%s0 + $0x78] sm:$0xff]
  %v31 = vpack.c.bf16 %v16, %v15
  %v32 = vpack.c.bf16 %v18, %v17
  %v33 = vpack.c.bf16 %v20, %v19
  %v34 = vpack.c.bf16 %v22, %v21
  %v35 = vpack.c.bf16 %v24, %v23
  %v36 = vpack.c.bf16 %v26, %v25
  %v37 = vpack.c.bf16 %v28, %v27
  %v38 = vpack.c.bf16 %v30, %v29
  %v39 = vld [vmem:[%s1] sm:$0xff]
  %v40 = vld [vmem:[%s1 + $0x8] sm:$0xff]
  %v41 = vld [vmem:[%s1 + $0x10] sm:$0xff]
  %v42 = vld [vmem:[%s1 + $0x18] sm:$0xff]
  %v43 = vld [vmem:[%s1 + $0x20] sm:$0xff]
  %v44 = vld [vmem:[%s1 + $0x28] sm:$0xff]
  %v45 = vld [vmem:[%s1 + $0x30] sm:$0xff]
  %v46 = vld [vmem:[%s1 + $0x38] sm:$0xff]
  %v47 = vld [vmem:[%s1 + $0x40] sm:$0xff]
  %v48 = vld [vmem:[%s1 + $0x48] sm:$0xff]
  %v49 = vld [vmem:[%s1 + $0x50] sm:$0xff]
  %v50 = vld [vmem:[%s1 + $0x58] sm:$0xff]
  %v51 = vld [vmem:[%s1 + $0x60] sm:$0xff]
  %v52 = vld [vmem:[%s1 + $0x68] sm:$0xff]
  %v53 = vld [vmem:[%s1 + $0x70] sm:$0xff]
  %v54 = vld [vmem:[%s1 + $0x78] sm:$0xff]
  %v55 = vld [vmem:[%s2] sm:$0x3]
  %v57 = vlaneseq
  %v58 = vshrl.u32 %v57, 7
  %v59 = vsub.s32 0, %v58
  %v60 = vrot.slane %v55, %v59
  %v61 = vlaneseq
  %v62 = vshrl.u32 %v61, 7
  %v63 = vsub.s32 1, %v62
  %v64 = vrot.slane %v55, %v63
  %v83 = vunpack.c.l.b16 %v39
  %v84 = vunpack.c.h.b16 %v39
  %v85 = vunpack.c.l.b16 %v40
  %v86 = vunpack.c.h.b16 %v40
  %v87 = vunpack.c.l.b16 %v41
  %v88 = vunpack.c.h.b16 %v41
  %v89 = vunpack.c.l.b16 %v42
  %v90 = vunpack.c.h.b16 %v42
  %v91 = vunpack.c.l.b16 %v43
  %v92 = vunpack.c.h.b16 %v43
  %v93 = vunpack.c.l.b16 %v44
  %v94 = vunpack.c.h.b16 %v44
  %v95 = vunpack.c.l.b16 %v45
  %v96 = vunpack.c.h.b16 %v45
  %v97 = vunpack.c.l.b16 %v46
  %v98 = vunpack.c.h.b16 %v46
  %v99 = vunpack.c.l.b16 %v47
  %v100 = vunpack.c.h.b16 %v47
  %v101 = vunpack.c.l.b16 %v48
  %v102 = vunpack.c.h.b16 %v48
  %v103 = vunpack.c.l.b16 %v49
  %v104 = vunpack.c.h.b16 %v49
  %v105 = vunpack.c.l.b16 %v50
  %v106 = vunpack.c.h.b16 %v50
  %v107 = vunpack.c.l.b16 %v51
  %v108 = vunpack.c.h.b16 %v51
  %v109 = vunpack.c.l.b16 %v52
  %v110 = vunpack.c.h.b16 %v52
  %v111 = vunpack.c.l.b16 %v53
  %v112 = vunpack.c.h.b16 %v53
  %v113 = vunpack.c.l.b16 %v54
  %v114 = vunpack.c.h.b16 %v54
  %v115 = vpack.c.b16 %v85, %v83
  %v116 = vpack.c.b16 %v86, %v84
  %v117 = vpack.c.b16 %v89, %v87
  %v118 = vpack.c.b16 %v90, %v88
  %v119 = vpack.c.b16 %v93, %v91
  %v120 = vpack.c.b16 %v94, %v92
  %v121 = vpack.c.b16 %v97, %v95
  %v122 = vpack.c.b16 %v98, %v96
  %v123 = vpack.c.b16 %v101, %v99
  %v124 = vpack.c.b16 %v102, %v100
  %v125 = vpack.c.b16 %v105, %v103
  %v126 = vpack.c.b16 %v106, %v104
  %v127 = vpack.c.b16 %v109, %v107
  %v128 = vpack.c.b16 %v110, %v108
  %v129 = vpack.c.b16 %v113, %v111
  %v130 = vpack.c.b16 %v114, %v112
  %147 = vmatprep.subr.bf16.mxu0 %v116
  %148 = vmatpush1.bf16.msra.mxu0 %v115
  %149 = vmatprep.subr.bf16.mxu0 %v118
  %150 = vmatpush1.bf16.msra.mxu0 %v117
  %151 = vmatprep.subr.bf16.mxu0 %v120
  %152 = vmatpush1.bf16.msra.mxu0 %v119
  %153 = vmatprep.subr.bf16.mxu0 %v122
  %154 = vmatpush1.bf16.msra.mxu0 %v121
  %155 = vmatprep.subr.bf16.mxu0 %v124
  %156 = vmatpush1.bf16.msra.mxu0 %v123
  %157 = vmatprep.subr.bf16.mxu0 %v126
  %158 = vmatpush1.bf16.msra.mxu0 %v125
  %159 = vmatprep.subr.bf16.mxu0 %v128
  %160 = vmatpush1.bf16.msra.mxu0 %v127
  %161 = vmatprep.subr.bf16.mxu0 %v130
  %162 = vmatpush1.bf16.msra.mxu0 %v129
  %163 = vmatprep.subr.bf16.mxu0 0
  %164 = vmatpush1.bf16.msra.mxu0 0
  %165 = vmatprep.subr.bf16.mxu0 0
  %166 = vmatpush1.bf16.msra.mxu0 0
  %167 = vmatprep.subr.bf16.mxu0 0
  %168 = vmatpush1.bf16.msra.mxu0 0
  %169 = vmatprep.subr.bf16.mxu0 0
  %170 = vmatpush1.bf16.msra.mxu0 0
  %171 = vmatprep.subr.bf16.mxu0 0
  %172 = vmatpush1.bf16.msra.mxu0 0
  %173 = vmatprep.subr.bf16.mxu0 0
  %174 = vmatpush1.bf16.msra.mxu0 0
  %175 = vmatprep.subr.bf16.mxu0 0
  %176 = vmatpush1.bf16.msra.mxu0 0
  %177 = vmatprep.subr.bf16.mxu0 0
  %178 = vmatpush1.bf16.msra.mxu0 0
  %179 = vmatprep.mubr.bf16.mxu0 0
  %180 = vmatmul.mubr.bf16.gmra.mrb[0].mxu0 %v31
  %v181 = vpop.f32.mrb[0].mxu0
  %v182 = vadd.f32 %v60, %v181
  %v183 = vpop.f32.mrb[0].mxu0
  %v184 = vadd.f32 %v64, %v183
  %v185 = vpop.f32.mrb[0].mxu0
  %v186 = vadd.f32 %v60, %v185
  %v187 = vpop.f32.mrb[0].mxu0
  %v188 = vadd.f32 %v64, %v187
  %189 = vmatprep.mubr.bf16.mxu0 0
  %190 = vmatmul.mubr.bf16.gmra.mrb[0].mxu0 %v32
  %v191 = vpop.f32.mrb[0].mxu0
  %v192 = vadd.f32 %v60, %v191
  %v193 = vpop.f32.mrb[0].mxu0
  %v194 = vadd.f32 %v64, %v193
  %v195 = vpop.f32.mrb[0].mxu0
  %v196 = vadd.f32 %v60, %v195
  %v197 = vpop.f32.mrb[0].mxu0
  %v198 = vadd.f32 %v64, %v197
  %199 = vmatprep.mubr.bf16.mxu0 0
  %200 = vmatmul.mubr.bf16.gmra.mrb[0].mxu0 %v33
  %v201 = vpop.f32.mrb[0].mxu0
  %v202 = vadd.f32 %v60, %v201
  %v203 = vpop.f32.mrb[0].mxu0
  %v204 = vadd.f32 %v64, %v203
  %v205 = vpop.f32.mrb[0].mxu0
  %v206 = vadd.f32 %v60, %v205
  %v207 = vpop.f32.mrb[0].mxu0
  %v208 = vadd.f32 %v64, %v207
  %209 = vmatprep.mubr.bf16.mxu0 0
  %210 = vmatmul.mubr.bf16.gmra.mrb[0].mxu0 %v34
  %v211 = vpop.f32.mrb[0].mxu0
  %v212 = vadd.f32 %v60, %v211
  %v213 = vpop.f32.mrb[0].mxu0
  %v214 = vadd.f32 %v64, %v213
  %v215 = vpop.f32.mrb[0].mxu0
  %v216 = vadd.f32 %v60, %v215
  %v217 = vpop.f32.mrb[0].mxu0
  %v218 = vadd.f32 %v64, %v217
  %219 = vmatprep.mubr.bf16.mxu0 0
  %220 = vmatmul.mubr.bf16.gmra.mrb[0].mxu0 %v35
  %v221 = vpop.f32.mrb[0].mxu0
  %v222 = vadd.f32 %v60, %v221
  %v223 = vpop.f32.mrb[0].mxu0
  %v224 = vadd.f32 %v64, %v223
  %v225 = vpop.f32.mrb[0].mxu0
  %v226 = vadd.f32 %v60, %v225
  %v227 = vpop.f32.mrb[0].mxu0
  %v228 = vadd.f32 %v64, %v227
  %229 = vmatprep.mubr.bf16.mxu0 0
  %230 = vmatmul.mubr.bf16.gmra.mrb[0].mxu0 %v36
  %v231 = vpop.f32.mrb[0].mxu0
  %v232 = vadd.f32 %v60, %v231
  %v233 = vpop.f32.mrb[0].mxu0
  %v234 = vadd.f32 %v64, %v233
  %v235 = vpop.f32.mrb[0].mxu0
  %v236 = vadd.f32 %v60, %v235
  %v237 = vpop.f32.mrb[0].mxu0
  %v238 = vadd.f32 %v64, %v237
  %239 = vmatprep.mubr.bf16.mxu0 0
  %240 = vmatmul.mubr.bf16.gmra.mrb[0].mxu0 %v37
  %v241 = vpop.f32.mrb[0].mxu0
  %v242 = vadd.f32 %v60, %v241
  %v243 = vpop.f32.mrb[0].mxu0
  %v244 = vadd.f32 %v64, %v243
  %v245 = vpop.f32.mrb[0].mxu0
  %v246 = vadd.f32 %v60, %v245
  %v247 = vpop.f32.mrb[0].mxu0
  %v248 = vadd.f32 %v64, %v247
  %249 = vmatprep.mubr.bf16.mxu0 0
  %250 = vmatmul.mubr.bf16.gmra.mrb[0].mxu0 %v38
  %v251 = vpop.f32.mrb[0].mxu0
  %v252 = vadd.f32 %v60, %v251
  %v253 = vpop.f32.mrb[0].mxu0
  %v254 = vadd.f32 %v64, %v253
  %v255 = vpop.f32.mrb[0].mxu0
  %v256 = vadd.f32 %v60, %v255
  %v257 = vpop.f32.mrb[0].mxu0
  %v258 = vadd.f32 %v64, %v257
  %259 = vdwg.mxu0
  %260 = vst [vmem:[%s3] sm:$0xff] %v182
  %261 = vst [vmem:[%s3 + $0x8] sm:$0xff] %v184
  %262 = vst [vmem:[%s3 + $0x10] sm:$0xff] %v186
  %263 = vst [vmem:[%s3 + $0x18] sm:$0xff] %v188
  %264 = vst [vmem:[%s3 + $0x20] sm:$0xff] %v192
  %265 = vst [vmem:[%s3 + $0x28] sm:$0xff] %v194
  %266 = vst [vmem:[%s3 + $0x30] sm:$0xff] %v196
  %267 = vst [vmem:[%s3 + $0x38] sm:$0xff] %v198
  %268 = vst [vmem:[%s3 + $0x40] sm:$0xff] %v202
  %269 = vst [vmem:[%s3 + $0x48] sm:$0xff] %v204
  %270 = vst [vmem:[%s3 + $0x50] sm:$0xff] %v206
  %271 = vst [vmem:[%s3 + $0x58] sm:$0xff] %v208
  %272 = vst [vmem:[%s3 + $0x60] sm:$0xff] %v212
  %273 = vst [vmem:[%s3 + $0x68] sm:$0xff] %v214
  %274 = vst [vmem:[%s3 + $0x70] sm:$0xff] %v216
  %275 = vst [vmem:[%s3 + $0x78] sm:$0xff] %v218
  %276 = vst [vmem:[%s3 + $0x80] sm:$0xff] %v222
  %277 = vst [vmem:[%s3 + $0x88] sm:$0xff] %v224
  %278 = vst [vmem:[%s3 + $0x90] sm:$0xff] %v226
  %279 = vst [vmem:[%s3 + $0x98] sm:$0xff] %v228
  %280 = vst [vmem:[%s3 + $0xa0] sm:$0xff] %v232
  %281 = vst [vmem:[%s3 + $0xa8] sm:$0xff] %v234
  %282 = vst [vmem:[%s3 + $0xb0] sm:$0xff] %v236
  %283 = vst [vmem:[%s3 + $0xb8] sm:$0xff] %v238
  %284 = vst [vmem:[%s3 + $0xc0] sm:$0xff] %v242
  %285 = vst [vmem:[%s3 + $0xc8] sm:$0xff] %v244
  %286 = vst [vmem:[%s3 + $0xd0] sm:$0xff] %v246
  %287 = vst [vmem:[%s3 + $0xd8] sm:$0xff] %v248
  %288 = vst [vmem:[%s3 + $0xe0] sm:$0xff] %v252
  %289 = vst [vmem:[%s3 + $0xe8] sm:$0xff] %v254
  %290 = vst [vmem:[%s3 + $0xf0] sm:$0xff] %v256
  %291 = vst [vmem:[%s3 + $0xf8] sm:$0xff] %v258
  // Predicated region
  $region14: #{lm_lstm_forward.5} parent=0 // pred_check
    _
  $region15: #{lm_lstm_forward.5} parent=0 // pred_check_branch
    %293 = sbr.rel (0) target = $region17
  $region16: #{lm_lstm_forward.5} parent=0 // pred_region
    _
  $region17: #{lm_lstm_forward.5} parent=0 // pred_fallthru
    _
  // Predicated region
  $region18: #{lm_lstm_forward.5} parent=0 // pred_check
    _
  $region19: #{lm_lstm_forward.5} parent=0 // pred_check_branch
    %295 = sbr.rel (0) target = $region21
  $region20: #{lm_lstm_forward.5} parent=0 // pred_region
    _
  $region21: #{lm_lstm_forward.5} parent=0 // pred_fallthru
    _

// kernel: lm_lstm_forward.3
$region0: #{lm_lstm_forward.3}
  #allocation0 [shape = 'u32[]', space=smem, size = 0x4, offset = 0x4, fixed_abs, tag = 'smem constant byte address 0x4 - core index']
  #allocation1 [shape = 'u32[144,128]{1,0:T(1,128)}', space=vmem, size = 0x12000, scoped, tag = 'internal scratch']
  %s0 = inlined_call_operand.vmem [shape: bf16[128,128], index: 0, kind: input, shape index: {}]
  %s1 = inlined_call_operand.vmem [shape: bf16[128,512], index: 1, kind: input, shape index: {}]
  %s2 = inlined_call_operand.vmem [shape: f32[1,512], index: 2, kind: input, shape index: {}]
  %s3 = inlined_call_operand.vmem [shape: bf16[128,512], index: 3, kind: output, shape index: {}]
  %s4 = sld [smem:[#allocation0]]
  $region22: #{lm_lstm_forward.3} parent=0
    _
  %s6 = ssub.s32 1, %s4
  %s7 = scalar_select 0, %s6, %s4
  // Predicated region
  $region2: #{lm_lstm_forward.3} parent=0 // pred_check
    _
  $region3: #{lm_lstm_forward.3} parent=0 // pred_check_branch
    %9 = sbr.rel (0) target = $region5
  $region4: #{lm_lstm_forward.3} parent=0 // pred_region
    _
  $region5: #{lm_lstm_forward.3} parent=0 // pred_fallthru
    _
  // Predicated region
  $region6: #{lm_lstm_forward.3} parent=0 // pred_check
    _
  $region7: #{lm_lstm_forward.3} parent=0 // pred_check_branch
    %11 = sbr.rel (0) target = $region9
  $region8: #{lm_lstm_forward.3} parent=0 // pred_region
    _
  $region9: #{lm_lstm_forward.3} parent=0 // pred_fallthru
    _
  // Predicated region
  $region10: #{lm_lstm_forward.3} parent=0 // pred_check
    _
  $region11: #{lm_lstm_forward.3} parent=0 // pred_check_branch
    %13 = sbr.rel (0) target = $region13
  $region12: #{lm_lstm_forward.3} parent=0 // pred_region
    _
  $region13: #{lm_lstm_forward.3} parent=0 // pred_fallthru
    _
  %v15 = vld [vmem:[%s0] sm:$0xf]
  %v16 = vld [vmem:[%s0 + $0x4] sm:$0xf]
  %v17 = vld [vmem:[%s0 + $0x8] sm:$0xf]
  %v18 = vld [vmem:[%s0 + $0xc] sm:$0xf]
  %v19 = vld [vmem:[%s0 + $0x10] sm:$0xf]
  %v20 = vld [vmem:[%s0 + $0x14] sm:$0xf]
  %v21 = vld [vmem:[%s0 + $0x18] sm:$0xf]
  %v22 = vld [vmem:[%s0 + $0x1c] sm:$0xf]
  %v23 = vld [vmem:[%s0 + $0x20] sm:$0xf]
  %v24 = vld [vmem:[%s0 + $0x24] sm:$0xf]
  %v25 = vld [vmem:[%s0 + $0x28] sm:$0xf]
  %v26 = vld [vmem:[%s0 + $0x2c] sm:$0xf]
  %v27 = vld [vmem:[%s0 + $0x30] sm:$0xf]
  %v28 = vld [vmem:[%s0 + $0x34] sm:$0xf]
  %v29 = vld [vmem:[%s0 + $0x38] sm:$0xf]
  %v30 = vld [vmem:[%s0 + $0x3c] sm:$0xf]
  %v31 = vld [vmem:[%s1] sm:$0xff]
  %v32 = vld [vmem:[%s1 + $0x8] sm:$0xff]
  %v33 = vld [vmem:[%s1 + $0x10] sm:$0xff]
  %v34 = vld [vmem:[%s1 + $0x18] sm:$0xff]
  %v35 = vld [vmem:[%s1 + $0x20] sm:$0xff]
  %v36 = vld [vmem:[%s1 + $0x28] sm:$0xff]
  %v37 = vld [vmem:[%s1 + $0x30] sm:$0xff]
  %v38 = vld [vmem:[%s1 + $0x38] sm:$0xff]
  %v39 = vld [vmem:[%s1 + $0x40] sm:$0xff]
  %v40 = vld [vmem:[%s1 + $0x48] sm:$0xff]
  %v41 = vld [vmem:[%s1 + $0x50] sm:$0xff]
  %v42 = vld [vmem:[%s1 + $0x58] sm:$0xff]
  %v43 = vld [vmem:[%s1 + $0x60] sm:$0xff]
  %v44 = vld [vmem:[%s1 + $0x68] sm:$0xff]
  %v45 = vld [vmem:[%s1 + $0x70] sm:$0xff]
  %v46 = vld [vmem:[%s1 + $0x78] sm:$0xff]
  %v47 = vld [vmem:[%s1 + $0x80] sm:$0xff]
  %v48 = vld [vmem:[%s1 + $0x88] sm:$0xff]
  %v49 = vld [vmem:[%s1 + $0x90] sm:$0xff]
  %v50 = vld [vmem:[%s1 + $0x98] sm:$0xff]
  %v51 = vld [vmem:[%s1 + $0xa0] sm:$0xff]
  %v52 = vld [vmem:[%s1 + $0xa8] sm:$0xff]
  %v53 = vld [vmem:[%s1 + $0xb0] sm:$0xff]
  %v54 = vld [vmem:[%s1 + $0xb8] sm:$0xff]
  %v55 = vld [vmem:[%s1 + $0xc0] sm:$0xff]
  %v56 = vld [vmem:[%s1 + $0xc8] sm:$0xff]
  %v57 = vld [vmem:[%s1 + $0xd0] sm:$0xff]
  %v58 = vld [vmem:[%s1 + $0xd8] sm:$0xff]
  %v59 = vld [vmem:[%s1 + $0xe0] sm:$0xff]
  %v60 = vld [vmem:[%s1 + $0xe8] sm:$0xff]
  %v61 = vld [vmem:[%s1 + $0xf0] sm:$0xff]
  %v62 = vld [vmem:[%s1 + $0xf8] sm:$0xff]
  %v63 = vld [vmem:[%s2] sm:$0xf]
  %v65 = vlaneseq
  %v66 = vshrl.u32 %v65, 7
  %v67 = vsub.s32 0, %v66
  %v68 = vrot.slane %v63, %v67
  %v69 = vlaneseq
  %v70 = vshrl.u32 %v69, 7
  %v71 = vsub.s32 1, %v70
  %v72 = vrot.slane %v63, %v71
  %v73 = vlaneseq
  %v74 = vshrl.u32 %v73, 7
  %v75 = vsub.s32 2, %v74
  %v76 = vrot.slane %v63, %v75
  %v77 = vlaneseq
  %v78 = vshrl.u32 %v77, 7
  %v79 = vsub.s32 3, %v78
  %v80 = vrot.slane %v63, %v79
  %v101 = vunpack.c.l.b16 %v15
  %v102 = vunpack.c.l.b16 %v16
  %v103 = vunpack.c.l.b16 %v17
  %v104 = vunpack.c.l.b16 %v18
  %v105 = vunpack.c.l.b16 %v19
  %v106 = vunpack.c.l.b16 %v20
  %v107 = vunpack.c.l.b16 %v21
  %v108 = vunpack.c.l.b16 %v22
  %v109 = vunpack.c.l.b16 %v23
  %v110 = vunpack.c.l.b16 %v24
  %v111 = vunpack.c.l.b16 %v25
  %v112 = vunpack.c.l.b16 %v26
  %v113 = vunpack.c.l.b16 %v27
  %v114 = vunpack.c.l.b16 %v28
  %v115 = vunpack.c.l.b16 %v29
  %v116 = vunpack.c.l.b16 %v30
  %v117 = vpack.c.b16 %v102, %v101
  %v118 = vpack.c.b16 %v104, %v103
  %v119 = vpack.c.b16 %v106, %v105
  %v120 = vpack.c.b16 %v108, %v107
  %v121 = vpack.c.b16 %v110, %v109
  %v122 = vpack.c.b16 %v112, %v111
  %v123 = vpack.c.b16 %v114, %v113
  %v124 = vpack.c.b16 %v116, %v115
  %v165 = vunpack.c.l.b16 %v31
  %v166 = vunpack.c.h.b16 %v31
  %v167 = vunpack.c.l.b16 %v32
  %v168 = vunpack.c.h.b16 %v32
  %v169 = vunpack.c.l.b16 %v33
  %v170 = vunpack.c.h.b16 %v33
  %v171 = vunpack.c.l.b16 %v34
  %v172 = vunpack.c.h.b16 %v34
  %v173 = vunpack.c.l.b16 %v35
  %v174 = vunpack.c.h.b16 %v35
  %v175 = vunpack.c.l.b16 %v36
  %v176 = vunpack.c.h.b16 %v36
  %v177 = vunpack.c.l.b16 %v37
  %v178 = vunpack.c.h.b16 %v37
  %v179 = vunpack.c.l.b16 %v38
  %v180 = vunpack.c.h.b16 %v38
  %v181 = vunpack.c.l.b16 %v39
  %v182 = vunpack.c.h.b16 %v39
  %v183 = vunpack.c.l.b16 %v40
  %v184 = vunpack.c.h.b16 %v40
  %v185 = vunpack.c.l.b16 %v41
  %v186 = vunpack.c.h.b16 %v41
  %v187 = vunpack.c.l.b16 %v42
  %v188 = vunpack.c.h.b16 %v42
  %v189 = vunpack.c.l.b16 %v43
  %v190 = vunpack.c.h.b16 %v43
  %v191 = vunpack.c.l.b16 %v44
  %v192 = vunpack.c.h.b16 %v44
  %v193 = vunpack.c.l.b16 %v45
  %v194 = vunpack.c.h.b16 %v45
  %v195 = vunpack.c.l.b16 %v46
  %v196 = vunpack.c.h.b16 %v46
  %v197 = vunpack.c.l.b16 %v47
  %v198 = vunpack.c.h.b16 %v47
  %v199 = vunpack.c.l.b16 %v48
  %v200 = vunpack.c.h.b16 %v48
  %v201 = vunpack.c.l.b16 %v49
  %v202 = vunpack.c.h.b16 %v49
  %v203 = vunpack.c.l.b16 %v50
  %v204 = vunpack.c.h.b16 %v50
  %v205 = vunpack.c.l.b16 %v51
  %v206 = vunpack.c.h.b16 %v51
  %v207 = vunpack.c.l.b16 %v52
  %v208 = vunpack.c.h.b16 %v52
  %v209 = vunpack.c.l.b16 %v53
  %v210 = vunpack.c.h.b16 %v53
  %v211 = vunpack.c.l.b16 %v54
  %v212 = vunpack.c.h.b16 %v54
  %v213 = vunpack.c.l.b16 %v55
  %v214 = vunpack.c.h.b16 %v55
  %v215 = vunpack.c.l.b16 %v56
  %v216 = vunpack.c.h.b16 %v56
  %v217 = vunpack.c.l.b16 %v57
  %v218 = vunpack.c.h.b16 %v57
  %v219 = vunpack.c.l.b16 %v58
  %v220 = vunpack.c.h.b16 %v58
  %v221 = vunpack.c.l.b16 %v59
  %v222 = vunpack.c.h.b16 %v59
  %v223 = vunpack.c.l.b16 %v60
  %v224 = vunpack.c.h.b16 %v60
  %v225 = vunpack.c.l.b16 %v61
  %v226 = vunpack.c.h.b16 %v61
  %v227 = vunpack.c.l.b16 %v62
  %v228 = vunpack.c.h.b16 %v62
  %v229 = vpack.c.b16 %v169, %v165
  %v230 = vpack.c.b16 %v170, %v166
  %v231 = vpack.c.b16 %v171, %v167
  %v232 = vpack.c.b16 %v172, %v168
  %v233 = vpack.c.b16 %v177, %v173
  %v234 = vpack.c.b16 %v178, %v174
  %v235 = vpack.c.b16 %v179, %v175
  %v236 = vpack.c.b16 %v180, %v176
  %v237 = vpack.c.b16 %v185, %v181
  %v238 = vpack.c.b16 %v186, %v182
  %v239 = vpack.c.b16 %v187, %v183
  %v240 = vpack.c.b16 %v188, %v184
  %v241 = vpack.c.b16 %v193, %v189
  %v242 = vpack.c.b16 %v194, %v190
  %v243 = vpack.c.b16 %v195, %v191
  %v244 = vpack.c.b16 %v196, %v192
  %v245 = vpack.c.b16 %v201, %v197
  %v246 = vpack.c.b16 %v202, %v198
  %v247 = vpack.c.b16 %v203, %v199
  %v248 = vpack.c.b16 %v204, %v200
  %v249 = vpack.c.b16 %v209, %v205
  %v250 = vpack.c.b16 %v210, %v206
  %v251 = vpack.c.b16 %v211, %v207
  %v252 = vpack.c.b16 %v212, %v208
  %v253 = vpack.c.b16 %v217, %v213
  %v254 = vpack.c.b16 %v218, %v214
  %v255 = vpack.c.b16 %v219, %v215
  %v256 = vpack.c.b16 %v220, %v216
  %v257 = vpack.c.b16 %v225, %v221
  %v258 = vpack.c.b16 %v226, %v222
  %v259 = vpack.c.b16 %v227, %v223
  %v260 = vpack.c.b16 %v228, %v224
  %293 = vmatprep.subr.bf16.mxu0 %v230
  %294 = vmatpush1.bf16.msra.mxu0 %v229
  %295 = vmatprep.subr.bf16.mxu0 %v234
  %296 = vmatpush1.bf16.msra.mxu0 %v233
  %297 = vmatprep.subr.bf16.mxu0 %v238
  %298 = vmatpush1.bf16.msra.mxu0 %v237
  %299 = vmatprep.subr.bf16.mxu0 %v242
  %300 = vmatpush1.bf16.msra.mxu0 %v241
  %301 = vmatprep.subr.bf16.mxu0 %v246
  %302 = vmatpush1.bf16.msra.mxu0 %v245
  %303 = vmatprep.subr.bf16.mxu0 %v250
  %304 = vmatpush1.bf16.msra.mxu0 %v249
  %305 = vmatprep.subr.bf16.mxu0 %v254
  %306 = vmatpush1.bf16.msra.mxu0 %v253
  %307 = vmatprep.subr.bf16.mxu0 %v258
  %308 = vmatpush1.bf16.msra.mxu0 %v257
  %309 = vmatprep.subr.bf16.mxu0 0
  %310 = vmatpush1.bf16.msra.mxu0 0
  %311 = vmatprep.subr.bf16.mxu0 0
  %312 = vmatpush1.bf16.msra.mxu0 0
  %313 = vmatprep.subr.bf16.mxu0 0
  %314 = vmatpush1.bf16.msra.mxu0 0
  %315 = vmatprep.subr.bf16.mxu0 0
  %316 = vmatpush1.bf16.msra.mxu0 0
  %317 = vmatprep.subr.bf16.mxu0 0
  %318 = vmatpush1.bf16.msra.mxu0 0
  %319 = vmatprep.subr.bf16.mxu0 0
  %320 = vmatpush1.bf16.msra.mxu0 0
  %321 = vmatprep.subr.bf16.mxu0 0
  %322 = vmatpush1.bf16.msra.mxu0 0
  %323 = vmatprep.subr.bf16.mxu0 0
  %324 = vmatpush1.bf16.msra.mxu0 0
  %325 = vmatprep.mubr.bf16.mxu0 0
  %326 = vmatmul.mubr.bf16.gmra.mrb[0].mxu0 %v117
  %v327 = vpop.f32.mrb[0].mxu0
  %v328 = vadd.f32 %v68, %v327
  %v329 = vpop.f32.mrb[0].mxu0
  %v330 = vadd.f32 %v72, %v329
  %v331 = vpop.f32.mrb[0].mxu0
  %v332 = vadd.f32 %v68, %v331
  %v333 = vpop.f32.mrb[0].mxu0
  %v334 = vadd.f32 %v72, %v333
  %335 = vmatprep.mubr.bf16.mxu0 0
  %336 = vmatmul.mubr.bf16.gmra.mrb[0].mxu0 %v118
  %v337 = vpop.f32.mrb[0].mxu0
  %v338 = vadd.f32 %v68, %v337
  %v339 = vpop.f32.mrb[0].mxu0
  %v340 = vadd.f32 %v72, %v339
  %v341 = vpop.f32.mrb[0].mxu0
  %v342 = vadd.f32 %v68, %v341
  %v343 = vpop.f32.mrb[0].mxu0
  %v344 = vadd.f32 %v72, %v343
  %345 = vmatprep.mubr.bf16.mxu0 0
  %346 = vmatmul.mubr.bf16.gmra.mrb[0].mxu0 %v119
  %v347 = vpop.f32.mrb[0].mxu0
  %v348 = vadd.f32 %v68, %v347
  %v349 = vpop.f32.mrb[0].mxu0
  %v350 = vadd.f32 %v72, %v349
  %v351 = vpop.f32.mrb[0].mxu0
  %v352 = vadd.f32 %v68, %v351
  %v353 = vpop.f32.mrb[0].mxu0
  %v354 = vadd.f32 %v72, %v353
  %355 = vmatprep.mubr.bf16.mxu0 0
  %356 = vmatmul.mubr.bf16.gmra.mrb[0].mxu0 %v120
  %v357 = vpop.f32.mrb[0].mxu0
  %v358 = vadd.f32 %v68, %v357
  %v359 = vpop.f32.mrb[0].mxu0
  %v360 = vadd.f32 %v72, %v359
  %v361 = vpop.f32.mrb[0].mxu0
  %v362 = vadd.f32 %v68, %v361
  %v363 = vpop.f32.mrb[0].mxu0
  %v364 = vadd.f32 %v72, %v363
  %365 = vmatprep.mubr.bf16.mxu0 0
  %366 = vmatmul.mubr.bf16.gmra.mrb[0].mxu0 %v121
  %v367 = vpop.f32.mrb[0].mxu0
  %v368 = vadd.f32 %v68, %v367
  %v369 = vpop.f32.mrb[0].mxu0
  %v370 = vadd.f32 %v72, %v369
  %v371 = vpop.f32.mrb[0].mxu0
  %v372 = vadd.f32 %v68, %v371
  %v373 = vpop.f32.mrb[0].mxu0
  %v374 = vadd.f32 %v72, %v373
  %375 = vmatprep.mubr.bf16.mxu0 0
  %376 = vmatmul.mubr.bf16.gmra.mrb[0].mxu0 %v122
  %v377 = vpop.f32.mrb[0].mxu0
  %v378 = vadd.f32 %v68, %v377
  %v379 = vpop.f32.mrb[0].mxu0
  %v380 = vadd.f32 %v72, %v379
  %v381 = vpop.f32.mrb[0].mxu0
  %v382 = vadd.f32 %v68, %v381
  %v383 = vpop.f32.mrb[0].mxu0
  %v384 = vadd.f32 %v72, %v383
  %385 = vmatprep.mubr.bf16.mxu0 0
  %386 = vmatmul.mubr.bf16.gmra.mrb[0].mxu0 %v123
  %v387 = vpop.f32.mrb[0].mxu0
  %v388 = vadd.f32 %v68, %v387
  %v389 = vpop.f32.mrb[0].mxu0
  %v390 = vadd.f32 %v72, %v389
  %v391 = vpop.f32.mrb[0].mxu0
  %v392 = vadd.f32 %v68, %v391
  %v393 = vpop.f32.mrb[0].mxu0
  %v394 = vadd.f32 %v72, %v393
  %395 = vmatprep.mubr.bf16.mxu0 0
  %396 = vmatmul.mubr.bf16.gmra.mrb[0].mxu0 %v124
  %v397 = vpop.f32.mrb[0].mxu0
  %v398 = vadd.f32 %v68, %v397
  %v399 = vpop.f32.mrb[0].mxu0
  %v400 = vadd.f32 %v72, %v399
  %v401 = vpop.f32.mrb[0].mxu0
  %v402 = vadd.f32 %v68, %v401
  %v403 = vpop.f32.mrb[0].mxu0
  %v404 = vadd.f32 %v72, %v403
  %405 = vdwg.mxu0
  %406 = vmatprep.subr.bf16.mxu0 %v232
  %407 = vmatpush1.bf16.msra.mxu0 %v231
  %408 = vmatprep.subr.bf16.mxu0 %v236
  %409 = vmatpush1.bf16.msra.mxu0 %v235
  %410 = vmatprep.subr.bf16.mxu0 %v240
  %411 = vmatpush1.bf16.msra.mxu0 %v239
  %412 = vmatprep.subr.bf16.mxu0 %v244
  %413 = vmatpush1.bf16.msra.mxu0 %v243
  %414 = vmatprep.subr.bf16.mxu0 %v248
  %415 = vmatpush1.bf16.msra.mxu0 %v247
  %416 = vmatprep.subr.bf16.mxu0 %v252
  %417 = vmatpush1.bf16.msra.mxu0 %v251
  %418 = vmatprep.subr.bf16.mxu0 %v256
  %419 = vmatpush1.bf16.msra.mxu0 %v255
  %420 = vmatprep.subr.bf16.mxu0 %v260
  %421 = vmatpush1.bf16.msra.mxu0 %v259
  %422 = vmatprep.subr.bf16.mxu0 0
  %423 = vmatpush1.bf16.msra.mxu0 0
  %424 = vmatprep.subr.bf16.mxu0 0
  %425 = vmatpush1.bf16.msra.mxu0 0
  %426 = vmatprep.subr.bf16.mxu0 0
  %427 = vmatpush1.bf16.msra.mxu0 0
  %428 = vmatprep.subr.bf16.mxu0 0
  %429 = vmatpush1.bf16.msra.mxu0 0
  %430 = vmatprep.subr.bf16.mxu0 0
  %431 = vmatpush1.bf16.msra.mxu0 0
  %432 = vmatprep.subr.bf16.mxu0 0
  %433 = vmatpush1.bf16.msra.mxu0 0
  %434 = vmatprep.subr.bf16.mxu0 0
  %435 = vmatpush1.bf16.msra.mxu0 0
  %436 = vmatprep.subr.bf16.mxu0 0
  %437 = vmatpush1.bf16.msra.mxu0 0
  %438 = vmatprep.mubr.bf16.mxu0 0
  %439 = vmatmul.mubr.bf16.gmra.mrb[0].mxu0 %v117
  %v440 = vpop.f32.mrb[0].mxu0
  %v441 = vadd.f32 %v76, %v440
  %v442 = vpop.f32.mrb[0].mxu0
  %v443 = vadd.f32 %v80, %v442
  %v444 = vpop.f32.mrb[0].mxu0
  %v445 = vadd.f32 %v76, %v444
  %v446 = vpop.f32.mrb[0].mxu0
  %v447 = vadd.f32 %v80, %v446
  %448 = vmatprep.mubr.bf16.mxu0 0
  %449 = vmatmul.mubr.bf16.gmra.mrb[0].mxu0 %v118
  %v450 = vpop.f32.mrb[0].mxu0
  %v451 = vadd.f32 %v76, %v450
  %v452 = vpop.f32.mrb[0].mxu0
  %v453 = vadd.f32 %v80, %v452
  %v454 = vpop.f32.mrb[0].mxu0
  %v455 = vadd.f32 %v76, %v454
  %v456 = vpop.f32.mrb[0].mxu0
  %v457 = vadd.f32 %v80, %v456
  %458 = vmatprep.mubr.bf16.mxu0 0
  %459 = vmatmul.mubr.bf16.gmra.mrb[0].mxu0 %v119
  %v460 = vpop.f32.mrb[0].mxu0
  %v461 = vadd.f32 %v76, %v460
  %v462 = vpop.f32.mrb[0].mxu0
  %v463 = vadd.f32 %v80, %v462
  %v464 = vpop.f32.mrb[0].mxu0
  %v465 = vadd.f32 %v76, %v464
  %v466 = vpop.f32.mrb[0].mxu0
  %v467 = vadd.f32 %v80, %v466
  %468 = vmatprep.mubr.bf16.mxu0 0
  %469 = vmatmul.mubr.bf16.gmra.mrb[0].mxu0 %v120
  %v470 = vpop.f32.mrb[0].mxu0
  %v471 = vadd.f32 %v76, %v470
  %v472 = vpop.f32.mrb[0].mxu0
  %v473 = vadd.f32 %v80, %v472
  %v474 = vpop.f32.mrb[0].mxu0
  %v475 = vadd.f32 %v76, %v474
  %v476 = vpop.f32.mrb[0].mxu0
  %v477 = vadd.f32 %v80, %v476
  %478 = vmatprep.mubr.bf16.mxu0 0
  %479 = vmatmul.mubr.bf16.gmra.mrb[0].mxu0 %v121
  %v480 = vpop.f32.mrb[0].mxu0
  %v481 = vadd.f32 %v76, %v480
  %v482 = vpop.f32.mrb[0].mxu0
  %v483 = vadd.f32 %v80, %v482
  %v484 = vpop.f32.mrb[0].mxu0
  %v485 = vadd.f32 %v76, %v484
  %v486 = vpop.f32.mrb[0].mxu0
  %v487 = vadd.f32 %v80, %v486
  %488 = vmatprep.mubr.bf16.mxu0 0
  %489 = vmatmul.mubr.bf16.gmra.mrb[0].mxu0 %v122
  %v490 = vpop.f32.mrb[0].mxu0
  %v491 = vadd.f32 %v76, %v490
  %v492 = vpop.f32.mrb[0].mxu0
  %v493 = vadd.f32 %v80, %v492
  %v494 = vpop.f32.mrb[0].mxu0
  %v495 = vadd.f32 %v76, %v494
  %v496 = vpop.f32.mrb[0].mxu0
  %v497 = vadd.f32 %v80, %v496
  %498 = vmatprep.mubr.bf16.mxu0 0
  %499 = vmatmul.mubr.bf16.gmra.mrb[0].mxu0 %v123
  %v500 = vpop.f32.mrb[0].mxu0
  %v501 = vadd.f32 %v76, %v500
  %v502 = vpop.f32.mrb[0].mxu0
  %v503 = vadd.f32 %v80, %v502
  %v504 = vpop.f32.mrb[0].mxu0
  %v505 = vadd.f32 %v76, %v504
  %v506 = vpop.f32.mrb[0].mxu0
  %v507 = vadd.f32 %v80, %v506
  %508 = vmatprep.mubr.bf16.mxu0 0
  %509 = vmatmul.mubr.bf16.gmra.mrb[0].mxu0 %v124
  %v510 = vpop.f32.mrb[0].mxu0
  %v511 = vadd.f32 %v76, %v510
  %v512 = vpop.f32.mrb[0].mxu0
  %v513 = vadd.f32 %v80, %v512
  %v514 = vpop.f32.mrb[0].mxu0
  %v515 = vadd.f32 %v76, %v514
  %v516 = vpop.f32.mrb[0].mxu0
  %v517 = vadd.f32 %v80, %v516
  %518 = vdwg.mxu0
  %v519 = vpack.c.bf16 %v332, %v328
  %v520 = vpack.c.bf16 %v334, %v330
  %v521 = vpack.c.bf16 %v445, %v441
  %v522 = vpack.c.bf16 %v447, %v443
  %v523 = vpack.c.bf16 %v342, %v338
  %v524 = vpack.c.bf16 %v344, %v340
  %v525 = vpack.c.bf16 %v455, %v451
  %v526 = vpack.c.bf16 %v457, %v453
  %v527 = vpack.c.bf16 %v352, %v348
  %v528 = vpack.c.bf16 %v354, %v350
  %v529 = vpack.c.bf16 %v465, %v461
  %v530 = vpack.c.bf16 %v467, %v463
  %v531 = vpack.c.bf16 %v362, %v358
  %v532 = vpack.c.bf16 %v364, %v360
  %v533 = vpack.c.bf16 %v475, %v471
  %v534 = vpack.c.bf16 %v477, %v473
  %v535 = vpack.c.bf16 %v372, %v368
  %v536 = vpack.c.bf16 %v374, %v370
  %v537 = vpack.c.bf16 %v485, %v481
  %v538 = vpack.c.bf16 %v487, %v483
  %v539 = vpack.c.bf16 %v382, %v378
  %v540 = vpack.c.bf16 %v384, %v380
  %v541 = vpack.c.bf16 %v495, %v491
  %v542 = vpack.c.bf16 %v497, %v493
  %v543 = vpack.c.bf16 %v392, %v388
  %v544 = vpack.c.bf16 %v394, %v390
  %v545 = vpack.c.bf16 %v505, %v501
  %v546 = vpack.c.bf16 %v507, %v503
  %v547 = vpack.c.bf16 %v402, %v398
  %v548 = vpack.c.bf16 %v404, %v400
  %v549 = vpack.c.bf16 %v515, %v511
  %v550 = vpack.c.bf16 %v517, %v513
  %v583 = vunpack.c.l.b16 %v519
  %v584 = vunpack.c.l.b16 %v520
  %v585 = vunpack.c.l.b16 %v521
  %v586 = vunpack.c.l.b16 %v522
  %v587 = vunpack.c.h.b16 %v519
  %v588 = vunpack.c.h.b16 %v520
  %v589 = vunpack.c.h.b16 %v521
  %v590 = vunpack.c.h.b16 %v522
  %v591 = vunpack.c.l.b16 %v523
  %v592 = vunpack.c.l.b16 %v524
  %v593 = vunpack.c.l.b16 %v525
  %v594 = vunpack.c.l.b16 %v526
  %v595 = vunpack.c.h.b16 %v523
  %v596 = vunpack.c.h.b16 %v524
  %v597 = vunpack.c.h.b16 %v525
  %v598 = vunpack.c.h.b16 %v526
  %v599 = vunpack.c.l.b16 %v527
  %v600 = vunpack.c.l.b16 %v528
  %v601 = vunpack.c.l.b16 %v529
  %v602 = vunpack.c.l.b16 %v530
  %v603 = vunpack.c.h.b16 %v527
  %v604 = vunpack.c.h.b16 %v528
  %v605 = vunpack.c.h.b16 %v529
  %v606 = vunpack.c.h.b16 %v530
  %v607 = vunpack.c.l.b16 %v531
  %v608 = vunpack.c.l.b16 %v532
  %v609 = vunpack.c.l.b16 %v533
  %v610 = vunpack.c.l.b16 %v534
  %v611 = vunpack.c.h.b16 %v531
  %v612 = vunpack.c.h.b16 %v532
  %v613 = vunpack.c.h.b16 %v533
  %v614 = vunpack.c.h.b16 %v534
  %v615 = vunpack.c.l.b16 %v535
  %v616 = vunpack.c.l.b16 %v536
  %v617 = vunpack.c.l.b16 %v537
  %v618 = vunpack.c.l.b16 %v538
  %v619 = vunpack.c.h.b16 %v535
  %v620 = vunpack.c.h.b16 %v536
  %v621 = vunpack.c.h.b16 %v537
  %v622 = vunpack.c.h.b16 %v538
  %v623 = vunpack.c.l.b16 %v539
  %v624 = vunpack.c.l.b16 %v540
  %v625 = vunpack.c.l.b16 %v541
  %v626 = vunpack.c.l.b16 %v542
  %v627 = vunpack.c.h.b16 %v539
  %v628 = vunpack.c.h.b16 %v540
  %v629 = vunpack.c.h.b16 %v541
  %v630 = vunpack.c.h.b16 %v542
  %v631 = vunpack.c.l.b16 %v543
  %v632 = vunpack.c.l.b16 %v544
  %v633 = vunpack.c.l.b16 %v545
  %v634 = vunpack.c.l.b16 %v546
  %v635 = vunpack.c.h.b16 %v543
  %v636 = vunpack.c.h.b16 %v544
  %v637 = vunpack.c.h.b16 %v545
  %v638 = vunpack.c.h.b16 %v546
  %v639 = vunpack.c.l.b16 %v547
  %v640 = vunpack.c.l.b16 %v548
  %v641 = vunpack.c.l.b16 %v549
  %v642 = vunpack.c.l.b16 %v550
  %v643 = vunpack.c.h.b16 %v547
  %v644 = vunpack.c.h.b16 %v548
  %v645 = vunpack.c.h.b16 %v549
  %v646 = vunpack.c.h.b16 %v550
  %v647 = vpack.c.b16 %v584, %v583
  %v648 = vpack.c.b16 %v586, %v585
  %v649 = vpack.c.b16 %v588, %v587
  %v650 = vpack.c.b16 %v590, %v589
  %v651 = vpack.c.b16 %v592, %v591
  %v652 = vpack.c.b16 %v594, %v593
  %v653 = vpack.c.b16 %v596, %v595
  %v654 = vpack.c.b16 %v598, %v597
  %v655 = vpack.c.b16 %v600, %v599
  %v656 = vpack.c.b16 %v602, %v601
  %v657 = vpack.c.b16 %v604, %v603
  %v658 = vpack.c.b16 %v606, %v605
  %v659 = vpack.c.b16 %v608, %v607
  %v660 = vpack.c.b16 %v610, %v609
  %v661 = vpack.c.b16 %v612, %v611
  %v662 = vpack.c.b16 %v614, %v613
  %v663 = vpack.c.b16 %v616, %v615
  %v664 = vpack.c.b16 %v618, %v617
  %v665 = vpack.c.b16 %v620, %v619
  %v666 = vpack.c.b16 %v622, %v621
  %v667 = vpack.c.b16 %v624, %v623
  %v668 = vpack.c.b16 %v626, %v625
  %v669 = vpack.c.b16 %v628, %v627
  %v670 = vpack.c.b16 %v630, %v629
  %v671 = vpack.c.b16 %v632, %v631
  %v672 = vpack.c.b16 %v634, %v633
  %v673 = vpack.c.b16 %v636, %v635
  %v674 = vpack.c.b16 %v638, %v637
  %v675 = vpack.c.b16 %v640, %v639
  %v676 = vpack.c.b16 %v642, %v641
  %v677 = vpack.c.b16 %v644, %v643
  %v678 = vpack.c.b16 %v646, %v645
  %711 = vst [vmem:[%s3] sm:$0xff] %v647
  %712 = vst [vmem:[%s3 + $0x8] sm:$0xff] %v648
  %713 = vst [vmem:[%s3 + $0x10] sm:$0xff] %v649
  %714 = vst [vmem:[%s3 + $0x18] sm:$0xff] %v650
  %715 = vst [vmem:[%s3 + $0x20] sm:$0xff] %v651
  %716 = vst [vmem:[%s3 + $0x28] sm:$0xff] %v652
  %717 = vst [vmem:[%s3 + $0x30] sm:$0xff] %v653
  %718 = vst [vmem:[%s3 + $0x38] sm:$0xff] %v654
  %719 = vst [vmem:[%s3 + $0x40] sm:$0xff] %v655
  %720 = vst [vmem:[%s3 + $0x48] sm:$0xff] %v656
  %721 = vst [vmem:[%s3 + $0x50] sm:$0xff] %v657
  %722 = vst [vmem:[%s3 + $0x58] sm:$0xff] %v658
  %723 = vst [vmem:[%s3 + $0x60] sm:$0xff] %v659
  %724 = vst [vmem:[%s3 + $0x68] sm:$0xff] %v660
  %725 = vst [vmem:[%s3 + $0x70] sm:$0xff] %v661
  %726 = vst [vmem:[%s3 + $0x78] sm:$0xff] %v662
  %727 = vst [vmem:[%s3 + $0x80] sm:$0xff] %v663
  %728 = vst [vmem:[%s3 + $0x88] sm:$0xff] %v664
  %729 = vst [vmem:[%s3 + $0x90] sm:$0xff] %v665
  %730 = vst [vmem:[%s3 + $0x98] sm:$0xff] %v666
  %731 = vst [vmem:[%s3 + $0xa0] sm:$0xff] %v667
  %732 = vst [vmem:[%s3 + $0xa8] sm:$0xff] %v668
  %733 = vst [vmem:[%s3 + $0xb0] sm:$0xff] %v669
  %734 = vst [vmem:[%s3 + $0xb8] sm:$0xff] %v670
  %735 = vst [vmem:[%s3 + $0xc0] sm:$0xff] %v671
  %736 = vst [vmem:[%s3 + $0xc8] sm:$0xff] %v672
  %737 = vst [vmem:[%s3 + $0xd0] sm:$0xff] %v673
  %738 = vst [vmem:[%s3 + $0xd8] sm:$0xff] %v674
  %739 = vst [vmem:[%s3 + $0xe0] sm:$0xff] %v675
  %740 = vst [vmem:[%s3 + $0xe8] sm:$0xff] %v676
  %741 = vst [vmem:[%s3 + $0xf0] sm:$0xff] %v677
  %742 = vst [vmem:[%s3 + $0xf8] sm:$0xff] %v678
  // Predicated region
  $region14: #{lm_lstm_forward.3} parent=0 // pred_check
    _
  $region15: #{lm_lstm_forward.3} parent=0 // pred_check_branch
    %744 = sbr.rel (0) target = $region17
  $region16: #{lm_lstm_forward.3} parent=0 // pred_region
    _
  $region17: #{lm_lstm_forward.3} parent=0 // pred_fallthru
    _
  // Predicated region
  $region18: #{lm_lstm_forward.3} parent=0 // pred_check
    _
  $region19: #{lm_lstm_forward.3} parent=0 // pred_check_branch
    %746 = sbr.rel (0) target = $region21
  $region20: #{lm_lstm_forward.3} parent=0 // pred_region
    _
  $region21: #{lm_lstm_forward.3} parent=0 // pred_fallthru
    _

// kernel: lm_lstm_forward.4
$region0: #{lm_lstm_forward.4}
  #allocation0 [shape = 'u32[]', space=smem, size = 0x4, offset = 0x4, fixed_abs, tag = 'smem constant byte address 0x4 - core index']
  #allocation1 [shape = 'u32[144,128]{1,0:T(1,128)}', space=vmem, size = 0x12000, scoped, tag = 'internal scratch']
  #allocation2 [shape = 'bf16[128,512]{1,0:T(16,128)(2,1)}', space=vmem, size = 0x20000, scoped, tag = 'scratch operand']
  #allocation3 [shape = 'f32[8,128]{1,0:T(8,128)}', space=vmem, size = 0x1000, scoped, tag = 'scratch operand']
  #allocation4 [shape = 'f32[8,128]{1,0:T(8,128)}', space=vmem, size = 0x1000, scoped, tag = 'scratch operand']
  #allocation6 [shape = 's32[]', space=sflag, size = 0x4, offset = 0, fixed_abs, tag = 'sflag constant byte address 0x0 - dummy sync flag']
  %s0 = inlined_call_operand.vmem [shape: bf16[16,8,512], index: 0, kind: input, shape index: {}]
  %s1 = inlined_call_operand.vmem [shape: bf16[128,512], index: 1, kind: input, shape index: {}]
  %s2 = inlined_call_operand.vmem [shape: f32[16,8,128], index: 2, kind: output, shape index: {}]
  %s3 = sld [smem:[#allocation0]]
  $region56: #{lm_lstm_forward.4} parent=0
    _
  %s5 = ssub.s32 1, %s3
  %s6 = scalar_select 0, %s5, %s3
  // Predicated region
  $region2: #{lm_lstm_forward.4} parent=0 // pred_check
    _
  $region3: #{lm_lstm_forward.4} parent=0 // pred_check_branch
    %8 = sbr.rel (0) target = $region5
  $region4: #{lm_lstm_forward.4} parent=0 // pred_region
    _
  $region5: #{lm_lstm_forward.4} parent=0 // pred_fallthru
    _
  %p10 = scmp.eq.s32.totalorder 0, 0
  // Predicated region
  $region6: #{lm_lstm_forward.4} parent=0 // pred_check
    %p11 = pneg %p10
  $region7: #{lm_lstm_forward.4} parent=0 // pred_check_branch
    %13 = sbr.rel (%p11) target = $region9
  $region8: #{lm_lstm_forward.4} parent=0 // pred_region
    $region10: #{lm_lstm_forward.4} parent=8
      #allocation5 [shape = 's32[1]{0}', space=sflag, size = 0x4, scoped, tag = 'scoped memory for lm_lstm_forward.4']
      %p15 = scmp.lt.u32.totalorder 4, 8
      %p16 = pneg %p15
      // Predicated region
      $region11: #{lm_lstm_forward.4} parent=10 // pred_check
        _
      $region12: #{lm_lstm_forward.4} parent=10 // pred_check_branch
        %18 = sbr.rel (%p15) target = $region14
      $region13: #{lm_lstm_forward.4} parent=10 // pred_region
        %s159 = sand.u32 4, 7
        %p160 = scmp.eq.s32.totalorder %s159, 0
        %p161 = pneg %p160
        // Predicated region
        $region26: #{lm_lstm_forward.4} parent=13 // pred_check
          _
        $region27: #{lm_lstm_forward.4} parent=13 // pred_check_branch
          %163 = sbr.rel (%p160) target = $region29
        $region28: #{lm_lstm_forward.4} parent=13 // pred_region
          %s164 = sand.u32 4, 7
          %s165 = ssub.s32 4, %s164
          %s166 = scalar_lea.vmem %s1, %s165
          %s167 = ssub.s32 4, %s164
          %s168 = scalar_lea.vmem [#allocation2], %s167
          loop: start=0, step=1, limit=1
          $region30: #{lm_lstm_forward.4} parent=28 // loop_pre_header
            _
          $region31: #{lm_lstm_forward.4} parent=28 // loop_header
            %s170 = sphi 0, %s174
            %p171 = scmp.ge.s32.totalorder %s170, 1
            %s175 = sphi %s1, %s1
            %s176 = sphi [#allocation2], [#allocation2]
          $region32: #{lm_lstm_forward.4} parent=28 // loop_header_branch
            %173 = sbr.rel (%p171) target = $region36
          $region33: #{lm_lstm_forward.4} parent=28 // loop_body
            _
          $region34: #{lm_lstm_forward.4} parent=28 // loop_footer
            %s174 = sadd.s32 1, %s170
          $region35: #{lm_lstm_forward.4} parent=28 // loop_footer_branch
            %169 = sbr.rel target = $region31
          $region36: #{lm_lstm_forward.4} parent=28 // loop_exit
            _
          %s177 = sshllo.u32 0, %s164
          loop: start=0, step=1, limit=1
          $region37: #{lm_lstm_forward.4} parent=28 // loop_pre_header
            _
          $region38: #{lm_lstm_forward.4} parent=28 // loop_header
            %s179 = sphi 0, %s183
            %p180 = scmp.ge.s32.totalorder %s179, 1
            %s184 = sphi %s166, %s166
            %s185 = sphi %s168, %s168
          $region39: #{lm_lstm_forward.4} parent=28 // loop_header_branch
            %182 = sbr.rel (%p180) target = $region43
          $region40: #{lm_lstm_forward.4} parent=28 // loop_body
            %v186 = vld [vmem:[%s184] sm:%s177]
            %187 = vst [vmem:[%s185] sm:%s177] %v186
            %v188 = vld [vmem:[%s184 + $0x10] sm:%s177]
            %189 = vst [vmem:[%s185 + $0x4] sm:%s177] %v188
            %v190 = vld [vmem:[%s184 + $0x4] sm:%s177]
            %191 = vst [vmem:[%s185 + $0x8] sm:%s177] %v190
            %v192 = vld [vmem:[%s184 + $0x14] sm:%s177]
            %193 = vst [vmem:[%s185 + $0xc] sm:%s177] %v192
            %v194 = vld [vmem:[%s184 + $0x8] sm:%s177]
            %195 = vst [vmem:[%s185 + $0x10] sm:%s177] %v194
            %v196 = vld [vmem:[%s184 + $0x18] sm:%s177]
            %197 = vst [vmem:[%s185 + $0x14] sm:%s177] %v196
            %v198 = vld [vmem:[%s184 + $0xc] sm:%s177]
            %199 = vst [vmem:[%s185 + $0x18] sm:%s177] %v198
            %v200 = vld [vmem:[%s184 + $0x1c] sm:%s177]
            %201 = vst [vmem:[%s185 + $0x1c] sm:%s177] %v200
            %v202 = vld [vmem:[%s184 + $0x20] sm:%s177]
            %203 = vst [vmem:[%s185 + $0x20] sm:%s177] %v202
            %v204 = vld [vmem:[%s184 + $0x30] sm:%s177]
            %205 = vst [vmem:[%s185 + $0x24] sm:%s177] %v204
            %v206 = vld [vmem:[%s184 + $0x24] sm:%s177]
            %207 = vst [vmem:[%s185 + $0x28] sm:%s177] %v206
            %v208 = vld [vmem:[%s184 + $0x34] sm:%s177]
            %209 = vst [vmem:[%s185 + $0x2c] sm:%s177] %v208
            %v210 = vld [vmem:[%s184 + $0x28] sm:%s177]
            %211 = vst [vmem:[%s185 + $0x30] sm:%s177] %v210
            %v212 = vld [vmem:[%s184 + $0x38] sm:%s177]
            %213 = vst [vmem:[%s185 + $0x34] sm:%s177] %v212
            %v214 = vld [vmem:[%s184 + $0x2c] sm:%s177]
            %215 = vst [vmem:[%s185 + $0x38] sm:%s177] %v214
            %v216 = vld [vmem:[%s184 + $0x3c] sm:%s177]
            %217 = vst [vmem:[%s185 + $0x3c] sm:%s177] %v216
            %v218 = vld [vmem:[%s184 + $0x40] sm:%s177]
            %219 = vst [vmem:[%s185 + $0x40] sm:%s177] %v218
            %v220 = vld [vmem:[%s184 + $0x50] sm:%s177]
            %221 = vst [vmem:[%s185 + $0x44] sm:%s177] %v220
            %v222 = vld [vmem:[%s184 + $0x44] sm:%s177]
            %223 = vst [vmem:[%s185 + $0x48] sm:%s177] %v222
            %v224 = vld [vmem:[%s184 + $0x54] sm:%s177]
            %225 = vst [vmem:[%s185 + $0x4c] sm:%s177] %v224
            %v226 = vld [vmem:[%s184 + $0x48] sm:%s177]
            %227 = vst [vmem:[%s185 + $0x50] sm:%s177] %v226
            %v228 = vld [vmem:[%s184 + $0x58] sm:%s177]
            %229 = vst [vmem:[%s185 + $0x54] sm:%s177] %v228
            %v230 = vld [vmem:[%s184 + $0x4c] sm:%s177]
            %231 = vst [vmem:[%s185 + $0x58] sm:%s177] %v230
            %v232 = vld [vmem:[%s184 + $0x5c] sm:%s177]
            %233 = vst [vmem:[%s185 + $0x5c] sm:%s177] %v232
            %v234 = vld [vmem:[%s184 + $0x60] sm:%s177]
            %235 = vst [vmem:[%s185 + $0x60] sm:%s177] %v234
            %v236 = vld [vmem:[%s184 + $0x70] sm:%s177]
            %237 = vst [vmem:[%s185 + $0x64] sm:%s177] %v236
            %v238 = vld [vmem:[%s184 + $0x64] sm:%s177]
            %239 = vst [vmem:[%s185 + $0x68] sm:%s177] %v238
            %v240 = vld [vmem:[%s184 + $0x74] sm:%s177]
            %241 = vst [vmem:[%s185 + $0x6c] sm:%s177] %v240
            %v242 = vld [vmem:[%s184 + $0x68] sm:%s177]
            %243 = vst [vmem:[%s185 + $0x70] sm:%s177] %v242
            %v244 = vld [vmem:[%s184 + $0x78] sm:%s177]
            %245 = vst [vmem:[%s185 + $0x74] sm:%s177] %v244
            %v246 = vld [vmem:[%s184 + $0x6c] sm:%s177]
            %247 = vst [vmem:[%s185 + $0x78] sm:%s177] %v246
            %v248 = vld [vmem:[%s184 + $0x7c] sm:%s177]
            %249 = vst [vmem:[%s185 + $0x7c] sm:%s177] %v248
            %v250 = vld [vmem:[%s184 + $0x80] sm:%s177]
            %251 = vst [vmem:[%s185 + $0x80] sm:%s177] %v250
            %v252 = vld [vmem:[%s184 + $0x90] sm:%s177]
            %253 = vst [vmem:[%s185 + $0x84] sm:%s177] %v252
            %v254 = vld [vmem:[%s184 + $0x84] sm:%s177]
            %255 = vst [vmem:[%s185 + $0x88] sm:%s177] %v254
            %v256 = vld [vmem:[%s184 + $0x94] sm:%s177]
            %257 = vst [vmem:[%s185 + $0x8c] sm:%s177] %v256
            %v258 = vld [vmem:[%s184 + $0x88] sm:%s177]
            %259 = vst [vmem:[%s185 + $0x90] sm:%s177] %v258
            %v260 = vld [vmem:[%s184 + $0x98] sm:%s177]
            %261 = vst [vmem:[%s185 + $0x94] sm:%s177] %v260
            %v262 = vld [vmem:[%s184 + $0x8c] sm:%s177]
            %263 = vst [vmem:[%s185 + $0x98] sm:%s177] %v262
            %v264 = vld [vmem:[%s184 + $0x9c] sm:%s177]
            %265 = vst [vmem:[%s185 + $0x9c] sm:%s177] %v264
            %v266 = vld [vmem:[%s184 + $0xa0] sm:%s177]
            %267 = vst [vmem:[%s185 + $0xa0] sm:%s177] %v266
            %v268 = vld [vmem:[%s184 + $0xb0] sm:%s177]
            %269 = vst [vmem:[%s185 + $0xa4] sm:%s177] %v268
            %v270 = vld [vmem:[%s184 + $0xa4] sm:%s177]
            %271 = vst [vmem:[%s185 + $0xa8] sm:%s177] %v270
            %v272 = vld [vmem:[%s184 + $0xb4] sm:%s177]
            %273 = vst [vmem:[%s185 + $0xac] sm:%s177] %v272
            %v274 = vld [vmem:[%s184 + $0xa8] sm:%s177]
            %275 = vst [vmem:[%s185 + $0xb0] sm:%s177] %v274
            %v276 = vld [vmem:[%s184 + $0xb8] sm:%s177]
            %277 = vst [vmem:[%s185 + $0xb4] sm:%s177] %v276
            %v278 = vld [vmem:[%s184 + $0xac] sm:%s177]
            %279 = vst [vmem:[%s185 + $0xb8] sm:%s177] %v278
            %v280 = vld [vmem:[%s184 + $0xbc] sm:%s177]
            %281 = vst [vmem:[%s185 + $0xbc] sm:%s177] %v280
            %v282 = vld [vmem:[%s184 + $0xc0] sm:%s177]
            %283 = vst [vmem:[%s185 + $0xc0] sm:%s177] %v282
            %v284 = vld [vmem:[%s184 + $0xd0] sm:%s177]
            %285 = vst [vmem:[%s185 + $0xc4] sm:%s177] %v284
            %v286 = vld [vmem:[%s184 + $0xc4] sm:%s177]
            %287 = vst [vmem:[%s185 + $0xc8] sm:%s177] %v286
            %v288 = vld [vmem:[%s184 + $0xd4] sm:%s177]
            %289 = vst [vmem:[%s185 + $0xcc] sm:%s177] %v288
            %v290 = vld [vmem:[%s184 + $0xc8] sm:%s177]
            %291 = vst [vmem:[%s185 + $0xd0] sm:%s177] %v290
            %v292 = vld [vmem:[%s184 + $0xd8] sm:%s177]
            %293 = vst [vmem:[%s185 + $0xd4] sm:%s177] %v292
            %v294 = vld [vmem:[%s184 + $0xcc] sm:%s177]
            %295 = vst [vmem:[%s185 + $0xd8] sm:%s177] %v294
            %v296 = vld [vmem:[%s184 + $0xdc] sm:%s177]
            %297 = vst [vmem:[%s185 + $0xdc] sm:%s177] %v296
            %v298 = vld [vmem:[%s184 + $0xe0] sm:%s177]
            %299 = vst [vmem:[%s185 + $0xe0] sm:%s177] %v298
            %v300 = vld [vmem:[%s184 + $0xf0] sm:%s177]
            %301 = vst [vmem:[%s185 + $0xe4] sm:%s177] %v300
            %v302 = vld [vmem:[%s184 + $0xe4] sm:%s177]
            %303 = vst [vmem:[%s185 + $0xe8] sm:%s177] %v302
            %v304 = vld [vmem:[%s184 + $0xf4] sm:%s177]
            %305 = vst [vmem:[%s185 + $0xec] sm:%s177] %v304
            %v306 = vld [vmem:[%s184 + $0xe8] sm:%s177]
            %307 = vst [vmem:[%s185 + $0xf0] sm:%s177] %v306
            %v308 = vld [vmem:[%s184 + $0xf8] sm:%s177]
            %309 = vst [vmem:[%s185 + $0xf4] sm:%s177] %v308
            %v310 = vld [vmem:[%s184 + $0xec] sm:%s177]
            %311 = vst [vmem:[%s185 + $0xf8] sm:%s177] %v310
            %v312 = vld [vmem:[%s184 + $0xfc] sm:%s177]
            %313 = vst [vmem:[%s185 + $0xfc] sm:%s177] %v312
          $region41: #{lm_lstm_forward.4} parent=28 // loop_footer
            %s183 = sadd.s32 1, %s179
          $region42: #{lm_lstm_forward.4} parent=28 // loop_footer_branch
            %178 = sbr.rel target = $region38
          $region43: #{lm_lstm_forward.4} parent=28 // loop_exit
            _
        $region29: #{lm_lstm_forward.4} parent=13 // pred_fallthru
          _
      $region14: #{lm_lstm_forward.4} parent=10 // pred_fallthru
        _
      // Predicated region
      $region15: #{lm_lstm_forward.4} parent=10 // pred_check
        %p19 = pneg %p15
      $region16: #{lm_lstm_forward.4} parent=10 // pred_check_branch
        %21 = sbr.rel (%p19) target = $region18
      $region17: #{lm_lstm_forward.4} parent=10 // pred_region
        %s22 = sshllo.u32 0, 4
        loop: start=0, step=1, limit=1
        $region19: #{lm_lstm_forward.4} parent=17 // loop_pre_header
          _
        $region20: #{lm_lstm_forward.4} parent=17 // loop_header
          %s24 = sphi 0, %s28
          %p25 = scmp.ge.s32.totalorder %s24, 1
          %s29 = sphi %s1, %s1
          %s30 = sphi [#allocation2], [#allocation2]
        $region21: #{lm_lstm_forward.4} parent=17 // loop_header_branch
          %27 = sbr.rel (%p25) target = $region25
        $region22: #{lm_lstm_forward.4} parent=17 // loop_body
          %v31 = vld [vmem:[%s29] sm:%s22]
          %32 = vst [vmem:[%s30] sm:%s22] %v31
          %v33 = vld [vmem:[%s29 + $0x10] sm:%s22]
          %34 = vst [vmem:[%s30 + $0x4] sm:%s22] %v33
          %v35 = vld [vmem:[%s29 + $0x4] sm:%s22]
          %36 = vst [vmem:[%s30 + $0x8] sm:%s22] %v35
          %v37 = vld [vmem:[%s29 + $0x14] sm:%s22]
          %38 = vst [vmem:[%s30 + $0xc] sm:%s22] %v37
          %v39 = vld [vmem:[%s29 + $0x8] sm:%s22]
          %40 = vst [vmem:[%s30 + $0x10] sm:%s22] %v39
          %v41 = vld [vmem:[%s29 + $0x18] sm:%s22]
          %42 = vst [vmem:[%s30 + $0x14] sm:%s22] %v41
          %v43 = vld [vmem:[%s29 + $0xc] sm:%s22]
          %44 = vst [vmem:[%s30 + $0x18] sm:%s22] %v43
          %v45 = vld [vmem:[%s29 + $0x1c] sm:%s22]
          %46 = vst [vmem:[%s30 + $0x1c] sm:%s22] %v45
          %v47 = vld [vmem:[%s29 + $0x20] sm:%s22]
          %48 = vst [vmem:[%s30 + $0x20] sm:%s22] %v47
          %v49 = vld [vmem:[%s29 + $0x30] sm:%s22]
          %50 = vst [vmem:[%s30 + $0x24] sm:%s22] %v49
          %v51 = vld [vmem:[%s29 + $0x24] sm:%s22]
          %52 = vst [vmem:[%s30 + $0x28] sm:%s22] %v51
          %v53 = vld [vmem:[%s29 + $0x34] sm:%s22]
          %54 = vst [vmem:[%s30 + $0x2c] sm:%s22] %v53
          %v55 = vld [vmem:[%s29 + $0x28] sm:%s22]
          %56 = vst [vmem:[%s30 + $0x30] sm:%s22] %v55
          %v57 = vld [vmem:[%s29 + $0x38] sm:%s22]
          %58 = vst [vmem:[%s30 + $0x34] sm:%s22] %v57
          %v59 = vld [vmem:[%s29 + $0x2c] sm:%s22]
          %60 = vst [vmem:[%s30 + $0x38] sm:%s22] %v59
          %v61 = vld [vmem:[%s29 + $0x3c] sm:%s22]
          %62 = vst [vmem:[%s30 + $0x3c] sm:%s22] %v61
          %v63 = vld [vmem:[%s29 + $0x40] sm:%s22]
          %64 = vst [vmem:[%s30 + $0x40] sm:%s22] %v63
          %v65 = vld [vmem:[%s29 + $0x50] sm:%s22]
          %66 = vst [vmem:[%s30 + $0x44] sm:%s22] %v65
          %v67 = vld [vmem:[%s29 + $0x44] sm:%s22]
          %68 = vst [vmem:[%s30 + $0x48] sm:%s22] %v67
          %v69 = vld [vmem:[%s29 + $0x54] sm:%s22]
          %70 = vst [vmem:[%s30 + $0x4c] sm:%s22] %v69
          %v71 = vld [vmem:[%s29 + $0x48] sm:%s22]
          %72 = vst [vmem:[%s30 + $0x50] sm:%s22] %v71
          %v73 = vld [vmem:[%s29 + $0x58] sm:%s22]
          %74 = vst [vmem:[%s30 + $0x54] sm:%s22] %v73
          %v75 = vld [vmem:[%s29 + $0x4c] sm:%s22]
          %76 = vst [vmem:[%s30 + $0x58] sm:%s22] %v75
          %v77 = vld [vmem:[%s29 + $0x5c] sm:%s22]
          %78 = vst [vmem:[%s30 + $0x5c] sm:%s22] %v77
          %v79 = vld [vmem:[%s29 + $0x60] sm:%s22]
          %80 = vst [vmem:[%s30 + $0x60] sm:%s22] %v79
          %v81 = vld [vmem:[%s29 + $0x70] sm:%s22]
          %82 = vst [vmem:[%s30 + $0x64] sm:%s22] %v81
          %v83 = vld [vmem:[%s29 + $0x64] sm:%s22]
          %84 = vst [vmem:[%s30 + $0x68] sm:%s22] %v83
          %v85 = vld [vmem:[%s29 + $0x74] sm:%s22]
          %86 = vst [vmem:[%s30 + $0x6c] sm:%s22] %v85
          %v87 = vld [vmem:[%s29 + $0x68] sm:%s22]
          %88 = vst [vmem:[%s30 + $0x70] sm:%s22] %v87
          %v89 = vld [vmem:[%s29 + $0x78] sm:%s22]
          %90 = vst [vmem:[%s30 + $0x74] sm:%s22] %v89
          %v91 = vld [vmem:[%s29 + $0x6c] sm:%s22]
          %92 = vst [vmem:[%s30 + $0x78] sm:%s22] %v91
          %v93 = vld [vmem:[%s29 + $0x7c] sm:%s22]
          %94 = vst [vmem:[%s30 + $0x7c] sm:%s22] %v93
          %v95 = vld [vmem:[%s29 + $0x80] sm:%s22]
          %96 = vst [vmem:[%s30 + $0x80] sm:%s22] %v95
          %v97 = vld [vmem:[%s29 + $0x90] sm:%s22]
          %98 = vst [vmem:[%s30 + $0x84] sm:%s22] %v97
          %v99 = vld [vmem:[%s29 + $0x84] sm:%s22]
          %100 = vst [vmem:[%s30 + $0x88] sm:%s22] %v99
          %v101 = vld [vmem:[%s29 + $0x94] sm:%s22]
          %102 = vst [vmem:[%s30 + $0x8c] sm:%s22] %v101
          %v103 = vld [vmem:[%s29 + $0x88] sm:%s22]
          %104 = vst [vmem:[%s30 + $0x90] sm:%s22] %v103
          %v105 = vld [vmem:[%s29 + $0x98] sm:%s22]
          %106 = vst [vmem:[%s30 + $0x94] sm:%s22] %v105
          %v107 = vld [vmem:[%s29 + $0x8c] sm:%s22]
          %108 = vst [vmem:[%s30 + $0x98] sm:%s22] %v107
          %v109 = vld [vmem:[%s29 + $0x9c] sm:%s22]
          %110 = vst [vmem:[%s30 + $0x9c] sm:%s22] %v109
          %v111 = vld [vmem:[%s29 + $0xa0] sm:%s22]
          %112 = vst [vmem:[%s30 + $0xa0] sm:%s22] %v111
          %v113 = vld [vmem:[%s29 + $0xb0] sm:%s22]
          %114 = vst [vmem:[%s30 + $0xa4] sm:%s22] %v113
          %v115 = vld [vmem:[%s29 + $0xa4] sm:%s22]
          %116 = vst [vmem:[%s30 + $0xa8] sm:%s22] %v115
          %v117 = vld [vmem:[%s29 + $0xb4] sm:%s22]
          %118 = vst [vmem:[%s30 + $0xac] sm:%s22] %v117
          %v119 = vld [vmem:[%s29 + $0xa8] sm:%s22]
          %120 = vst [vmem:[%s30 + $0xb0] sm:%s22] %v119
          %v121 = vld [vmem:[%s29 + $0xb8] sm:%s22]
          %122 = vst [vmem:[%s30 + $0xb4] sm:%s22] %v121
          %v123 = vld [vmem:[%s29 + $0xac] sm:%s22]
          %124 = vst [vmem:[%s30 + $0xb8] sm:%s22] %v123
          %v125 = vld [vmem:[%s29 + $0xbc] sm:%s22]
          %126 = vst [vmem:[%s30 + $0xbc] sm:%s22] %v125
          %v127 = vld [vmem:[%s29 + $0xc0] sm:%s22]
          %128 = vst [vmem:[%s30 + $0xc0] sm:%s22] %v127
          %v129 = vld [vmem:[%s29 + $0xd0] sm:%s22]
          %130 = vst [vmem:[%s30 + $0xc4] sm:%s22] %v129
          %v131 = vld [vmem:[%s29 + $0xc4] sm:%s22]
          %132 = vst [vmem:[%s30 + $0xc8] sm:%s22] %v131
          %v133 = vld [vmem:[%s29 + $0xd4] sm:%s22]
          %134 = vst [vmem:[%s30 + $0xcc] sm:%s22] %v133
          %v135 = vld [vmem:[%s29 + $0xc8] sm:%s22]
          %136 = vst [vmem:[%s30 + $0xd0] sm:%s22] %v135
          %v137 = vld [vmem:[%s29 + $0xd8] sm:%s22]
          %138 = vst [vmem:[%s30 + $0xd4] sm:%s22] %v137
          %v139 = vld [vmem:[%s29 + $0xcc] sm:%s22]
          %140 = vst [vmem:[%s30 + $0xd8] sm:%s22] %v139
          %v141 = vld [vmem:[%s29 + $0xdc] sm:%s22]
          %142 = vst [vmem:[%s30 + $0xdc] sm:%s22] %v141
          %v143 = vld [vmem:[%s29 + $0xe0] sm:%s22]
          %144 = vst [vmem:[%s30 + $0xe0] sm:%s22] %v143
          %v145 = vld [vmem:[%s29 + $0xf0] sm:%s22]
          %146 = vst [vmem:[%s30 + $0xe4] sm:%s22] %v145
          %v147 = vld [vmem:[%s29 + $0xe4] sm:%s22]
          %148 = vst [vmem:[%s30 + $0xe8] sm:%s22] %v147
          %v149 = vld [vmem:[%s29 + $0xf4] sm:%s22]
          %150 = vst [vmem:[%s30 + $0xec] sm:%s22] %v149
          %v151 = vld [vmem:[%s29 + $0xe8] sm:%s22]
          %152 = vst [vmem:[%s30 + $0xf0] sm:%s22] %v151
          %v153 = vld [vmem:[%s29 + $0xf8] sm:%s22]
          %154 = vst [vmem:[%s30 + $0xf4] sm:%s22] %v153
          %v155 = vld [vmem:[%s29 + $0xec] sm:%s22]
          %156 = vst [vmem:[%s30 + $0xf8] sm:%s22] %v155
          %v157 = vld [vmem:[%s29 + $0xfc] sm:%s22]
          %158 = vst [vmem:[%s30 + $0xfc] sm:%s22] %v157
        $region23: #{lm_lstm_forward.4} parent=17 // loop_footer
          %s28 = sadd.s32 1, %s24
        $region24: #{lm_lstm_forward.4} parent=17 // loop_footer_branch
          %23 = sbr.rel target = $region20
        $region25: #{lm_lstm_forward.4} parent=17 // loop_exit
          _
      $region18: #{lm_lstm_forward.4} parent=10 // pred_fallthru
        _
      // Predicated region
      $region44: #{lm_lstm_forward.4} parent=10 // pred_check
        _
      $region45: #{lm_lstm_forward.4} parent=10 // pred_check_branch
        %316 = sbr.rel (0) target = $region47
      $region46: #{lm_lstm_forward.4} parent=10 // pred_region
        %317 = vsyncadd [#allocation5], 4096
      $region47: #{lm_lstm_forward.4} parent=10 // pred_fallthru
        _
      %s318 = smul.u32 4, 16
      %s319 = smul.u32 %s318, 4
      %s320 = sshll.u32 %s319, 4
      %321 = dma.done [#allocation5], %s320
    %322 = vst [vmem:[#allocation3] sm:$0xff] 0.0
    %323 = vst [vmem:[#allocation4] sm:$0xff] 0.0
  $region9: #{lm_lstm_forward.4} parent=0 // pred_fallthru
    _
  %v324 = vld [vmem:[#allocation3] sm:$0xff]
  %v325 = vld [vmem:[#allocation4] sm:$0xff]
  %v326 = vld [vmem:[%s0] sm:$0xff]
  %v327 = vld [vmem:[%s0 + $0x8] sm:$0xff]
  %v328 = vunpack.c.l.bf16 %v326
  %v329 = vunpack.c.h.bf16 %v326
  %v330 = vunpack.c.l.bf16 %v327
  %v331 = vunpack.c.h.bf16 %v327
  %v332 = vpack.c.bf16 %v324, %v324
  %v333 = vld [vmem:[#allocation2] sm:$0xff]
  %v334 = vld [vmem:[#allocation2 + $0x8] sm:$0xff]
  %v335 = vld [vmem:[#allocation2 + $0x10] sm:$0xff]
  %v336 = vld [vmem:[#allocation2 + $0x18] sm:$0xff]
  %v337 = vld [vmem:[#allocation2 + $0x20] sm:$0xff]
  %v338 = vld [vmem:[#allocation2 + $0x28] sm:$0xff]
  %v339 = vld [vmem:[#allocation2 + $0x30] sm:$0xff]
  %v340 = vld [vmem:[#allocation2 + $0x38] sm:$0xff]
  %v341 = vld [vmem:[#allocation2 + $0x40] sm:$0xff]
  %v342 = vld [vmem:[#allocation2 + $0x48] sm:$0xff]
  %v343 = vld [vmem:[#allocation2 + $0x50] sm:$0xff]
  %v344 = vld [vmem:[#allocation2 + $0x58] sm:$0xff]
  %v345 = vld [vmem:[#allocation2 + $0x60] sm:$0xff]
  %v346 = vld [vmem:[#allocation2 + $0x68] sm:$0xff]
  %v347 = vld [vmem:[#allocation2 + $0x70] sm:$0xff]
  %v348 = vld [vmem:[#allocation2 + $0x78] sm:$0xff]
  %v349 = vld [vmem:[#allocation2 + $0x80] sm:$0xff]
  %v350 = vld [vmem:[#allocation2 + $0x88] sm:$0xff]
  %v351 = vld [vmem:[#allocation2 + $0x90] sm:$0xff]
  %v352 = vld [vmem:[#allocation2 + $0x98] sm:$0xff]
  %v353 = vld [vmem:[#allocation2 + $0xa0] sm:$0xff]
  %v354 = vld [vmem:[#allocation2 + $0xa8] sm:$0xff]
  %v355 = vld [vmem:[#allocation2 + $0xb0] sm:$0xff]
  %v356 = vld [vmem:[#allocation2 + $0xb8] sm:$0xff]
  %v357 = vld [vmem:[#allocation2 + $0xc0] sm:$0xff]
  %v358 = vld [vmem:[#allocation2 + $0xc8] sm:$0xff]
  %v359 = vld [vmem:[#allocation2 + $0xd0] sm:$0xff]
  %v360 = vld [vmem:[#allocation2 + $0xd8] sm:$0xff]
  %v361 = vld [vmem:[#allocation2 + $0xe0] sm:$0xff]
  %v362 = vld [vmem:[#allocation2 + $0xe8] sm:$0xff]
  %v363 = vld [vmem:[#allocation2 + $0xf0] sm:$0xff]
  %v364 = vld [vmem:[#allocation2 + $0xf8] sm:$0xff]
  %365 = vmatprep.subr.bf16.mxu0 %v334
  %366 = vmatpush1.bf16.msra.mxu0 %v333
  %367 = vmatprep.subr.bf16.mxu0 %v338
  %368 = vmatpush1.bf16.msra.mxu0 %v337
  %369 = vmatprep.subr.bf16.mxu0 %v342
  %370 = vmatpush1.bf16.msra.mxu0 %v341
  %371 = vmatprep.subr.bf16.mxu0 %v346
  %372 = vmatpush1.bf16.msra.mxu0 %v345
  %373 = vmatprep.subr.bf16.mxu0 %v350
  %374 = vmatpush1.bf16.msra.mxu0 %v349
  %375 = vmatprep.subr.bf16.mxu0 %v354
  %376 = vmatpush1.bf16.msra.mxu0 %v353
  %377 = vmatprep.subr.bf16.mxu0 %v358
  %378 = vmatpush1.bf16.msra.mxu0 %v357
  %379 = vmatprep.subr.bf16.mxu0 %v362
  %380 = vmatpush1.bf16.msra.mxu0 %v361
  %381 = vmatprep.subr.bf16.mxu0 0
  %382 = vmatpush1.bf16.msra.mxu0 0
  %383 = vmatprep.subr.bf16.mxu0 0
  %384 = vmatpush1.bf16.msra.mxu0 0
  %385 = vmatprep.subr.bf16.mxu0 0
  %386 = vmatpush1.bf16.msra.mxu0 0
  %387 = vmatprep.subr.bf16.mxu0 0
  %388 = vmatpush1.bf16.msra.mxu0 0
  %389 = vmatprep.subr.bf16.mxu0 0
  %390 = vmatpush1.bf16.msra.mxu0 0
  %391 = vmatprep.subr.bf16.mxu0 0
  %392 = vmatpush1.bf16.msra.mxu0 0
  %393 = vmatprep.subr.bf16.mxu0 0
  %394 = vmatpush1.bf16.msra.mxu0 0
  %395 = vmatprep.subr.bf16.mxu0 0
  %396 = vmatpush1.bf16.msra.mxu0 0
  %397 = vmatprep.mubr.bf16.mxu0 0
  %398 = vmatmul.mubr.bf16.gmra.mrb[0].mxu0 %v332
  %v399 = vpop.f32.mrb[0].mxu0
  %v400 = vadd.f32 0.0, %v399
  %v401 = vpop.f32.mrb[0].mxu0
  %v402 = vadd.f32 0.0, %v401
  %v403 = vpop.f32.mrb[0].mxu0
  %v404 = vpop.f32.mrb[0].mxu0
  %405 = vdwg.mxu0
  %406 = vmatprep.subr.bf16.mxu0 %v336
  %407 = vmatpush1.bf16.msra.mxu0 %v335
  %408 = vmatprep.subr.bf16.mxu0 %v340
  %409 = vmatpush1.bf16.msra.mxu0 %v339
  %410 = vmatprep.subr.bf16.mxu0 %v344
  %411 = vmatpush1.bf16.msra.mxu0 %v343
  %412 = vmatprep.subr.bf16.mxu0 %v348
  %413 = vmatpush1.bf16.msra.mxu0 %v347
  %414 = vmatprep.subr.bf16.mxu0 %v352
  %415 = vmatpush1.bf16.msra.mxu0 %v351
  %416 = vmatprep.subr.bf16.mxu0 %v356
  %417 = vmatpush1.bf16.msra.mxu0 %v355
  %418 = vmatprep.subr.bf16.mxu0 %v360
  %419 = vmatpush1.bf16.msra.mxu0 %v359
  %420 = vmatprep.subr.bf16.mxu0 %v364
  %421 = vmatpush1.bf16.msra.mxu0 %v363
  %422 = vmatprep.subr.bf16.mxu0 0
  %423 = vmatpush1.bf16.msra.mxu0 0
  %424 = vmatprep.subr.bf16.mxu0 0
  %425 = vmatpush1.bf16.msra.mxu0 0
  %426 = vmatprep.subr.bf16.mxu0 0
  %427 = vmatpush1.bf16.msra.mxu0 0
  %428 = vmatprep.subr.bf16.mxu0 0
  %429 = vmatpush1.bf16.msra.mxu0 0
  %430 = vmatprep.subr.bf16.mxu0 0
  %431 = vmatpush1.bf16.msra.mxu0 0
  %432 = vmatprep.subr.bf16.mxu0 0
  %433 = vmatpush1.bf16.msra.mxu0 0
  %434 = vmatprep.subr.bf16.mxu0 0
  %435 = vmatpush1.bf16.msra.mxu0 0
  %436 = vmatprep.subr.bf16.mxu0 0
  %437 = vmatpush1.bf16.msra.mxu0 0
  %438 = vmatprep.mubr.bf16.mxu0 0
  %439 = vmatmul.mubr.bf16.gmra.mrb[0].mxu0 %v332
  %v440 = vpop.f32.mrb[0].mxu0
  %v441 = vadd.f32 0.0, %v440
  %v442 = vpop.f32.mrb[0].mxu0
  %v443 = vadd.f32 0.0, %v442
  %v444 = vpop.f32.mrb[0].mxu0
  %v445 = vpop.f32.mrb[0].mxu0
  %446 = vdwg.mxu0
  %v447 = vadd.f32 %v328, %v400
  %v448 = vadd.f32 %v329, %v402
  %v449 = vadd.f32 %v330, %v441
  %v450 = vadd.f32 %v331, %v443
  %v451 = vxor.u32 %v447, 2147483648
  %v452 = vmul.f32 %v451, 1.442695
  %v453 = vpow.pop %v452
  %v454 = vadd.f32 %v453, 1.0
  %v455 = vrcp.pop %v454
  %v456 = vmul.f32 1.0, %v455
  %v457 = vxor.u32 %v448, 2147483648
  %v458 = vmul.f32 %v457, 1.442695
  %v459 = vpow.pop %v458
  %v460 = vadd.f32 %v459, 1.0
  %v461 = vrcp.pop %v460
  %v462 = vmul.f32 1.0, %v461
  %v463 = vtanh.pop %v449
  %v464 = vxor.u32 %v450, 2147483648
  %v465 = vmul.f32 %v464, 1.442695
  %v466 = vpow.pop %v465
  %v467 = vadd.f32 %v466, 1.0
  %v468 = vrcp.pop %v467
  %v469 = vmul.f32 1.0, %v468
  %v470 = vmul.f32 %v462, %v325
  %v471 = vmul.f32 %v456, %v463
  %v472 = vadd.f32 %v470, %v471
  %v473 = vtanh.pop %v472
  %v474 = vmul.f32 %v469, %v473
  %475 = vst [vmem:[%s2] sm:$0xff] %v474
  %s476 = scalar_lea.vmem %s0, 16
  %v477 = vld [vmem:[%s476] sm:$0xff]
  %v478 = vld [vmem:[%s476 + $0x8] sm:$0xff]
  %v479 = vunpack.c.l.bf16 %v477
  %v480 = vunpack.c.h.bf16 %v477
  %v481 = vunpack.c.l.bf16 %v478
  %v482 = vunpack.c.h.bf16 %v478
  %v483 = vpack.c.bf16 %v474, %v474
  %v484 = vld [vmem:[#allocation2] sm:$0xff]
  %v485 = vld [vmem:[#allocation2 + $0x8] sm:$0xff]
  %v486 = vld [vmem:[#allocation2 + $0x10] sm:$0xff]
  %v487 = vld [vmem:[#allocation2 + $0x18] sm:$0xff]
  %v488 = vld [vmem:[#allocation2 + $0x20] sm:$0xff]
  %v489 = vld [vmem:[#allocation2 + $0x28] sm:$0xff]
  %v490 = vld [vmem:[#allocation2 + $0x30] sm:$0xff]
  %v491 = vld [vmem:[#allocation2 + $0x38] sm:$0xff]
  %v492 = vld [vmem:[#allocation2 + $0x40] sm:$0xff]
  %v493 = vld [vmem:[#allocation2 + $0x48] sm:$0xff]
  %v494 = vld [vmem:[#allocation2 + $0x50] sm:$0xff]
  %v495 = vld [vmem:[#allocation2 + $0x58] sm:$0xff]
  %v496 = vld [vmem:[#allocation2 + $0x60] sm:$0xff]
  %v497 = vld [vmem:[#allocation2 + $0x68] sm:$0xff]
  %v498 = vld [vmem:[#allocation2 + $0x70] sm:$0xff]
  %v499 = vld [vmem:[#allocation2 + $0x78] sm:$0xff]
  %v500 = vld [vmem:[#allocation2 + $0x80] sm:$0xff]
  %v501 = vld [vmem:[#allocation2 + $0x88] sm:$0xff]
  %v502 = vld [vmem:[#allocation2 + $0x90] sm:$0xff]
  %v503 = vld [vmem:[#allocation2 + $0x98] sm:$0xff]
  %v504 = vld [vmem:[#allocation2 + $0xa0] sm:$0xff]
  %v505 = vld [vmem:[#allocation2 + $0xa8] sm:$0xff]
  %v506 = vld [vmem:[#allocation2 + $0xb0] sm:$0xff]
  %v507 = vld [vmem:[#allocation2 + $0xb8] sm:$0xff]
  %v508 = vld [vmem:[#allocation2 + $0xc0] sm:$0xff]
  %v509 = vld [vmem:[#allocation2 + $0xc8] sm:$0xff]
  %v510 = vld [vmem:[#allocation2 + $0xd0] sm:$0xff]
  %v511 = vld [vmem:[#allocation2 + $0xd8] sm:$0xff]
  %v512 = vld [vmem:[#allocation2 + $0xe0] sm:$0xff]
  %v513 = vld [vmem:[#allocation2 + $0xe8] sm:$0xff]
  %v514 = vld [vmem:[#allocation2 + $0xf0] sm:$0xff]
  %v515 = vld [vmem:[#allocation2 + $0xf8] sm:$0xff]
  %516 = vmatprep.subr.bf16.mxu0 %v485
  %517 = vmatpush1.bf16.msra.mxu0 %v484
  %518 = vmatprep.subr.bf16.mxu0 %v489
  %519 = vmatpush1.bf16.msra.mxu0 %v488
  %520 = vmatprep.subr.bf16.mxu0 %v493
  %521 = vmatpush1.bf16.msra.mxu0 %v492
  %522 = vmatprep.subr.bf16.mxu0 %v497
  %523 = vmatpush1.bf16.msra.mxu0 %v496
  %524 = vmatprep.subr.bf16.mxu0 %v501
  %525 = vmatpush1.bf16.msra.mxu0 %v500
  %526 = vmatprep.subr.bf16.mxu0 %v505
  %527 = vmatpush1.bf16.msra.mxu0 %v504
  %528 = vmatprep.subr.bf16.mxu0 %v509
  %529 = vmatpush1.bf16.msra.mxu0 %v508
  %530 = vmatprep.subr.bf16.mxu0 %v513
  %531 = vmatpush1.bf16.msra.mxu0 %v512
  %532 = vmatprep.subr.bf16.mxu0 0
  %533 = vmatpush1.bf16.msra.mxu0 0
  %534 = vmatprep.subr.bf16.mxu0 0
  %535 = vmatpush1.bf16.msra.mxu0 0
  %536 = vmatprep.subr.bf16.mxu0 0
  %537 = vmatpush1.bf16.msra.mxu0 0
  %538 = vmatprep.subr.bf16.mxu0 0
  %539 = vmatpush1.bf16.msra.mxu0 0
  %540 = vmatprep.subr.bf16.mxu0 0
  %541 = vmatpush1.bf16.msra.mxu0 0
  %542 = vmatprep.subr.bf16.mxu0 0
  %543 = vmatpush1.bf16.msra.mxu0 0
  %544 = vmatprep.subr.bf16.mxu0 0
  %545 = vmatpush1.bf16.msra.mxu0 0
  %546 = vmatprep.subr.bf16.mxu0 0
  %547 = vmatpush1.bf16.msra.mxu0 0
  %548 = vmatprep.mubr.bf16.mxu0 0
  %549 = vmatmul.mubr.bf16.gmra.mrb[0].mxu0 %v483
  %v550 = vpop.f32.mrb[0].mxu0
  %v551 = vadd.f32 0.0, %v550
  %v552 = vpop.f32.mrb[0].mxu0
  %v553 = vadd.f32 0.0, %v552
  %v554 = vpop.f32.mrb[0].mxu0
  %v555 = vpop.f32.mrb[0].mxu0
  %556 = vdwg.mxu0
  %557 = vmatprep.subr.bf16.mxu0 %v487
  %558 = vmatpush1.bf16.msra.mxu0 %v486
  %559 = vmatprep.subr.bf16.mxu0 %v491
  %560 = vmatpush1.bf16.msra.mxu0 %v490
  %561 = vmatprep.subr.bf16.mxu0 %v495
  %562 = vmatpush1.bf16.msra.mxu0 %v494
  %563 = vmatprep.subr.bf16.mxu0 %v499
  %564 = vmatpush1.bf16.msra.mxu0 %v498
  %565 = vmatprep.subr.bf16.mxu0 %v503
  %566 = vmatpush1.bf16.msra.mxu0 %v502
  %567 = vmatprep.subr.bf16.mxu0 %v507
  %568 = vmatpush1.bf16.msra.mxu0 %v506
  %569 = vmatprep.subr.bf16.mxu0 %v511
  %570 = vmatpush1.bf16.msra.mxu0 %v510
  %571 = vmatprep.subr.bf16.mxu0 %v515
  %572 = vmatpush1.bf16.msra.mxu0 %v514
  %573 = vmatprep.subr.bf16.mxu0 0
  %574 = vmatpush1.bf16.msra.mxu0 0
  %575 = vmatprep.subr.bf16.mxu0 0
  %576 = vmatpush1.bf16.msra.mxu0 0
  %577 = vmatprep.subr.bf16.mxu0 0
  %578 = vmatpush1.bf16.msra.mxu0 0
  %579 = vmatprep.subr.bf16.mxu0 0
  %580 = vmatpush1.bf16.msra.mxu0 0
  %581 = vmatprep.subr.bf16.mxu0 0
  %582 = vmatpush1.bf16.msra.mxu0 0
  %583 = vmatprep.subr.bf16.mxu0 0
  %584 = vmatpush1.bf16.msra.mxu0 0
  %585 = vmatprep.subr.bf16.mxu0 0
  %586 = vmatpush1.bf16.msra.mxu0 0
  %587 = vmatprep.subr.bf16.mxu0 0
  %588 = vmatpush1.bf16.msra.mxu0 0
  %589 = vmatprep.mubr.bf16.mxu0 0
  %590 = vmatmul.mubr.bf16.gmra.mrb[0].mxu0 %v483
  %v591 = vpop.f32.mrb[0].mxu0
  %v592 = vadd.f32 0.0, %v591
  %v593 = vpop.f32.mrb[0].mxu0
  %v594 = vadd.f32 0.0, %v593
  %v595 = vpop.f32.mrb[0].mxu0
  %v596 = vpop.f32.mrb[0].mxu0
  %597 = vdwg.mxu0
  %v598 = vadd.f32 %v479, %v551
  %v599 = vadd.f32 %v480, %v553
  %v600 = vadd.f32 %v481, %v592
  %v601 = vadd.f32 %v482, %v594
  %v602 = vxor.u32 %v598, 2147483648
  %v603 = vmul.f32 %v602, 1.442695
  %v604 = vpow.pop %v603
  %v605 = vadd.f32 %v604, 1.0
  %v606 = vrcp.pop %v605
  %v607 = vmul.f32 1.0, %v606
  %v608 = vxor.u32 %v599, 2147483648
  %v609 = vmul.f32 %v608, 1.442695
  %v610 = vpow.pop %v609
  %v611 = vadd.f32 %v610, 1.0
  %v612 = vrcp.pop %v611
  %v613 = vmul.f32 1.0, %v612
  %v614 = vtanh.pop %v600
  %v615 = vxor.u32 %v601, 2147483648
  %v616 = vmul.f32 %v615, 1.442695
  %v617 = vpow.pop %v616
  %v618 = vadd.f32 %v617, 1.0
  %v619 = vrcp.pop %v618
  %v620 = vmul.f32 1.0, %v619
  %v621 = vmul.f32 %v613, %v472
  %v622 = vmul.f32 %v607, %v614
  %v623 = vadd.f32 %v621, %v622
  %v624 = vtanh.pop %v623
  %v625 = vmul.f32 %v620, %v624
  %s626 = scalar_lea.vmem %s2, 8
  %627 = vst [vmem:[%s626] sm:$0xff] %v625
  %s628 = scalar_lea.vmem %s0, 32
  %v629 = vld [vmem:[%s628] sm:$0xff]
  %v630 = vld [vmem:[%s628 + $0x8] sm:$0xff]
  %v631 = vunpack.c.l.bf16 %v629
  %v632 = vunpack.c.h.bf16 %v629
  %v633 = vunpack.c.l.bf16 %v630
  %v634 = vunpack.c.h.bf16 %v630
  %v635 = vpack.c.bf16 %v625, %v625
  %v636 = vld [vmem:[#allocation2] sm:$0xff]
  %v637 = vld [vmem:[#allocation2 + $0x8] sm:$0xff]
  %v638 = vld [vmem:[#allocation2 + $0x10] sm:$0xff]
  %v639 = vld [vmem:[#allocation2 + $0x18] sm:$0xff]
  %v640 = vld [vmem:[#allocation2 + $0x20] sm:$0xff]
  %v641 = vld [vmem:[#allocation2 + $0x28] sm:$0xff]
  %v642 = vld [vmem:[#allocation2 + $0x30] sm:$0xff]
  %v643 = vld [vmem:[#allocation2 + $0x38] sm:$0xff]
  %v644 = vld [vmem:[#allocation2 + $0x40] sm:$0xff]
  %v645 = vld [vmem:[#allocation2 + $0x48] sm:$0xff]
  %v646 = vld [vmem:[#allocation2 + $0x50] sm:$0xff]
  %v647 = vld [vmem:[#allocation2 + $0x58] sm:$0xff]
  %v648 = vld [vmem:[#allocation2 + $0x60] sm:$0xff]
  %v649 = vld [vmem:[#allocation2 + $0x68] sm:$0xff]
  %v650 = vld [vmem:[#allocation2 + $0x70] sm:$0xff]
  %v651 = vld [vmem:[#allocation2 + $0x78] sm:$0xff]
  %v652 = vld [vmem:[#allocation2 + $0x80] sm:$0xff]
  %v653 = vld [vmem:[#allocation2 + $0x88] sm:$0xff]
  %v654 = vld [vmem:[#allocation2 + $0x90] sm:$0xff]
  %v655 = vld [vmem:[#allocation2 + $0x98] sm:$0xff]
  %v656 = vld [vmem:[#allocation2 + $0xa0] sm:$0xff]
  %v657 = vld [vmem:[#allocation2 + $0xa8] sm:$0xff]
  %v658 = vld [vmem:[#allocation2 + $0xb0] sm:$0xff]
  %v659 = vld [vmem:[#allocation2 + $0xb8] sm:$0xff]
  %v660 = vld [vmem:[#allocation2 + $0xc0] sm:$0xff]
  %v661 = vld [vmem:[#allocation2 + $0xc8] sm:$0xff]
  %v662 = vld [vmem:[#allocation2 + $0xd0] sm:$0xff]
  %v663 = vld [vmem:[#allocation2 + $0xd8] sm:$0xff]
  %v664 = vld [vmem:[#allocation2 + $0xe0] sm:$0xff]
  %v665 = vld [vmem:[#allocation2 + $0xe8] sm:$0xff]
  %v666 = vld [vmem:[#allocation2 + $0xf0] sm:$0xff]
  %v667 = vld [vmem:[#allocation2 + $0xf8] sm:$0xff]
  %668 = vmatprep.subr.bf16.mxu0 %v637
  %669 = vmatpush1.bf16.msra.mxu0 %v636
  %670 = vmatprep.subr.bf16.mxu0 %v641
  %671 = vmatpush1.bf16.msra.mxu0 %v640
  %672 = vmatprep.subr.bf16.mxu0 %v645
  %673 = vmatpush1.bf16.msra.mxu0 %v644
  %674 = vmatprep.subr.bf16.mxu0 %v649
  %675 = vmatpush1.bf16.msra.mxu0 %v648
  %676 = vmatprep.subr.bf16.mxu0 %v653
  %677 = vmatpush1.bf16.msra.mxu0 %v652
  %678 = vmatprep.subr.bf16.mxu0 %v657
  %679 = vmatpush1.bf16.msra.mxu0 %v656
  %680 = vmatprep.subr.bf16.mxu0 %v661
  %681 = vmatpush1.bf16.msra.mxu0 %v660
  %682 = vmatprep.subr.bf16.mxu0 %v665
  %683 = vmatpush1.bf16.msra.mxu0 %v664
  %684 = vmatprep.subr.bf16.mxu0 0
  %685 = vmatpush1.bf16.msra.mxu0 0
  %686 = vmatprep.subr.bf16.mxu0 0
  %687 = vmatpush1.bf16.msra.mxu0 0
  %688 = vmatprep.subr.bf16.mxu0 0
  %689 = vmatpush1.bf16.msra.mxu0 0
  %690 = vmatprep.subr.bf16.mxu0 0
  %691 = vmatpush1.bf16.msra.mxu0 0
  %692 = vmatprep.subr.bf16.mxu0 0
  %693 = vmatpush1.bf16.msra.mxu0 0
  %694 = vmatprep.subr.bf16.mxu0 0
  %695 = vmatpush1.bf16.msra.mxu0 0
  %696 = vmatprep.subr.bf16.mxu0 0
  %697 = vmatpush1.bf16.msra.mxu0 0
  %698 = vmatprep.subr.bf16.mxu0 0
  %699 = vmatpush1.bf16.msra.mxu0 0
  %700 = vmatprep.mubr.bf16.mxu0 0
  %701 = vmatmul.mubr.bf16.gmra.mrb[0].mxu0 %v635
  %v702 = vpop.f32.mrb[0].mxu0
  %v703 = vadd.f32 0.0, %v702
  %v704 = vpop.f32.mrb[0].mxu0
  %v705 = vadd.f32 0.0, %v704
  %v706 = vpop.f32.mrb[0].mxu0
  %v707 = vpop.f32.mrb[0].mxu0
  %708 = vdwg.mxu0
  %709 = vmatprep.subr.bf16.mxu0 %v639
  %710 = vmatpush1.bf16.msra.mxu0 %v638
  %711 = vmatprep.subr.bf16.mxu0 %v643
  %712 = vmatpush1.bf16.msra.mxu0 %v642
  %713 = vmatprep.subr.bf16.mxu0 %v647
  %714 = vmatpush1.bf16.msra.mxu0 %v646
  %715 = vmatprep.subr.bf16.mxu0 %v651
  %716 = vmatpush1.bf16.msra.mxu0 %v650
  %717 = vmatprep.subr.bf16.mxu0 %v655
  %718 = vmatpush1.bf16.msra.mxu0 %v654
  %719 = vmatprep.subr.bf16.mxu0 %v659
  %720 = vmatpush1.bf16.msra.mxu0 %v658
  %721 = vmatprep.subr.bf16.mxu0 %v663
  %722 = vmatpush1.bf16.msra.mxu0 %v662
  %723 = vmatprep.subr.bf16.mxu0 %v667
  %724 = vmatpush1.bf16.msra.mxu0 %v666
  %725 = vmatprep.subr.bf16.mxu0 0
  %726 = vmatpush1.bf16.msra.mxu0 0
  %727 = vmatprep.subr.bf16.mxu0 0
  %728 = vmatpush1.bf16.msra.mxu0 0
  %729 = vmatprep.subr.bf16.mxu0 0
  %730 = vmatpush1.bf16.msra.mxu0 0
  %731 = vmatprep.subr.bf16.mxu0 0
  %732 = vmatpush1.bf16.msra.mxu0 0
  %733 = vmatprep.subr.bf16.mxu0 0
  %734 = vmatpush1.bf16.msra.mxu0 0
  %735 = vmatprep.subr.bf16.mxu0 0
  %736 = vmatpush1.bf16.msra.mxu0 0
  %737 = vmatprep.subr.bf16.mxu0 0
  %738 = vmatpush1.bf16.msra.mxu0 0
  %739 = vmatprep.subr.bf16.mxu0 0
  %740 = vmatpush1.bf16.msra.mxu0 0
  %741 = vmatprep.mubr.bf16.mxu0 0
  %742 = vmatmul.mubr.bf16.gmra.mrb[0].mxu0 %v635
  %v743 = vpop.f32.mrb[0].mxu0
  %v744 = vadd.f32 0.0, %v743
  %v745 = vpop.f32.mrb[0].mxu0
  %v746 = vadd.f32 0.0, %v745
  %v747 = vpop.f32.mrb[0].mxu0
  %v748 = vpop.f32.mrb[0].mxu0
  %749 = vdwg.mxu0
  %v750 = vadd.f32 %v631, %v703
  %v751 = vadd.f32 %v632, %v705
  %v752 = vadd.f32 %v633, %v744
  %v753 = vadd.f32 %v634, %v746
  %v754 = vxor.u32 %v750, 2147483648
  %v755 = vmul.f32 %v754, 1.442695
  %v756 = vpow.pop %v755
  %v757 = vadd.f32 %v756, 1.0
  %v758 = vrcp.pop %v757
  %v759 = vmul.f32 1.0, %v758
  %v760 = vxor.u32 %v751, 2147483648
  %v761 = vmul.f32 %v760, 1.442695
  %v762 = vpow.pop %v761
  %v763 = vadd.f32 %v762, 1.0
  %v764 = vrcp.pop %v763
  %v765 = vmul.f32 1.0, %v764
  %v766 = vtanh.pop %v752
  %v767 = vxor.u32 %v753, 2147483648
  %v768 = vmul.f32 %v767, 1.442695
  %v769 = vpow.pop %v768
  %v770 = vadd.f32 %v769, 1.0
  %v771 = vrcp.pop %v770
  %v772 = vmul.f32 1.0, %v771
  %v773 = vmul.f32 %v765, %v623
  %v774 = vmul.f32 %v759, %v766
  %v775 = vadd.f32 %v773, %v774
  %v776 = vtanh.pop %v775
  %v777 = vmul.f32 %v772, %v776
  %s778 = scalar_lea.vmem %s2, 16
  %779 = vst [vmem:[%s778] sm:$0xff] %v777
  %s780 = scalar_lea.vmem %s0, 48
  %v781 = vld [vmem:[%s780] sm:$0xff]
  %v782 = vld [vmem:[%s780 + $0x8] sm:$0xff]
  %v783 = vunpack.c.l.bf16 %v781
  %v784 = vunpack.c.h.bf16 %v781
  %v785 = vunpack.c.l.bf16 %v782
  %v786 = vunpack.c.h.bf16 %v782
  %v787 = vpack.c.bf16 %v777, %v777
  %v788 = vld [vmem:[#allocation2] sm:$0xff]
  %v789 = vld [vmem:[#allocation2 + $0x8] sm:$0xff]
  %v790 = vld [vmem:[#allocation2 + $0x10] sm:$0xff]
  %v791 = vld [vmem:[#allocation2 + $0x18] sm:$0xff]
  %v792 = vld [vmem:[#allocation2 + $0x20] sm:$0xff]
  %v793 = vld [vmem:[#allocation2 + $0x28] sm:$0xff]
  %v794 = vld [vmem:[#allocation2 + $0x30] sm:$0xff]
  %v795 = vld [vmem:[#allocation2 + $0x38] sm:$0xff]
  %v796 = vld [vmem:[#allocation2 + $0x40] sm:$0xff]
  %v797 = vld [vmem:[#allocation2 + $0x48] sm:$0xff]
  %v798 = vld [vmem:[#allocation2 + $0x50] sm:$0xff]
  %v799 = vld [vmem:[#allocation2 + $0x58] sm:$0xff]
  %v800 = vld [vmem:[#allocation2 + $0x60] sm:$0xff]
  %v801 = vld [vmem:[#allocation2 + $0x68] sm:$0xff]
  %v802 = vld [vmem:[#allocation2 + $0x70] sm:$0xff]
  %v803 = vld [vmem:[#allocation2 + $0x78] sm:$0xff]
  %v804 = vld [vmem:[#allocation2 + $0x80] sm:$0xff]
  %v805 = vld [vmem:[#allocation2 + $0x88] sm:$0xff]
  %v806 = vld [vmem:[#allocation2 + $0x90] sm:$0xff]
  %v807 = vld [vmem:[#allocation2 + $0x98] sm:$0xff]
  %v808 = vld [vmem:[#allocation2 + $0xa0] sm:$0xff]
  %v809 = vld [vmem:[#allocation2 + $0xa8] sm:$0xff]
  %v810 = vld [vmem:[#allocation2 + $0xb0] sm:$0xff]
  %v811 = vld [vmem:[#allocation2 + $0xb8] sm:$0xff]
  %v812 = vld [vmem:[#allocation2 + $0xc0] sm:$0xff]
  %v813 = vld [vmem:[#allocation2 + $0xc8] sm:$0xff]
  %v814 = vld [vmem:[#allocation2 + $0xd0] sm:$0xff]
  %v815 = vld [vmem:[#allocation2 + $0xd8] sm:$0xff]
  %v816 = vld [vmem:[#allocation2 + $0xe0] sm:$0xff]
  %v817 = vld [vmem:[#allocation2 + $0xe8] sm:$0xff]
  %v818 = vld [vmem:[#allocation2 + $0xf0] sm:$0xff]
  %v819 = vld [vmem:[#allocation2 + $0xf8] sm:$0xff]
  %820 = vmatprep.subr.bf16.mxu0 %v789
  %821 = vmatpush1.bf16.msra.mxu0 %v788
  %822 = vmatprep.subr.bf16.mxu0 %v793
  %823 = vmatpush1.bf16.msra.mxu0 %v792
  %824 = vmatprep.subr.bf16.mxu0 %v797
  %825 = vmatpush1.bf16.msra.mxu0 %v796
  %826 = vmatprep.subr.bf16.mxu0 %v801
  %827 = vmatpush1.bf16.msra.mxu0 %v800
  %828 = vmatprep.subr.bf16.mxu0 %v805
  %829 = vmatpush1.bf16.msra.mxu0 %v804
  %830 = vmatprep.subr.bf16.mxu0 %v809
  %831 = vmatpush1.bf16.msra.mxu0 %v808
  %832 = vmatprep.subr.bf16.mxu0 %v813
  %833 = vmatpush1.bf16.msra.mxu0 %v812
  %834 = vmatprep.subr.bf16.mxu0 %v817
  %835 = vmatpush1.bf16.msra.mxu0 %v816
  %836 = vmatprep.subr.bf16.mxu0 0
  %837 = vmatpush1.bf16.msra.mxu0 0
  %838 = vmatprep.subr.bf16.mxu0 0
  %839 = vmatpush1.bf16.msra.mxu0 0
  %840 = vmatprep.subr.bf16.mxu0 0
  %841 = vmatpush1.bf16.msra.mxu0 0
  %842 = vmatprep.subr.bf16.mxu0 0
  %843 = vmatpush1.bf16.msra.mxu0 0
  %844 = vmatprep.subr.bf16.mxu0 0
  %845 = vmatpush1.bf16.msra.mxu0 0
  %846 = vmatprep.subr.bf16.mxu0 0
  %847 = vmatpush1.bf16.msra.mxu0 0
  %848 = vmatprep.subr.bf16.mxu0 0
  %849 = vmatpush1.bf16.msra.mxu0 0
  %850 = vmatprep.subr.bf16.mxu0 0
  %851 = vmatpush1.bf16.msra.mxu0 0
  %852 = vmatprep.mubr.bf16.mxu0 0
  %853 = vmatmul.mubr.bf16.gmra.mrb[0].mxu0 %v787
  %v854 = vpop.f32.mrb[0].mxu0
  %v855 = vadd.f32 0.0, %v854
  %v856 = vpop.f32.mrb[0].mxu0
  %v857 = vadd.f32 0.0, %v856
  %v858 = vpop.f32.mrb[0].mxu0
  %v859 = vpop.f32.mrb[0].mxu0
  %860 = vdwg.mxu0
  %861 = vmatprep.subr.bf16.mxu0 %v791
  %862 = vmatpush1.bf16.msra.mxu0 %v790
  %863 = vmatprep.subr.bf16.mxu0 %v795
  %864 = vmatpush1.bf16.msra.mxu0 %v794
  %865 = vmatprep.subr.bf16.mxu0 %v799
  %866 = vmatpush1.bf16.msra.mxu0 %v798
  %867 = vmatprep.subr.bf16.mxu0 %v803
  %868 = vmatpush1.bf16.msra.mxu0 %v802
  %869 = vmatprep.subr.bf16.mxu0 %v807
  %870 = vmatpush1.bf16.msra.mxu0 %v806
  %871 = vmatprep.subr.bf16.mxu0 %v811
  %872 = vmatpush1.bf16.msra.mxu0 %v810
  %873 = vmatprep.subr.bf16.mxu0 %v815
  %874 = vmatpush1.bf16.msra.mxu0 %v814
  %875 = vmatprep.subr.bf16.mxu0 %v819
  %876 = vmatpush1.bf16.msra.mxu0 %v818
  %877 = vmatprep.subr.bf16.mxu0 0
  %878 = vmatpush1.bf16.msra.mxu0 0
  %879 = vmatprep.subr.bf16.mxu0 0
  %880 = vmatpush1.bf16.msra.mxu0 0
  %881 = vmatprep.subr.bf16.mxu0 0
  %882 = vmatpush1.bf16.msra.mxu0 0
  %883 = vmatprep.subr.bf16.mxu0 0
  %884 = vmatpush1.bf16.msra.mxu0 0
  %885 = vmatprep.subr.bf16.mxu0 0
  %886 = vmatpush1.bf16.msra.mxu0 0
  %887 = vmatprep.subr.bf16.mxu0 0
  %888 = vmatpush1.bf16.msra.mxu0 0
  %889 = vmatprep.subr.bf16.mxu0 0
  %890 = vmatpush1.bf16.msra.mxu0 0
  %891 = vmatprep.subr.bf16.mxu0 0
  %892 = vmatpush1.bf16.msra.mxu0 0
  %893 = vmatprep.mubr.bf16.mxu0 0
  %894 = vmatmul.mubr.bf16.gmra.mrb[0].mxu0 %v787
  %v895 = vpop.f32.mrb[0].mxu0
  %v896 = vadd.f32 0.0, %v895
  %v897 = vpop.f32.mrb[0].mxu0
  %v898 = vadd.f32 0.0, %v897
  %v899 = vpop.f32.mrb[0].mxu0
  %v900 = vpop.f32.mrb[0].mxu0
  %901 = vdwg.mxu0
  %v902 = vadd.f32 %v783, %v855
  %v903 = vadd.f32 %v784, %v857
  %v904 = vadd.f32 %v785, %v896
  %v905 = vadd.f32 %v786, %v898
  %v906 = vxor.u32 %v902, 2147483648
  %v907 = vmul.f32 %v906, 1.442695
  %v908 = vpow.pop %v907
  %v909 = vadd.f32 %v908, 1.0
  %v910 = vrcp.pop %v909
  %v911 = vmul.f32 1.0, %v910
  %v912 = vxor.u32 %v903, 2147483648
  %v913 = vmul.f32 %v912, 1.442695
  %v914 = vpow.pop %v913
  %v915 = vadd.f32 %v914, 1.0
  %v916 = vrcp.pop %v915
  %v917 = vmul.f32 1.0, %v916
  %v918 = vtanh.pop %v904
  %v919 = vxor.u32 %v905, 2147483648
  %v920 = vmul.f32 %v919, 1.442695
  %v921 = vpow.pop %v920
  %v922 = vadd.f32 %v921, 1.0
  %v923 = vrcp.pop %v922
  %v924 = vmul.f32 1.0, %v923
  %v925 = vmul.f32 %v917, %v775
  %v926 = vmul.f32 %v911, %v918
  %v927 = vadd.f32 %v925, %v926
  %v928 = vtanh.pop %v927
  %v929 = vmul.f32 %v924, %v928
  %s930 = scalar_lea.vmem %s2, 24
  %931 = vst [vmem:[%s930] sm:$0xff] %v929
  %s932 = scalar_lea.vmem %s0, 64
  %v933 = vld [vmem:[%s932] sm:$0xff]
  %v934 = vld [vmem:[%s932 + $0x8] sm:$0xff]
  %v935 = vunpack.c.l.bf16 %v933
  %v936 = vunpack.c.h.bf16 %v933
  %v937 = vunpack.c.l.bf16 %v934
  %v938 = vunpack.c.h.bf16 %v934
  %v939 = vpack.c.bf16 %v929, %v929
  %v940 = vld [vmem:[#allocation2] sm:$0xff]
  %v941 = vld [vmem:[#allocation2 + $0x8] sm:$0xff]
  %v942 = vld [vmem:[#allocation2 + $0x10] sm:$0xff]
  %v943 = vld [vmem:[#allocation2 + $0x18] sm:$0xff]
  %v944 = vld [vmem:[#allocation2 + $0x20] sm:$0xff]
  %v945 = vld [vmem:[#allocation2 + $0x28] sm:$0xff]
  %v946 = vld [vmem:[#allocation2 + $0x30] sm:$0xff]
  %v947 = vld [vmem:[#allocation2 + $0x38] sm:$0xff]
  %v948 = vld [vmem:[#allocation2 + $0x40] sm:$0xff]
  %v949 = vld [vmem:[#allocation2 + $0x48] sm:$0xff]
  %v950 = vld [vmem:[#allocation2 + $0x50] sm:$0xff]
  %v951 = vld [vmem:[#allocation2 + $0x58] sm:$0xff]
  %v952 = vld [vmem:[#allocation2 + $0x60] sm:$0xff]
  %v953 = vld [vmem:[#allocation2 + $0x68] sm:$0xff]
  %v954 = vld [vmem:[#allocation2 + $0x70] sm:$0xff]
  %v955 = vld [vmem:[#allocation2 + $0x78] sm:$0xff]
  %v956 = vld [vmem:[#allocation2 + $0x80] sm:$0xff]
  %v957 = vld [vmem:[#allocation2 + $0x88] sm:$0xff]
  %v958 = vld [vmem:[#allocation2 + $0x90] sm:$0xff]
  %v959 = vld [vmem:[#allocation2 + $0x98] sm:$0xff]
  %v960 = vld [vmem:[#allocation2 + $0xa0] sm:$0xff]
  %v961 = vld [vmem:[#allocation2 + $0xa8] sm:$0xff]
  %v962 = vld [vmem:[#allocation2 + $0xb0] sm:$0xff]
  %v963 = vld [vmem:[#allocation2 + $0xb8] sm:$0xff]
  %v964 = vld [vmem:[#allocation2 + $0xc0] sm:$0xff]
  %v965 = vld [vmem:[#allocation2 + $0xc8] sm:$0xff]
  %v966 = vld [vmem:[#allocation2 + $0xd0] sm:$0xff]
  %v967 = vld [vmem:[#allocation2 + $0xd8] sm:$0xff]
  %v968 = vld [vmem:[#allocation2 + $0xe0] sm:$0xff]
  %v969 = vld [vmem:[#allocation2 + $0xe8] sm:$0xff]
  %v970 = vld [vmem:[#allocation2 + $0xf0] sm:$0xff]
  %v971 = vld [vmem:[#allocation2 + $0xf8] sm:$0xff]
  %972 = vmatprep.subr.bf16.mxu0 %v941
  %973 = vmatpush1.bf16.msra.mxu0 %v940
  %974 = vmatprep.subr.bf16.mxu0 %v945
  %975 = vmatpush1.bf16.msra.mxu0 %v944
  %976 = vmatprep.subr.bf16.mxu0 %v949
  %977 = vmatpush1.bf16.msra.mxu0 %v948
  %978 = vmatprep.subr.bf16.mxu0 %v953
  %979 = vmatpush1.bf16.msra.mxu0 %v952
  %980 = vmatprep.subr.bf16.mxu0 %v957
  %981 = vmatpush1.bf16.msra.mxu0 %v956
  %982 = vmatprep.subr.bf16.mxu0 %v961
  %983 = vmatpush1.bf16.msra.mxu0 %v960
  %984 = vmatprep.subr.bf16.mxu0 %v965
  %985 = vmatpush1.bf16.msra.mxu0 %v964
  %986 = vmatprep.subr.bf16.mxu0 %v969
  %987 = vmatpush1.bf16.msra.mxu0 %v968
  %988 = vmatprep.subr.bf16.mxu0 0
  %989 = vmatpush1.bf16.msra.mxu0 0
  %990 = vmatprep.subr.bf16.mxu0 0
  %991 = vmatpush1.bf16.msra.mxu0 0
  %992 = vmatprep.subr.bf16.mxu0 0
  %993 = vmatpush1.bf16.msra.mxu0 0
  %994 = vmatprep.subr.bf16.mxu0 0
  %995 = vmatpush1.bf16.msra.mxu0 0
  %996 = vmatprep.subr.bf16.mxu0 0
  %997 = vmatpush1.bf16.msra.mxu0 0
  %998 = vmatprep.subr.bf16.mxu0 0
  %999 = vmatpush1.bf16.msra.mxu0 0
  %1000 = vmatprep.subr.bf16.mxu0 0
  %1001 = vmatpush1.bf16.msra.mxu0 0
  %1002 = vmatprep.subr.bf16.mxu0 0
  %1003 = vmatpush1.bf16.msra.mxu0 0
  %1004 = vmatprep.mubr.bf16.mxu0 0
  %1005 = vmatmul.mubr.bf16.gmra.mrb[0].mxu0 %v939
  %v1006 = vpop.f32.mrb[0].mxu0
  %v1007 = vadd.f32 0.0, %v1006
  %v1008 = vpop.f32.mrb[0].mxu0
  %v1009 = vadd.f32 0.0, %v1008
  %v1010 = vpop.f32.mrb[0].mxu0
  %v1011 = vpop.f32.mrb[0].mxu0
  %1012 = vdwg.mxu0
  %1013 = vmatprep.subr.bf16.mxu0 %v943
  %1014 = vmatpush1.bf16.msra.mxu0 %v942
  %1015 = vmatprep.subr.bf16.mxu0 %v947
  %1016 = vmatpush1.bf16.msra.mxu0 %v946
  %1017 = vmatprep.subr.bf16.mxu0 %v951
  %1018 = vmatpush1.bf16.msra.mxu0 %v950
  %1019 = vmatprep.subr.bf16.mxu0 %v955
  %1020 = vmatpush1.bf16.msra.mxu0 %v954
  %1021 = vmatprep.subr.bf16.mxu0 %v959
  %1022 = vmatpush1.bf16.msra.mxu0 %v958
  %1023 = vmatprep.subr.bf16.mxu0 %v963
  %1024 = vmatpush1.bf16.msra.mxu0 %v962
  %1025 = vmatprep.subr.bf16.mxu0 %v967
  %1026 = vmatpush1.bf16.msra.mxu0 %v966
  %1027 = vmatprep.subr.bf16.mxu0 %v971
  %1028 = vmatpush1.bf16.msra.mxu0 %v970
  %1029 = vmatprep.subr.bf16.mxu0 0
  %1030 = vmatpush1.bf16.msra.mxu0 0
  %1031 = vmatprep.subr.bf16.mxu0 0
  %1032 = vmatpush1.bf16.msra.mxu0 0
  %1033 = vmatprep.subr.bf16.mxu0 0
  %1034 = vmatpush1.bf16.msra.mxu0 0
  %1035 = vmatprep.subr.bf16.mxu0 0
  %1036 = vmatpush1.bf16.msra.mxu0 0
  %1037 = vmatprep.subr.bf16.mxu0 0
  %1038 = vmatpush1.bf16.msra.mxu0 0
  %1039 = vmatprep.subr.bf16.mxu0 0
  %1040 = vmatpush1.bf16.msra.mxu0 0
  %1041 = vmatprep.subr.bf16.mxu0 0
  %1042 = vmatpush1.bf16.msra.mxu0 0
  %1043 = vmatprep.subr.bf16.mxu0 0
  %1044 = vmatpush1.bf16.msra.mxu0 0
  %1045 = vmatprep.mubr.bf16.mxu0 0
  %1046 = vmatmul.mubr.bf16.gmra.mrb[0].mxu0 %v939
  %v1047 = vpop.f32.mrb[0].mxu0
  %v1048 = vadd.f32 0.0, %v1047
  %v1049 = vpop.f32.mrb[0].mxu0
  %v1050 = vadd.f32 0.0, %v1049
  %v1051 = vpop.f32.mrb[0].mxu0
  %v1052 = vpop.f32.mrb[0].mxu0
  %1053 = vdwg.mxu0
  %v1054 = vadd.f32 %v935, %v1007
  %v1055 = vadd.f32 %v936, %v1009
  %v1056 = vadd.f32 %v937, %v1048
  %v1057 = vadd.f32 %v938, %v1050
  %v1058 = vxor.u32 %v1054, 2147483648
  %v1059 = vmul.f32 %v1058, 1.442695
  %v1060 = vpow.pop %v1059
  %v1061 = vadd.f32 %v1060, 1.0
  %v1062 = vrcp.pop %v1061
  %v1063 = vmul.f32 1.0, %v1062
  %v1064 = vxor.u32 %v1055, 2147483648
  %v1065 = vmul.f32 %v1064, 1.442695
  %v1066 = vpow.pop %v1065
  %v1067 = vadd.f32 %v1066, 1.0
  %v1068 = vrcp.pop %v1067
  %v1069 = vmul.f32 1.0, %v1068
  %v1070 = vtanh.pop %v1056
  %v1071 = vxor.u32 %v1057, 2147483648
  %v1072 = vmul.f32 %v1071, 1.442695
  %v1073 = vpow.pop %v1072
  %v1074 = vadd.f32 %v1073, 1.0
  %v1075 = vrcp.pop %v1074
  %v1076 = vmul.f32 1.0, %v1075
  %v1077 = vmul.f32 %v1069, %v927
  %v1078 = vmul.f32 %v1063, %v1070
  %v1079 = vadd.f32 %v1077, %v1078
  %v1080 = vtanh.pop %v1079
  %v1081 = vmul.f32 %v1076, %v1080
  %s1082 = scalar_lea.vmem %s2, 32
  %1083 = vst [vmem:[%s1082] sm:$0xff] %v1081
  %s1084 = scalar_lea.vmem %s0, 80
  %v1085 = vld [vmem:[%s1084] sm:$0xff]
  %v1086 = vld [vmem:[%s1084 + $0x8] sm:$0xff]
  %v1087 = vunpack.c.l.bf16 %v1085
  %v1088 = vunpack.c.h.bf16 %v1085
  %v1089 = vunpack.c.l.bf16 %v1086
  %v1090 = vunpack.c.h.bf16 %v1086
  %v1091 = vpack.c.bf16 %v1081, %v1081
  %v1092 = vld [vmem:[#allocation2] sm:$0xff]
  %v1093 = vld [vmem:[#allocation2 + $0x8] sm:$0xff]
  %v1094 = vld [vmem:[#allocation2 + $0x10] sm:$0xff]
  %v1095 = vld [vmem:[#allocation2 + $0x18] sm:$0xff]
  %v1096 = vld [vmem:[#allocation2 + $0x20] sm:$0xff]
  %v1097 = vld [vmem:[#allocation2 + $0x28] sm:$0xff]
  %v1098 = vld [vmem:[#allocation2 + $0x30] sm:$0xff]
  %v1099 = vld [vmem:[#allocation2 + $0x38] sm:$0xff]
  %v1100 = vld [vmem:[#allocation2 + $0x40] sm:$0xff]
  %v1101 = vld [vmem:[#allocation2 + $0x48] sm:$0xff]
  %v1102 = vld [vmem:[#allocation2 + $0x50] sm:$0xff]
  %v1103 = vld [vmem:[#allocation2 + $0x58] sm:$0xff]
  %v1104 = vld [vmem:[#allocation2 + $0x60] sm:$0xff]
  %v1105 = vld [vmem:[#allocation2 + $0x68] sm:$0xff]
  %v1106 = vld [vmem:[#allocation2 + $0x70] sm:$0xff]
  %v1107 = vld [vmem:[#allocation2 + $0x78] sm:$0xff]
  %v1108 = vld [vmem:[#allocation2 + $0x80] sm:$0xff]
  %v1109 = vld [vmem:[#allocation2 + $0x88] sm:$0xff]
  %v1110 = vld [vmem:[#allocation2 + $0x90] sm:$0xff]
  %v1111 = vld [vmem:[#allocation2 + $0x98] sm:$0xff]
  %v1112 = vld [vmem:[#allocation2 + $0xa0] sm:$0xff]
  %v1113 = vld [vmem:[#allocation2 + $0xa8] sm:$0xff]
  %v1114 = vld [vmem:[#allocation2 + $0xb0] sm:$0xff]
  %v1115 = vld [vmem:[#allocation2 + $0xb8] sm:$0xff]
  %v1116 = vld [vmem:[#allocation2 + $0xc0] sm:$0xff]
  %v1117 = vld [vmem:[#allocation2 + $0xc8] sm:$0xff]
  %v1118 = vld [vmem:[#allocation2 + $0xd0] sm:$0xff]
  %v1119 = vld [vmem:[#allocation2 + $0xd8] sm:$0xff]
  %v1120 = vld [vmem:[#allocation2 + $0xe0] sm:$0xff]
  %v1121 = vld [vmem:[#allocation2 + $0xe8] sm:$0xff]
  %v1122 = vld [vmem:[#allocation2 + $0xf0] sm:$0xff]
  %v1123 = vld [vmem:[#allocation2 + $0xf8] sm:$0xff]
  %1124 = vmatprep.subr.bf16.mxu0 %v1093
  %1125 = vmatpush1.bf16.msra.mxu0 %v1092
  %1126 = vmatprep.subr.bf16.mxu0 %v1097
  %1127 = vmatpush1.bf16.msra.mxu0 %v1096
  %1128 = vmatprep.subr.bf16.mxu0 %v1101
  %1129 = vmatpush1.bf16.msra.mxu0 %v1100
  %1130 = vmatprep.subr.bf16.mxu0 %v1105
  %1131 = vmatpush1.bf16.msra.mxu0 %v1104
  %1132 = vmatprep.subr.bf16.mxu0 %v1109
  %1133 = vmatpush1.bf16.msra.mxu0 %v1108
  %1134 = vmatprep.subr.bf16.mxu0 %v1113
  %1135 = vmatpush1.bf16.msra.mxu0 %v1112
  %1136 = vmatprep.subr.bf16.mxu0 %v1117
  %1137 = vmatpush1.bf16.msra.mxu0 %v1116
  %1138 = vmatprep.subr.bf16.mxu0 %v1121
  %1139 = vmatpush1.bf16.msra.mxu0 %v1120
  %1140 = vmatprep.subr.bf16.mxu0 0
  %1141 = vmatpush1.bf16.msra.mxu0 0
  %1142 = vmatprep.subr.bf16.mxu0 0
  %1143 = vmatpush1.bf16.msra.mxu0 0
  %1144 = vmatprep.subr.bf16.mxu0 0
  %1145 = vmatpush1.bf16.msra.mxu0 0
  %1146 = vmatprep.subr.bf16.mxu0 0
  %1147 = vmatpush1.bf16.msra.mxu0 0
  %1148 = vmatprep.subr.bf16.mxu0 0
  %1149 = vmatpush1.bf16.msra.mxu0 0
  %1150 = vmatprep.subr.bf16.mxu0 0
  %1151 = vmatpush1.bf16.msra.mxu0 0
  %1152 = vmatprep.subr.bf16.mxu0 0
  %1153 = vmatpush1.bf16.msra.mxu0 0
  %1154 = vmatprep.subr.bf16.mxu0 0
  %1155 = vmatpush1.bf16.msra.mxu0 0
  %1156 = vmatprep.mubr.bf16.mxu0 0
  %1157 = vmatmul.mubr.bf16.gmra.mrb[0].mxu0 %v1091
  %v1158 = vpop.f32.mrb[0].mxu0
  %v1159 = vadd.f32 0.0, %v1158
  %v1160 = vpop.f32.mrb[0].mxu0
  %v1161 = vadd.f32 0.0, %v1160
  %v1162 = vpop.f32.mrb[0].mxu0
  %v1163 = vpop.f32.mrb[0].mxu0
  %1164 = vdwg.mxu0
  %1165 = vmatprep.subr.bf16.mxu0 %v1095
  %1166 = vmatpush1.bf16.msra.mxu0 %v1094
  %1167 = vmatprep.subr.bf16.mxu0 %v1099
  %1168 = vmatpush1.bf16.msra.mxu0 %v1098
  %1169 = vmatprep.subr.bf16.mxu0 %v1103
  %1170 = vmatpush1.bf16.msra.mxu0 %v1102
  %1171 = vmatprep.subr.bf16.mxu0 %v1107
  %1172 = vmatpush1.bf16.msra.mxu0 %v1106
  %1173 = vmatprep.subr.bf16.mxu0 %v1111
  %1174 = vmatpush1.bf16.msra.mxu0 %v1110
  %1175 = vmatprep.subr.bf16.mxu0 %v1115
  %1176 = vmatpush1.bf16.msra.mxu0 %v1114
  %1177 = vmatprep.subr.bf16.mxu0 %v1119
  %1178 = vmatpush1.bf16.msra.mxu0 %v1118
  %1179 = vmatprep.subr.bf16.mxu0 %v1123
  %1180 = vmatpush1.bf16.msra.mxu0 %v1122
  %1181 = vmatprep.subr.bf16.mxu0 0
  %1182 = vmatpush1.bf16.msra.mxu0 0
  %1183 = vmatprep.subr.bf16.mxu0 0
  %1184 = vmatpush1.bf16.msra.mxu0 0
  %1185 = vmatprep.subr.bf16.mxu0 0
  %1186 = vmatpush1.bf16.msra.mxu0 0
  %1187 = vmatprep.subr.bf16.mxu0 0
  %1188 = vmatpush1.bf16.msra.mxu0 0
  %1189 = vmatprep.subr.bf16.mxu0 0
  %1190 = vmatpush1.bf16.msra.mxu0 0
  %1191 = vmatprep.subr.bf16.mxu0 0
  %1192 = vmatpush1.bf16.msra.mxu0 0
  %1193 = vmatprep.subr.bf16.mxu0 0
  %1194 = vmatpush1.bf16.msra.mxu0 0
  %1195 = vmatprep.subr.bf16.mxu0 0
  %1196 = vmatpush1.bf16.msra.mxu0 0
  %1197 = vmatprep.mubr.bf16.mxu0 0
  %1198 = vmatmul.mubr.bf16.gmra.mrb[0].mxu0 %v1091
  %v1199 = vpop.f32.mrb[0].mxu0
  %v1200 = vadd.f32 0.0, %v1199
  %v1201 = vpop.f32.mrb[0].mxu0
  %v1202 = vadd.f32 0.0, %v1201
  %v1203 = vpop.f32.mrb[0].mxu0
  %v1204 = vpop.f32.mrb[0].mxu0
  %1205 = vdwg.mxu0
  %v1206 = vadd.f32 %v1087, %v1159
  %v1207 = vadd.f32 %v1088, %v1161
  %v1208 = vadd.f32 %v1089, %v1200
  %v1209 = vadd.f32 %v1090, %v1202
  %v1210 = vxor.u32 %v1206, 2147483648
  %v1211 = vmul.f32 %v1210, 1.442695
  %v1212 = vpow.pop %v1211
  %v1213 = vadd.f32 %v1212, 1.0
  %v1214 = vrcp.pop %v1213
  %v1215 = vmul.f32 1.0, %v1214
  %v1216 = vxor.u32 %v1207, 2147483648
  %v1217 = vmul.f32 %v1216, 1.442695
  %v1218 = vpow.pop %v1217
  %v1219 = vadd.f32 %v1218, 1.0
  %v1220 = vrcp.pop %v1219
  %v1221 = vmul.f32 1.0, %v1220
  %v1222 = vtanh.pop %v1208
  %v1223 = vxor.u32 %v1209, 2147483648
  %v1224 = vmul.f32 %v1223, 1.442695
  %v1225 = vpow.pop %v1224
  %v1226 = vadd.f32 %v1225, 1.0
  %v1227 = vrcp.pop %v1226
  %v1228 = vmul.f32 1.0, %v1227
  %v1229 = vmul.f32 %v1221, %v1079
  %v1230 = vmul.f32 %v1215, %v1222
  %v1231 = vadd.f32 %v1229, %v1230
  %v1232 = vtanh.pop %v1231
  %v1233 = vmul.f32 %v1228, %v1232
  %s1234 = scalar_lea.vmem %s2, 40
  %1235 = vst [vmem:[%s1234] sm:$0xff] %v1233
  %s1236 = scalar_lea.vmem %s0, 96
  %v1237 = vld [vmem:[%s1236] sm:$0xff]
  %v1238 = vld [vmem:[%s1236 + $0x8] sm:$0xff]
  %v1239 = vunpack.c.l.bf16 %v1237
  %v1240 = vunpack.c.h.bf16 %v1237
  %v1241 = vunpack.c.l.bf16 %v1238
  %v1242 = vunpack.c.h.bf16 %v1238
  %v1243 = vpack.c.bf16 %v1233, %v1233
  %v1244 = vld [vmem:[#allocation2] sm:$0xff]
  %v1245 = vld [vmem:[#allocation2 + $0x8] sm:$0xff]
  %v1246 = vld [vmem:[#allocation2 + $0x10] sm:$0xff]
  %v1247 = vld [vmem:[#allocation2 + $0x18] sm:$0xff]
  %v1248 = vld [vmem:[#allocation2 + $0x20] sm:$0xff]
  %v1249 = vld [vmem:[#allocation2 + $0x28] sm:$0xff]
  %v1250 = vld [vmem:[#allocation2 + $0x30] sm:$0xff]
  %v1251 = vld [vmem:[#allocation2 + $0x38] sm:$0xff]
  %v1252 = vld [vmem:[#allocation2 + $0x40] sm:$0xff]
  %v1253 = vld [vmem:[#allocation2 + $0x48] sm:$0xff]
  %v1254 = vld [vmem:[#allocation2 + $0x50] sm:$0xff]
  %v1255 = vld [vmem:[#allocation2 + $0x58] sm:$0xff]
  %v1256 = vld [vmem:[#allocation2 + $0x60] sm:$0xff]
  %v1257 = vld [vmem:[#allocation2 + $0x68] sm:$0xff]
  %v1258 = vld [vmem:[#allocation2 + $0x70] sm:$0xff]
  %v1259 = vld [vmem:[#allocation2 + $0x78] sm:$0xff]
  %v1260 = vld [vmem:[#allocation2 + $0x80] sm:$0xff]
  %v1261 = vld [vmem:[#allocation2 + $0x88] sm:$0xff]
  %v1262 = vld [vmem:[#allocation2 + $0x90] sm:$0xff]
  %v1263 = vld [vmem:[#allocation2 + $0x98] sm:$0xff]
  %v1264 = vld [vmem:[#allocation2 + $0xa0] sm:$0xff]
  %v1265 = vld [vmem:[#allocation2 + $0xa8] sm:$0xff]
  %v1266 = vld [vmem:[#allocation2 + $0xb0] sm:$0xff]
  %v1267 = vld [vmem:[#allocation2 + $0xb8] sm:$0xff]
  %v1268 = vld [vmem:[#allocation2 + $0xc0] sm:$0xff]
  %v1269 = vld [vmem:[#allocation2 + $0xc8] sm:$0xff]
  %v1270 = vld [vmem:[#allocation2 + $0xd0] sm:$0xff]
  %v1271 = vld [vmem:[#allocation2 + $0xd8] sm:$0xff]
  %v1272 = vld [vmem:[#allocation2 + $0xe0] sm:$0xff]
  %v1273 = vld [vmem:[#allocation2 + $0xe8] sm:$0xff]
  %v1274 = vld [vmem:[#allocation2 + $0xf0] sm:$0xff]
  %v1275 = vld [vmem:[#allocation2 + $0xf8] sm:$0xff]
  %1276 = vmatprep.subr.bf16.mxu0 %v1245
  %1277 = vmatpush1.bf16.msra.mxu0 %v1244
  %1278 = vmatprep.subr.bf16.mxu0 %v1249
  %1279 = vmatpush1.bf16.msra.mxu0 %v1248
  %1280 = vmatprep.subr.bf16.mxu0 %v1253
  %1281 = vmatpush1.bf16.msra.mxu0 %v1252
  %1282 = vmatprep.subr.bf16.mxu0 %v1257
  %1283 = vmatpush1.bf16.msra.mxu0 %v1256
  %1284 = vmatprep.subr.bf16.mxu0 %v1261
  %1285 = vmatpush1.bf16.msra.mxu0 %v1260
  %1286 = vmatprep.subr.bf16.mxu0 %v1265
  %1287 = vmatpush1.bf16.msra.mxu0 %v1264
  %1288 = vmatprep.subr.bf16.mxu0 %v1269
  %1289 = vmatpush1.bf16.msra.mxu0 %v1268
  %1290 = vmatprep.subr.bf16.mxu0 %v1273
  %1291 = vmatpush1.bf16.msra.mxu0 %v1272
  %1292 = vmatprep.subr.bf16.mxu0 0
  %1293 = vmatpush1.bf16.msra.mxu0 0
  %1294 = vmatprep.subr.bf16.mxu0 0
  %1295 = vmatpush1.bf16.msra.mxu0 0
  %1296 = vmatprep.subr.bf16.mxu0 0
  %1297 = vmatpush1.bf16.msra.mxu0 0
  %1298 = vmatprep.subr.bf16.mxu0 0
  %1299 = vmatpush1.bf16.msra.mxu0 0
  %1300 = vmatprep.subr.bf16.mxu0 0
  %1301 = vmatpush1.bf16.msra.mxu0 0
  %1302 = vmatprep.subr.bf16.mxu0 0
  %1303 = vmatpush1.bf16.msra.mxu0 0
  %1304 = vmatprep.subr.bf16.mxu0 0
  %1305 = vmatpush1.bf16.msra.mxu0 0
  %1306 = vmatprep.subr.bf16.mxu0 0
  %1307 = vmatpush1.bf16.msra.mxu0 0
  %1308 = vmatprep.mubr.bf16.mxu0 0
  %1309 = vmatmul.mubr.bf16.gmra.mrb[0].mxu0 %v1243
  %v1310 = vpop.f32.mrb[0].mxu0
  %v1311 = vadd.f32 0.0, %v1310
  %v1312 = vpop.f32.mrb[0].mxu0
  %v1313 = vadd.f32 0.0, %v1312
  %v1314 = vpop.f32.mrb[0].mxu0
  %v1315 = vpop.f32.mrb[0].mxu0
  %1316 = vdwg.mxu0
  %1317 = vmatprep.subr.bf16.mxu0 %v1247
  %1318 = vmatpush1.bf16.msra.mxu0 %v1246
  %1319 = vmatprep.subr.bf16.mxu0 %v1251
  %1320 = vmatpush1.bf16.msra.mxu0 %v1250
  %1321 = vmatprep.subr.bf16.mxu0 %v1255
  %1322 = vmatpush1.bf16.msra.mxu0 %v1254
  %1323 = vmatprep.subr.bf16.mxu0 %v1259
  %1324 = vmatpush1.bf16.msra.mxu0 %v1258
  %1325 = vmatprep.subr.bf16.mxu0 %v1263
  %1326 = vmatpush1.bf16.msra.mxu0 %v1262
  %1327 = vmatprep.subr.bf16.mxu0 %v1267
  %1328 = vmatpush1.bf16.msra.mxu0 %v1266
  %1329 = vmatprep.subr.bf16.mxu0 %v1271
  %1330 = vmatpush1.bf16.msra.mxu0 %v1270
  %1331 = vmatprep.subr.bf16.mxu0 %v1275
  %1332 = vmatpush1.bf16.msra.mxu0 %v1274
  %1333 = vmatprep.subr.bf16.mxu0 0
  %1334 = vmatpush1.bf16.msra.mxu0 0
  %1335 = vmatprep.subr.bf16.mxu0 0
  %1336 = vmatpush1.bf16.msra.mxu0 0
  %1337 = vmatprep.subr.bf16.mxu0 0
  %1338 = vmatpush1.bf16.msra.mxu0 0
  %1339 = vmatprep.subr.bf16.mxu0 0
  %1340 = vmatpush1.bf16.msra.mxu0 0
  %1341 = vmatprep.subr.bf16.mxu0 0
  %1342 = vmatpush1.bf16.msra.mxu0 0
  %1343 = vmatprep.subr.bf16.mxu0 0
  %1344 = vmatpush1.bf16.msra.mxu0 0
  %1345 = vmatprep.subr.bf16.mxu0 0
  %1346 = vmatpush1.bf16.msra.mxu0 0
  %1347 = vmatprep.subr.bf16.mxu0 0
  %1348 = vmatpush1.bf16.msra.mxu0 0
  %1349 = vmatprep.mubr.bf16.mxu0 0
  %1350 = vmatmul.mubr.bf16.gmra.mrb[0].mxu0 %v1243
  %v1351 = vpop.f32.mrb[0].mxu0
  %v1352 = vadd.f32 0.0, %v1351
  %v1353 = vpop.f32.mrb[0].mxu0
  %v1354 = vadd.f32 0.0, %v1353
  %v1355 = vpop.f32.mrb[0].mxu0
  %v1356 = vpop.f32.mrb[0].mxu0
  %1357 = vdwg.mxu0
  %v1358 = vadd.f32 %v1239, %v1311
  %v1359 = vadd.f32 %v1240, %v1313
  %v1360 = vadd.f32 %v1241, %v1352
  %v1361 = vadd.f32 %v1242, %v1354
  %v1362 = vxor.u32 %v1358, 2147483648
  %v1363 = vmul.f32 %v1362, 1.442695
  %v1364 = vpow.pop %v1363
  %v1365 = vadd.f32 %v1364, 1.0
  %v1366 = vrcp.pop %v1365
  %v1367 = vmul.f32 1.0, %v1366
  %v1368 = vxor.u32 %v1359, 2147483648
  %v1369 = vmul.f32 %v1368, 1.442695
  %v1370 = vpow.pop %v1369
  %v1371 = vadd.f32 %v1370, 1.0
  %v1372 = vrcp.pop %v1371
  %v1373 = vmul.f32 1.0, %v1372
  %v1374 = vtanh.pop %v1360
  %v1375 = vxor.u32 %v1361, 2147483648
  %v1376 = vmul.f32 %v1375, 1.442695
  %v1377 = vpow.pop %v1376
  %v1378 = vadd.f32 %v1377, 1.0
  %v1379 = vrcp.pop %v1378
  %v1380 = vmul.f32 1.0, %v1379
  %v1381 = vmul.f32 %v1373, %v1231
  %v1382 = vmul.f32 %v1367, %v1374
  %v1383 = vadd.f32 %v1381, %v1382
  %v1384 = vtanh.pop %v1383
  %v1385 = vmul.f32 %v1380, %v1384
  %s1386 = scalar_lea.vmem %s2, 48
  %1387 = vst [vmem:[%s1386] sm:$0xff] %v1385
  %s1388 = scalar_lea.vmem %s0, 112
  %v1389 = vld [vmem:[%s1388] sm:$0xff]
  %v1390 = vld [vmem:[%s1388 + $0x8] sm:$0xff]
  %v1391 = vunpack.c.l.bf16 %v1389
  %v1392 = vunpack.c.h.bf16 %v1389
  %v1393 = vunpack.c.l.bf16 %v1390
  %v1394 = vunpack.c.h.bf16 %v1390
  %v1395 = vpack.c.bf16 %v1385, %v1385
  %v1396 = vld [vmem:[#allocation2] sm:$0xff]
  %v1397 = vld [vmem:[#allocation2 + $0x8] sm:$0xff]
  %v1398 = vld [vmem:[#allocation2 + $0x10] sm:$0xff]
  %v1399 = vld [vmem:[#allocation2 + $0x18] sm:$0xff]
  %v1400 = vld [vmem:[#allocation2 + $0x20] sm:$0xff]
  %v1401 = vld [vmem:[#allocation2 + $0x28] sm:$0xff]
  %v1402 = vld [vmem:[#allocation2 + $0x30] sm:$0xff]
  %v1403 = vld [vmem:[#allocation2 + $0x38] sm:$0xff]
  %v1404 = vld [vmem:[#allocation2 + $0x40] sm:$0xff]
  %v1405 = vld [vmem:[#allocation2 + $0x48] sm:$0xff]
  %v1406 = vld [vmem:[#allocation2 + $0x50] sm:$0xff]
  %v1407 = vld [vmem:[#allocation2 + $0x58] sm:$0xff]
  %v1408 = vld [vmem:[#allocation2 + $0x60] sm:$0xff]
  %v1409 = vld [vmem:[#allocation2 + $0x68] sm:$0xff]
  %v1410 = vld [vmem:[#allocation2 + $0x70] sm:$0xff]
  %v1411 = vld [vmem:[#allocation2 + $0x78] sm:$0xff]
  %v1412 = vld [vmem:[#allocation2 + $0x80] sm:$0xff]
  %v1413 = vld [vmem:[#allocation2 + $0x88] sm:$0xff]
  %v1414 = vld [vmem:[#allocation2 + $0x90] sm:$0xff]
  %v1415 = vld [vmem:[#allocation2 + $0x98] sm:$0xff]
  %v1416 = vld [vmem:[#allocation2 + $0xa0] sm:$0xff]
  %v1417 = vld [vmem:[#allocation2 + $0xa8] sm:$0xff]
  %v1418 = vld [vmem:[#allocation2 + $0xb0] sm:$0xff]
  %v1419 = vld [vmem:[#allocation2 + $0xb8] sm:$0xff]
  %v1420 = vld [vmem:[#allocation2 + $0xc0] sm:$0xff]
  %v1421 = vld [vmem:[#allocation2 + $0xc8] sm:$0xff]
  %v1422 = vld [vmem:[#allocation2 + $0xd0] sm:$0xff]
  %v1423 = vld [vmem:[#allocation2 + $0xd8] sm:$0xff]
  %v1424 = vld [vmem:[#allocation2 + $0xe0] sm:$0xff]
  %v1425 = vld [vmem:[#allocation2 + $0xe8] sm:$0xff]
  %v1426 = vld [vmem:[#allocation2 + $0xf0] sm:$0xff]
  %v1427 = vld [vmem:[#allocation2 + $0xf8] sm:$0xff]
  %1428 = vmatprep.subr.bf16.mxu0 %v1397
  %1429 = vmatpush1.bf16.msra.mxu0 %v1396
  %1430 = vmatprep.subr.bf16.mxu0 %v1401
  %1431 = vmatpush1.bf16.msra.mxu0 %v1400
  %1432 = vmatprep.subr.bf16.mxu0 %v1405
  %1433 = vmatpush1.bf16.msra.mxu0 %v1404
  %1434 = vmatprep.subr.bf16.mxu0 %v1409
  %1435 = vmatpush1.bf16.msra.mxu0 %v1408
  %1436 = vmatprep.subr.bf16.mxu0 %v1413
  %1437 = vmatpush1.bf16.msra.mxu0 %v1412
  %1438 = vmatprep.subr.bf16.mxu0 %v1417
  %1439 = vmatpush1.bf16.msra.mxu0 %v1416
  %1440 = vmatprep.subr.bf16.mxu0 %v1421
  %1441 = vmatpush1.bf16.msra.mxu0 %v1420
  %1442 = vmatprep.subr.bf16.mxu0 %v1425
  %1443 = vmatpush1.bf16.msra.mxu0 %v1424
  %1444 = vmatprep.subr.bf16.mxu0 0
  %1445 = vmatpush1.bf16.msra.mxu0 0
  %1446 = vmatprep.subr.bf16.mxu0 0
  %1447 = vmatpush1.bf16.msra.mxu0 0
  %1448 = vmatprep.subr.bf16.mxu0 0
  %1449 = vmatpush1.bf16.msra.mxu0 0
  %1450 = vmatprep.subr.bf16.mxu0 0
  %1451 = vmatpush1.bf16.msra.mxu0 0
  %1452 = vmatprep.subr.bf16.mxu0 0
  %1453 = vmatpush1.bf16.msra.mxu0 0
  %1454 = vmatprep.subr.bf16.mxu0 0
  %1455 = vmatpush1.bf16.msra.mxu0 0
  %1456 = vmatprep.subr.bf16.mxu0 0
  %1457 = vmatpush1.bf16.msra.mxu0 0
  %1458 = vmatprep.subr.bf16.mxu0 0
  %1459 = vmatpush1.bf16.msra.mxu0 0
  %1460 = vmatprep.mubr.bf16.mxu0 0
  %1461 = vmatmul.mubr.bf16.gmra.mrb[0].mxu0 %v1395
  %v1462 = vpop.f32.mrb[0].mxu0
  %v1463 = vadd.f32 0.0, %v1462
  %v1464 = vpop.f32.mrb[0].mxu0
  %v1465 = vadd.f32 0.0, %v1464
  %v1466 = vpop.f32.mrb[0].mxu0
  %v1467 = vpop.f32.mrb[0].mxu0
  %1468 = vdwg.mxu0
  %1469 = vmatprep.subr.bf16.mxu0 %v1399
  %1470 = vmatpush1.bf16.msra.mxu0 %v1398
  %1471 = vmatprep.subr.bf16.mxu0 %v1403
  %1472 = vmatpush1.bf16.msra.mxu0 %v1402
  %1473 = vmatprep.subr.bf16.mxu0 %v1407
  %1474 = vmatpush1.bf16.msra.mxu0 %v1406
  %1475 = vmatprep.subr.bf16.mxu0 %v1411
  %1476 = vmatpush1.bf16.msra.mxu0 %v1410
  %1477 = vmatprep.subr.bf16.mxu0 %v1415
  %1478 = vmatpush1.bf16.msra.mxu0 %v1414
  %1479 = vmatprep.subr.bf16.mxu0 %v1419
  %1480 = vmatpush1.bf16.msra.mxu0 %v1418
  %1481 = vmatprep.subr.bf16.mxu0 %v1423
  %1482 = vmatpush1.bf16.msra.mxu0 %v1422
  %1483 = vmatprep.subr.bf16.mxu0 %v1427
  %1484 = vmatpush1.bf16.msra.mxu0 %v1426
  %1485 = vmatprep.subr.bf16.mxu0 0
  %1486 = vmatpush1.bf16.msra.mxu0 0
  %1487 = vmatprep.subr.bf16.mxu0 0
  %1488 = vmatpush1.bf16.msra.mxu0 0
  %1489 = vmatprep.subr.bf16.mxu0 0
  %1490 = vmatpush1.bf16.msra.mxu0 0
  %1491 = vmatprep.subr.bf16.mxu0 0
  %1492 = vmatpush1.bf16.msra.mxu0 0
  %1493 = vmatprep.subr.bf16.mxu0 0
  %1494 = vmatpush1.bf16.msra.mxu0 0
  %1495 = vmatprep.subr.bf16.mxu0 0
  %1496 = vmatpush1.bf16.msra.mxu0 0
  %1497 = vmatprep.subr.bf16.mxu0 0
  %1498 = vmatpush1.bf16.msra.mxu0 0
  %1499 = vmatprep.subr.bf16.mxu0 0
  %1500 = vmatpush1.bf16.msra.mxu0 0
  %1501 = vmatprep.mubr.bf16.mxu0 0
  %1502 = vmatmul.mubr.bf16.gmra.mrb[0].mxu0 %v1395
  %v1503 = vpop.f32.mrb[0].mxu0
  %v1504 = vadd.f32 0.0, %v1503
  %v1505 = vpop.f32.mrb[0].mxu0
  %v1506 = vadd.f32 0.0, %v1505
  %v1507 = vpop.f32.mrb[0].mxu0
  %v1508 = vpop.f32.mrb[0].mxu0
  %1509 = vdwg.mxu0
  %v1510 = vadd.f32 %v1391, %v1463
  %v1511 = vadd.f32 %v1392, %v1465
  %v1512 = vadd.f32 %v1393, %v1504
  %v1513 = vadd.f32 %v1394, %v1506
  %v1514 = vxor.u32 %v1510, 2147483648
  %v1515 = vmul.f32 %v1514, 1.442695
  %v1516 = vpow.pop %v1515
  %v1517 = vadd.f32 %v1516, 1.0
  %v1518 = vrcp.pop %v1517
  %v1519 = vmul.f32 1.0, %v1518
  %v1520 = vxor.u32 %v1511, 2147483648
  %v1521 = vmul.f32 %v1520, 1.442695
  %v1522 = vpow.pop %v1521
  %v1523 = vadd.f32 %v1522, 1.0
  %v1524 = vrcp.pop %v1523
  %v1525 = vmul.f32 1.0, %v1524
  %v1526 = vtanh.pop %v1512
  %v1527 = vxor.u32 %v1513, 2147483648
  %v1528 = vmul.f32 %v1527, 1.442695
  %v1529 = vpow.pop %v1528
  %v1530 = vadd.f32 %v1529, 1.0
  %v1531 = vrcp.pop %v1530
  %v1532 = vmul.f32 1.0, %v1531
  %v1533 = vmul.f32 %v1525, %v1383
  %v1534 = vmul.f32 %v1519, %v1526
  %v1535 = vadd.f32 %v1533, %v1534
  %v1536 = vtanh.pop %v1535
  %v1537 = vmul.f32 %v1532, %v1536
  %s1538 = scalar_lea.vmem %s2, 56
  %1539 = vst [vmem:[%s1538] sm:$0xff] %v1537
  %s1540 = scalar_lea.vmem %s0, 128
  %v1541 = vld [vmem:[%s1540] sm:$0xff]
  %v1542 = vld [vmem:[%s1540 + $0x8] sm:$0xff]
  %v1543 = vunpack.c.l.bf16 %v1541
  %v1544 = vunpack.c.h.bf16 %v1541
  %v1545 = vunpack.c.l.bf16 %v1542
  %v1546 = vunpack.c.h.bf16 %v1542
  %v1547 = vpack.c.bf16 %v1537, %v1537
  %v1548 = vld [vmem:[#allocation2] sm:$0xff]
  %v1549 = vld [vmem:[#allocation2 + $0x8] sm:$0xff]
  %v1550 = vld [vmem:[#allocation2 + $0x10] sm:$0xff]
  %v1551 = vld [vmem:[#allocation2 + $0x18] sm:$0xff]
  %v1552 = vld [vmem:[#allocation2 + $0x20] sm:$0xff]
  %v1553 = vld [vmem:[#allocation2 + $0x28] sm:$0xff]
  %v1554 = vld [vmem:[#allocation2 + $0x30] sm:$0xff]
  %v1555 = vld [vmem:[#allocation2 + $0x38] sm:$0xff]
  %v1556 = vld [vmem:[#allocation2 + $0x40] sm:$0xff]
  %v1557 = vld [vmem:[#allocation2 + $0x48] sm:$0xff]
  %v1558 = vld [vmem:[#allocation2 + $0x50] sm:$0xff]
  %v1559 = vld [vmem:[#allocation2 + $0x58] sm:$0xff]
  %v1560 = vld [vmem:[#allocation2 + $0x60] sm:$0xff]
  %v1561 = vld [vmem:[#allocation2 + $0x68] sm:$0xff]
  %v1562 = vld [vmem:[#allocation2 + $0x70] sm:$0xff]
  %v1563 = vld [vmem:[#allocation2 + $0x78] sm:$0xff]
  %v1564 = vld [vmem:[#allocation2 + $0x80] sm:$0xff]
  %v1565 = vld [vmem:[#allocation2 + $0x88] sm:$0xff]
  %v1566 = vld [vmem:[#allocation2 + $0x90] sm:$0xff]
  %v1567 = vld [vmem:[#allocation2 + $0x98] sm:$0xff]
  %v1568 = vld [vmem:[#allocation2 + $0xa0] sm:$0xff]
  %v1569 = vld [vmem:[#allocation2 + $0xa8] sm:$0xff]
  %v1570 = vld [vmem:[#allocation2 + $0xb0] sm:$0xff]
  %v1571 = vld [vmem:[#allocation2 + $0xb8] sm:$0xff]
  %v1572 = vld [vmem:[#allocation2 + $0xc0] sm:$0xff]
  %v1573 = vld [vmem:[#allocation2 + $0xc8] sm:$0xff]
  %v1574 = vld [vmem:[#allocation2 + $0xd0] sm:$0xff]
  %v1575 = vld [vmem:[#allocation2 + $0xd8] sm:$0xff]
  %v1576 = vld [vmem:[#allocation2 + $0xe0] sm:$0xff]
  %v1577 = vld [vmem:[#allocation2 + $0xe8] sm:$0xff]
  %v1578 = vld [vmem:[#allocation2 + $0xf0] sm:$0xff]
  %v1579 = vld [vmem:[#allocation2 + $0xf8] sm:$0xff]
  %1580 = vmatprep.subr.bf16.mxu0 %v1549
  %1581 = vmatpush1.bf16.msra.mxu0 %v1548
  %1582 = vmatprep.subr.bf16.mxu0 %v1553
  %1583 = vmatpush1.bf16.msra.mxu0 %v1552
  %1584 = vmatprep.subr.bf16.mxu0 %v1557
  %1585 = vmatpush1.bf16.msra.mxu0 %v1556
  %1586 = vmatprep.subr.bf16.mxu0 %v1561
  %1587 = vmatpush1.bf16.msra.mxu0 %v1560
  %1588 = vmatprep.subr.bf16.mxu0 %v1565
  %1589 = vmatpush1.bf16.msra.mxu0 %v1564
  %1590 = vmatprep.subr.bf16.mxu0 %v1569
  %1591 = vmatpush1.bf16.msra.mxu0 %v1568
  %1592 = vmatprep.subr.bf16.mxu0 %v1573
  %1593 = vmatpush1.bf16.msra.mxu0 %v1572
  %1594 = vmatprep.subr.bf16.mxu0 %v1577
  %1595 = vmatpush1.bf16.msra.mxu0 %v1576
  %1596 = vmatprep.subr.bf16.mxu0 0
  %1597 = vmatpush1.bf16.msra.mxu0 0
  %1598 = vmatprep.subr.bf16.mxu0 0
  %1599 = vmatpush1.bf16.msra.mxu0 0
  %1600 = vmatprep.subr.bf16.mxu0 0
  %1601 = vmatpush1.bf16.msra.mxu0 0
  %1602 = vmatprep.subr.bf16.mxu0 0
  %1603 = vmatpush1.bf16.msra.mxu0 0
  %1604 = vmatprep.subr.bf16.mxu0 0
  %1605 = vmatpush1.bf16.msra.mxu0 0
  %1606 = vmatprep.subr.bf16.mxu0 0
  %1607 = vmatpush1.bf16.msra.mxu0 0
  %1608 = vmatprep.subr.bf16.mxu0 0
  %1609 = vmatpush1.bf16.msra.mxu0 0
  %1610 = vmatprep.subr.bf16.mxu0 0
  %1611 = vmatpush1.bf16.msra.mxu0 0
  %1612 = vmatprep.mubr.bf16.mxu0 0
  %1613 = vmatmul.mubr.bf16.gmra.mrb[0].mxu0 %v1547
  %v1614 = vpop.f32.mrb[0].mxu0
  %v1615 = vadd.f32 0.0, %v1614
  %v1616 = vpop.f32.mrb[0].mxu0
  %v1617 = vadd.f32 0.0, %v1616
  %v1618 = vpop.f32.mrb[0].mxu0
  %v1619 = vpop.f32.mrb[0].mxu0
  %1620 = vdwg.mxu0
  %1621 = vmatprep.subr.bf16.mxu0 %v1551
  %1622 = vmatpush1.bf16.msra.mxu0 %v1550
  %1623 = vmatprep.subr.bf16.mxu0 %v1555
  %1624 = vmatpush1.bf16.msra.mxu0 %v1554
  %1625 = vmatprep.subr.bf16.mxu0 %v1559
  %1626 = vmatpush1.bf16.msra.mxu0 %v1558
  %1627 = vmatprep.subr.bf16.mxu0 %v1563
  %1628 = vmatpush1.bf16.msra.mxu0 %v1562
  %1629 = vmatprep.subr.bf16.mxu0 %v1567
  %1630 = vmatpush1.bf16.msra.mxu0 %v1566
  %1631 = vmatprep.subr.bf16.mxu0 %v1571
  %1632 = vmatpush1.bf16.msra.mxu0 %v1570
  %1633 = vmatprep.subr.bf16.mxu0 %v1575
  %1634 = vmatpush1.bf16.msra.mxu0 %v1574
  %1635 = vmatprep.subr.bf16.mxu0 %v1579
  %1636 = vmatpush1.bf16.msra.mxu0 %v1578
  %1637 = vmatprep.subr.bf16.mxu0 0
  %1638 = vmatpush1.bf16.msra.mxu0 0
  %1639 = vmatprep.subr.bf16.mxu0 0
  %1640 = vmatpush1.bf16.msra.mxu0 0
  %1641 = vmatprep.subr.bf16.mxu0 0
  %1642 = vmatpush1.bf16.msra.mxu0 0
  %1643 = vmatprep.subr.bf16.mxu0 0
  %1644 = vmatpush1.bf16.msra.mxu0 0
  %1645 = vmatprep.subr.bf16.mxu0 0
  %1646 = vmatpush1.bf16.msra.mxu0 0
  %1647 = vmatprep.subr.bf16.mxu0 0
  %1648 = vmatpush1.bf16.msra.mxu0 0
  %1649 = vmatprep.subr.bf16.mxu0 0
  %1650 = vmatpush1.bf16.msra.mxu0 0
  %1651 = vmatprep.subr.bf16.mxu0 0
  %1652 = vmatpush1.bf16.msra.mxu0 0
  %1653 = vmatprep.mubr.bf16.mxu0 0
  %1654 = vmatmul.mubr.bf16.gmra.mrb[0].mxu0 %v1547
  %v1655 = vpop.f32.mrb[0].mxu0
  %v1656 = vadd.f32 0.0, %v1655
  %v1657 = vpop.f32.mrb[0].mxu0
  %v1658 = vadd.f32 0.0, %v1657
  %v1659 = vpop.f32.mrb[0].mxu0
  %v1660 = vpop.f32.mrb[0].mxu0
  %1661 = vdwg.mxu0
  %v1662 = vadd.f32 %v1543, %v1615
  %v1663 = vadd.f32 %v1544, %v1617
  %v1664 = vadd.f32 %v1545, %v1656
  %v1665 = vadd.f32 %v1546, %v1658
  %v1666 = vxor.u32 %v1662, 2147483648
  %v1667 = vmul.f32 %v1666, 1.442695
  %v1668 = vpow.pop %v1667
  %v1669 = vadd.f32 %v1668, 1.0
  %v1670 = vrcp.pop %v1669
  %v1671 = vmul.f32 1.0, %v1670
  %v1672 = vxor.u32 %v1663, 2147483648
  %v1673 = vmul.f32 %v1672, 1.442695
  %v1674 = vpow.pop %v1673
  %v1675 = vadd.f32 %v1674, 1.0
  %v1676 = vrcp.pop %v1675
  %v1677 = vmul.f32 1.0, %v1676
  %v1678 = vtanh.pop %v1664
  %v1679 = vxor.u32 %v1665, 2147483648
  %v1680 = vmul.f32 %v1679, 1.442695
  %v1681 = vpow.pop %v1680
  %v1682 = vadd.f32 %v1681, 1.0
  %v1683 = vrcp.pop %v1682
  %v1684 = vmul.f32 1.0, %v1683
  %v1685 = vmul.f32 %v1677, %v1535
  %v1686 = vmul.f32 %v1671, %v1678
  %v1687 = vadd.f32 %v1685, %v1686
  %v1688 = vtanh.pop %v1687
  %v1689 = vmul.f32 %v1684, %v1688
  %s1690 = scalar_lea.vmem %s2, 64
  %1691 = vst [vmem:[%s1690] sm:$0xff] %v1689
  %s1692 = scalar_lea.vmem %s0, 144
  %v1693 = vld [vmem:[%s1692] sm:$0xff]
  %v1694 = vld [vmem:[%s1692 + $0x8] sm:$0xff]
  %v1695 = vunpack.c.l.bf16 %v1693
  %v1696 = vunpack.c.h.bf16 %v1693
  %v1697 = vunpack.c.l.bf16 %v1694
  %v1698 = vunpack.c.h.bf16 %v1694
  %v1699 = vpack.c.bf16 %v1689, %v1689
  %v1700 = vld [vmem:[#allocation2] sm:$0xff]
  %v1701 = vld [vmem:[#allocation2 + $0x8] sm:$0xff]
  %v1702 = vld [vmem:[#allocation2 + $0x10] sm:$0xff]
  %v1703 = vld [vmem:[#allocation2 + $0x18] sm:$0xff]
  %v1704 = vld [vmem:[#allocation2 + $0x20] sm:$0xff]
  %v1705 = vld [vmem:[#allocation2 + $0x28] sm:$0xff]
  %v1706 = vld [vmem:[#allocation2 + $0x30] sm:$0xff]
  %v1707 = vld [vmem:[#allocation2 + $0x38] sm:$0xff]
  %v1708 = vld [vmem:[#allocation2 + $0x40] sm:$0xff]
  %v1709 = vld [vmem:[#allocation2 + $0x48] sm:$0xff]
  %v1710 = vld [vmem:[#allocation2 + $0x50] sm:$0xff]
  %v1711 = vld [vmem:[#allocation2 + $0x58] sm:$0xff]
  %v1712 = vld [vmem:[#allocation2 + $0x60] sm:$0xff]
  %v1713 = vld [vmem:[#allocation2 + $0x68] sm:$0xff]
  %v1714 = vld [vmem:[#allocation2 + $0x70] sm:$0xff]
  %v1715 = vld [vmem:[#allocation2 + $0x78] sm:$0xff]
  %v1716 = vld [vmem:[#allocation2 + $0x80] sm:$0xff]
  %v1717 = vld [vmem:[#allocation2 + $0x88] sm:$0xff]
  %v1718 = vld [vmem:[#allocation2 + $0x90] sm:$0xff]
  %v1719 = vld [vmem:[#allocation2 + $0x98] sm:$0xff]
  %v1720 = vld [vmem:[#allocation2 + $0xa0] sm:$0xff]
  %v1721 = vld [vmem:[#allocation2 + $0xa8] sm:$0xff]
  %v1722 = vld [vmem:[#allocation2 + $0xb0] sm:$0xff]
  %v1723 = vld [vmem:[#allocation2 + $0xb8] sm:$0xff]
  %v1724 = vld [vmem:[#allocation2 + $0xc0] sm:$0xff]
  %v1725 = vld [vmem:[#allocation2 + $0xc8] sm:$0xff]
  %v1726 = vld [vmem:[#allocation2 + $0xd0] sm:$0xff]
  %v1727 = vld [vmem:[#allocation2 + $0xd8] sm:$0xff]
  %v1728 = vld [vmem:[#allocation2 + $0xe0] sm:$0xff]
  %v1729 = vld [vmem:[#allocation2 + $0xe8] sm:$0xff]
  %v1730 = vld [vmem:[#allocation2 + $0xf0] sm:$0xff]
  %v1731 = vld [vmem:[#allocation2 + $0xf8] sm:$0xff]
  %1732 = vmatprep.subr.bf16.mxu0 %v1701
  %1733 = vmatpush1.bf16.msra.mxu0 %v1700
  %1734 = vmatprep.subr.bf16.mxu0 %v1705
  %1735 = vmatpush1.bf16.msra.mxu0 %v1704
  %1736 = vmatprep.subr.bf16.mxu0 %v1709
  %1737 = vmatpush1.bf16.msra.mxu0 %v1708
  %1738 = vmatprep.subr.bf16.mxu0 %v1713
  %1739 = vmatpush1.bf16.msra.mxu0 %v1712
  %1740 = vmatprep.subr.bf16.mxu0 %v1717
  %1741 = vmatpush1.bf16.msra.mxu0 %v1716
  %1742 = vmatprep.subr.bf16.mxu0 %v1721
  %1743 = vmatpush1.bf16.msra.mxu0 %v1720
  %1744 = vmatprep.subr.bf16.mxu0 %v1725
  %1745 = vmatpush1.bf16.msra.mxu0 %v1724
  %1746 = vmatprep.subr.bf16.mxu0 %v1729
  %1747 = vmatpush1.bf16.msra.mxu0 %v1728
  %1748 = vmatprep.subr.bf16.mxu0 0
  %1749 = vmatpush1.bf16.msra.mxu0 0
  %1750 = vmatprep.subr.bf16.mxu0 0
  %1751 = vmatpush1.bf16.msra.mxu0 0
  %1752 = vmatprep.subr.bf16.mxu0 0
  %1753 = vmatpush1.bf16.msra.mxu0 0
  %1754 = vmatprep.subr.bf16.mxu0 0
  %1755 = vmatpush1.bf16.msra.mxu0 0
  %1756 = vmatprep.subr.bf16.mxu0 0
  %1757 = vmatpush1.bf16.msra.mxu0 0
  %1758 = vmatprep.subr.bf16.mxu0 0
  %1759 = vmatpush1.bf16.msra.mxu0 0
  %1760 = vmatprep.subr.bf16.mxu0 0
  %1761 = vmatpush1.bf16.msra.mxu0 0
  %1762 = vmatprep.subr.bf16.mxu0 0
  %1763 = vmatpush1.bf16.msra.mxu0 0
  %1764 = vmatprep.mubr.bf16.mxu0 0
  %1765 = vmatmul.mubr.bf16.gmra.mrb[0].mxu0 %v1699
  %v1766 = vpop.f32.mrb[0].mxu0
  %v1767 = vadd.f32 0.0, %v1766
  %v1768 = vpop.f32.mrb[0].mxu0
  %v1769 = vadd.f32 0.0, %v1768
  %v1770 = vpop.f32.mrb[0].mxu0
  %v1771 = vpop.f32.mrb[0].mxu0
  %1772 = vdwg.mxu0
  %1773 = vmatprep.subr.bf16.mxu0 %v1703
  %1774 = vmatpush1.bf16.msra.mxu0 %v1702
  %1775 = vmatprep.subr.bf16.mxu0 %v1707
  %1776 = vmatpush1.bf16.msra.mxu0 %v1706
  %1777 = vmatprep.subr.bf16.mxu0 %v1711
  %1778 = vmatpush1.bf16.msra.mxu0 %v1710
  %1779 = vmatprep.subr.bf16.mxu0 %v1715
  %1780 = vmatpush1.bf16.msra.mxu0 %v1714
  %1781 = vmatprep.subr.bf16.mxu0 %v1719
  %1782 = vmatpush1.bf16.msra.mxu0 %v1718
  %1783 = vmatprep.subr.bf16.mxu0 %v1723
  %1784 = vmatpush1.bf16.msra.mxu0 %v1722
  %1785 = vmatprep.subr.bf16.mxu0 %v1727
  %1786 = vmatpush1.bf16.msra.mxu0 %v1726
  %1787 = vmatprep.subr.bf16.mxu0 %v1731
  %1788 = vmatpush1.bf16.msra.mxu0 %v1730
  %1789 = vmatprep.subr.bf16.mxu0 0
  %1790 = vmatpush1.bf16.msra.mxu0 0
  %1791 = vmatprep.subr.bf16.mxu0 0
  %1792 = vmatpush1.bf16.msra.mxu0 0
  %1793 = vmatprep.subr.bf16.mxu0 0
  %1794 = vmatpush1.bf16.msra.mxu0 0
  %1795 = vmatprep.subr.bf16.mxu0 0
  %1796 = vmatpush1.bf16.msra.mxu0 0
  %1797 = vmatprep.subr.bf16.mxu0 0
  %1798 = vmatpush1.bf16.msra.mxu0 0
  %1799 = vmatprep.subr.bf16.mxu0 0
  %1800 = vmatpush1.bf16.msra.mxu0 0
  %1801 = vmatprep.subr.bf16.mxu0 0
  %1802 = vmatpush1.bf16.msra.mxu0 0
  %1803 = vmatprep.subr.bf16.mxu0 0
  %1804 = vmatpush1.bf16.msra.mxu0 0
  %1805 = vmatprep.mubr.bf16.mxu0 0
  %1806 = vmatmul.mubr.bf16.gmra.mrb[0].mxu0 %v1699
  %v1807 = vpop.f32.mrb[0].mxu0
  %v1808 = vadd.f32 0.0, %v1807
  %v1809 = vpop.f32.mrb[0].mxu0
  %v1810 = vadd.f32 0.0, %v1809
  %v1811 = vpop.f32.mrb[0].mxu0
  %v1812 = vpop.f32.mrb[0].mxu0
  %1813 = vdwg.mxu0
  %v1814 = vadd.f32 %v1695, %v1767
  %v1815 = vadd.f32 %v1696, %v1769
  %v1816 = vadd.f32 %v1697, %v1808
  %v1817 = vadd.f32 %v1698, %v1810
  %v1818 = vxor.u32 %v1814, 2147483648
  %v1819 = vmul.f32 %v1818, 1.442695
  %v1820 = vpow.pop %v1819
  %v1821 = vadd.f32 %v1820, 1.0
  %v1822 = vrcp.pop %v1821
  %v1823 = vmul.f32 1.0, %v1822
  %v1824 = vxor.u32 %v1815, 2147483648
  %v1825 = vmul.f32 %v1824, 1.442695
  %v1826 = vpow.pop %v1825
  %v1827 = vadd.f32 %v1826, 1.0
  %v1828 = vrcp.pop %v1827
  %v1829 = vmul.f32 1.0, %v1828
  %v1830 = vtanh.pop %v1816
  %v1831 = vxor.u32 %v1817, 2147483648
  %v1832 = vmul.f32 %v1831, 1.442695
  %v1833 = vpow.pop %v1832
  %v1834 = vadd.f32 %v1833, 1.0
  %v1835 = vrcp.pop %v1834
  %v1836 = vmul.f32 1.0, %v1835
  %v1837 = vmul.f32 %v1829, %v1687
  %v1838 = vmul.f32 %v1823, %v1830
  %v1839 = vadd.f32 %v1837, %v1838
  %v1840 = vtanh.pop %v1839
  %v1841 = vmul.f32 %v1836, %v1840
  %s1842 = scalar_lea.vmem %s2, 72
  %1843 = vst [vmem:[%s1842] sm:$0xff] %v1841
  %s1844 = scalar_lea.vmem %s0, 160
  %v1845 = vld [vmem:[%s1844] sm:$0xff]
  %v1846 = vld [vmem:[%s1844 + $0x8] sm:$0xff]
  %v1847 = vunpack.c.l.bf16 %v1845
  %v1848 = vunpack.c.h.bf16 %v1845
  %v1849 = vunpack.c.l.bf16 %v1846
  %v1850 = vunpack.c.h.bf16 %v1846
  %v1851 = vpack.c.bf16 %v1841, %v1841
  %v1852 = vld [vmem:[#allocation2] sm:$0xff]
  %v1853 = vld [vmem:[#allocation2 + $0x8] sm:$0xff]
  %v1854 = vld [vmem:[#allocation2 + $0x10] sm:$0xff]
  %v1855 = vld [vmem:[#allocation2 + $0x18] sm:$0xff]
  %v1856 = vld [vmem:[#allocation2 + $0x20] sm:$0xff]
  %v1857 = vld [vmem:[#allocation2 + $0x28] sm:$0xff]
  %v1858 = vld [vmem:[#allocation2 + $0x30] sm:$0xff]
  %v1859 = vld [vmem:[#allocation2 + $0x38] sm:$0xff]
  %v1860 = vld [vmem:[#allocation2 + $0x40] sm:$0xff]
  %v1861 = vld [vmem:[#allocation2 + $0x48] sm:$0xff]
  %v1862 = vld [vmem:[#allocation2 + $0x50] sm:$0xff]
  %v1863 = vld [vmem:[#allocation2 + $0x58] sm:$0xff]
  %v1864 = vld [vmem:[#allocation2 + $0x60] sm:$0xff]
  %v1865 = vld [vmem:[#allocation2 + $0x68] sm:$0xff]
  %v1866 = vld [vmem:[#allocation2 + $0x70] sm:$0xff]
  %v1867 = vld [vmem:[#allocation2 + $0x78] sm:$0xff]
  %v1868 = vld [vmem:[#allocation2 + $0x80] sm:$0xff]
  %v1869 = vld [vmem:[#allocation2 + $0x88] sm:$0xff]
  %v1870 = vld [vmem:[#allocation2 + $0x90] sm:$0xff]
  %v1871 = vld [vmem:[#allocation2 + $0x98] sm:$0xff]
  %v1872 = vld [vmem:[#allocation2 + $0xa0] sm:$0xff]
  %v1873 = vld [vmem:[#allocation2 + $0xa8] sm:$0xff]
  %v1874 = vld [vmem:[#allocation2 + $0xb0] sm:$0xff]
  %v1875 = vld [vmem:[#allocation2 + $0xb8] sm:$0xff]
  %v1876 = vld [vmem:[#allocation2 + $0xc0] sm:$0xff]
  %v1877 = vld [vmem:[#allocation2 + $0xc8] sm:$0xff]
  %v1878 = vld [vmem:[#allocation2 + $0xd0] sm:$0xff]
  %v1879 = vld [vmem:[#allocation2 + $0xd8] sm:$0xff]
  %v1880 = vld [vmem:[#allocation2 + $0xe0] sm:$0xff]
  %v1881 = vld [vmem:[#allocation2 + $0xe8] sm:$0xff]
  %v1882 = vld [vmem:[#allocation2 + $0xf0] sm:$0xff]
  %v1883 = vld [vmem:[#allocation2 + $0xf8] sm:$0xff]
  %1884 = vmatprep.subr.bf16.mxu0 %v1853
  %1885 = vmatpush1.bf16.msra.mxu0 %v1852
  %1886 = vmatprep.subr.bf16.mxu0 %v1857
  %1887 = vmatpush1.bf16.msra.mxu0 %v1856
  %1888 = vmatprep.subr.bf16.mxu0 %v1861
  %1889 = vmatpush1.bf16.msra.mxu0 %v1860
  %1890 = vmatprep.subr.bf16.mxu0 %v1865
  %1891 = vmatpush1.bf16.msra.mxu0 %v1864
  %1892 = vmatprep.subr.bf16.mxu0 %v1869
  %1893 = vmatpush1.bf16.msra.mxu0 %v1868
  %1894 = vmatprep.subr.bf16.mxu0 %v1873
  %1895 = vmatpush1.bf16.msra.mxu0 %v1872
  %1896 = vmatprep.subr.bf16.mxu0 %v1877
  %1897 = vmatpush1.bf16.msra.mxu0 %v1876
  %1898 = vmatprep.subr.bf16.mxu0 %v1881
  %1899 = vmatpush1.bf16.msra.mxu0 %v1880
  %1900 = vmatprep.subr.bf16.mxu0 0
  %1901 = vmatpush1.bf16.msra.mxu0 0
  %1902 = vmatprep.subr.bf16.mxu0 0
  %1903 = vmatpush1.bf16.msra.mxu0 0
  %1904 = vmatprep.subr.bf16.mxu0 0
  %1905 = vmatpush1.bf16.msra.mxu0 0
  %1906 = vmatprep.subr.bf16.mxu0 0
  %1907 = vmatpush1.bf16.msra.mxu0 0
  %1908 = vmatprep.subr.bf16.mxu0 0
  %1909 = vmatpush1.bf16.msra.mxu0 0
  %1910 = vmatprep.subr.bf16.mxu0 0
  %1911 = vmatpush1.bf16.msra.mxu0 0
  %1912 = vmatprep.subr.bf16.mxu0 0
  %1913 = vmatpush1.bf16.msra.mxu0 0
  %1914 = vmatprep.subr.bf16.mxu0 0
  %1915 = vmatpush1.bf16.msra.mxu0 0
  %1916 = vmatprep.mubr.bf16.mxu0 0
  %1917 = vmatmul.mubr.bf16.gmra.mrb[0].mxu0 %v1851
  %v1918 = vpop.f32.mrb[0].mxu0
  %v1919 = vadd.f32 0.0, %v1918
  %v1920 = vpop.f32.mrb[0].mxu0
  %v1921 = vadd.f32 0.0, %v1920
  %v1922 = vpop.f32.mrb[0].mxu0
  %v1923 = vpop.f32.mrb[0].mxu0
  %1924 = vdwg.mxu0
  %1925 = vmatprep.subr.bf16.mxu0 %v1855
  %1926 = vmatpush1.bf16.msra.mxu0 %v1854
  %1927 = vmatprep.subr.bf16.mxu0 %v1859
  %1928 = vmatpush1.bf16.msra.mxu0 %v1858
  %1929 = vmatprep.subr.bf16.mxu0 %v1863
  %1930 = vmatpush1.bf16.msra.mxu0 %v1862
  %1931 = vmatprep.subr.bf16.mxu0 %v1867
  %1932 = vmatpush1.bf16.msra.mxu0 %v1866
  %1933 = vmatprep.subr.bf16.mxu0 %v1871
  %1934 = vmatpush1.bf16.msra.mxu0 %v1870
  %1935 = vmatprep.subr.bf16.mxu0 %v1875
  %1936 = vmatpush1.bf16.msra.mxu0 %v1874
  %1937 = vmatprep.subr.bf16.mxu0 %v1879
  %1938 = vmatpush1.bf16.msra.mxu0 %v1878
  %1939 = vmatprep.subr.bf16.mxu0 %v1883
  %1940 = vmatpush1.bf16.msra.mxu0 %v1882
  %1941 = vmatprep.subr.bf16.mxu0 0
  %1942 = vmatpush1.bf16.msra.mxu0 0
  %1943 = vmatprep.subr.bf16.mxu0 0
  %1944 = vmatpush1.bf16.msra.mxu0 0
  %1945 = vmatprep.subr.bf16.mxu0 0
  %1946 = vmatpush1.bf16.msra.mxu0 0
  %1947 = vmatprep.subr.bf16.mxu0 0
  %1948 = vmatpush1.bf16.msra.mxu0 0
  %1949 = vmatprep.subr.bf16.mxu0 0
  %1950 = vmatpush1.bf16.msra.mxu0 0
  %1951 = vmatprep.subr.bf16.mxu0 0
  %1952 = vmatpush1.bf16.msra.mxu0 0
  %1953 = vmatprep.subr.bf16.mxu0 0
  %1954 = vmatpush1.bf16.msra.mxu0 0
  %1955 = vmatprep.subr.bf16.mxu0 0
  %1956 = vmatpush1.bf16.msra.mxu0 0
  %1957 = vmatprep.mubr.bf16.mxu0 0
  %1958 = vmatmul.mubr.bf16.gmra.mrb[0].mxu0 %v1851
  %v1959 = vpop.f32.mrb[0].mxu0
  %v1960 = vadd.f32 0.0, %v1959
  %v1961 = vpop.f32.mrb[0].mxu0
  %v1962 = vadd.f32 0.0, %v1961
  %v1963 = vpop.f32.mrb[0].mxu0
  %v1964 = vpop.f32.mrb[0].mxu0
  %1965 = vdwg.mxu0
  %v1966 = vadd.f32 %v1847, %v1919
  %v1967 = vadd.f32 %v1848, %v1921
  %v1968 = vadd.f32 %v1849, %v1960
  %v1969 = vadd.f32 %v1850, %v1962
  %v1970 = vxor.u32 %v1966, 2147483648
  %v1971 = vmul.f32 %v1970, 1.442695
  %v1972 = vpow.pop %v1971
  %v1973 = vadd.f32 %v1972, 1.0
  %v1974 = vrcp.pop %v1973
  %v1975 = vmul.f32 1.0, %v1974
  %v1976 = vxor.u32 %v1967, 2147483648
  %v1977 = vmul.f32 %v1976, 1.442695
  %v1978 = vpow.pop %v1977
  %v1979 = vadd.f32 %v1978, 1.0
  %v1980 = vrcp.pop %v1979
  %v1981 = vmul.f32 1.0, %v1980
  %v1982 = vtanh.pop %v1968
  %v1983 = vxor.u32 %v1969, 2147483648
  %v1984 = vmul.f32 %v1983, 1.442695
  %v1985 = vpow.pop %v1984
  %v1986 = vadd.f32 %v1985, 1.0
  %v1987 = vrcp.pop %v1986
  %v1988 = vmul.f32 1.0, %v1987
  %v1989 = vmul.f32 %v1981, %v1839
  %v1990 = vmul.f32 %v1975, %v1982
  %v1991 = vadd.f32 %v1989, %v1990
  %v1992 = vtanh.pop %v1991
  %v1993 = vmul.f32 %v1988, %v1992
  %s1994 = scalar_lea.vmem %s2, 80
  %1995 = vst [vmem:[%s1994] sm:$0xff] %v1993
  %s1996 = scalar_lea.vmem %s0, 176
  %v1997 = vld [vmem:[%s1996] sm:$0xff]
  %v1998 = vld [vmem:[%s1996 + $0x8] sm:$0xff]
  %v1999 = vunpack.c.l.bf16 %v1997
  %v2000 = vunpack.c.h.bf16 %v1997
  %v2001 = vunpack.c.l.bf16 %v1998
  %v2002 = vunpack.c.h.bf16 %v1998
  %v2003 = vpack.c.bf16 %v1993, %v1993
  %v2004 = vld [vmem:[#allocation2] sm:$0xff]
  %v2005 = vld [vmem:[#allocation2 + $0x8] sm:$0xff]
  %v2006 = vld [vmem:[#allocation2 + $0x10] sm:$0xff]
  %v2007 = vld [vmem:[#allocation2 + $0x18] sm:$0xff]
  %v2008 = vld [vmem:[#allocation2 + $0x20] sm:$0xff]
  %v2009 = vld [vmem:[#allocation2 + $0x28] sm:$0xff]
  %v2010 = vld [vmem:[#allocation2 + $0x30] sm:$0xff]
  %v2011 = vld [vmem:[#allocation2 + $0x38] sm:$0xff]
  %v2012 = vld [vmem:[#allocation2 + $0x40] sm:$0xff]
  %v2013 = vld [vmem:[#allocation2 + $0x48] sm:$0xff]
  %v2014 = vld [vmem:[#allocation2 + $0x50] sm:$0xff]
  %v2015 = vld [vmem:[#allocation2 + $0x58] sm:$0xff]
  %v2016 = vld [vmem:[#allocation2 + $0x60] sm:$0xff]
  %v2017 = vld [vmem:[#allocation2 + $0x68] sm:$0xff]
  %v2018 = vld [vmem:[#allocation2 + $0x70] sm:$0xff]
  %v2019 = vld [vmem:[#allocation2 + $0x78] sm:$0xff]
  %v2020 = vld [vmem:[#allocation2 + $0x80] sm:$0xff]
  %v2021 = vld [vmem:[#allocation2 + $0x88] sm:$0xff]
  %v2022 = vld [vmem:[#allocation2 + $0x90] sm:$0xff]
  %v2023 = vld [vmem:[#allocation2 + $0x98] sm:$0xff]
  %v2024 = vld [vmem:[#allocation2 + $0xa0] sm:$0xff]
  %v2025 = vld [vmem:[#allocation2 + $0xa8] sm:$0xff]
  %v2026 = vld [vmem:[#allocation2 + $0xb0] sm:$0xff]
  %v2027 = vld [vmem:[#allocation2 + $0xb8] sm:$0xff]
  %v2028 = vld [vmem:[#allocation2 + $0xc0] sm:$0xff]
  %v2029 = vld [vmem:[#allocation2 + $0xc8] sm:$0xff]
  %v2030 = vld [vmem:[#allocation2 + $0xd0] sm:$0xff]
  %v2031 = vld [vmem:[#allocation2 + $0xd8] sm:$0xff]
  %v2032 = vld [vmem:[#allocation2 + $0xe0] sm:$0xff]
  %v2033 = vld [vmem:[#allocation2 + $0xe8] sm:$0xff]
  %v2034 = vld [vmem:[#allocation2 + $0xf0] sm:$0xff]
  %v2035 = vld [vmem:[#allocation2 + $0xf8] sm:$0xff]
  %2036 = vmatprep.subr.bf16.mxu0 %v2005
  %2037 = vmatpush1.bf16.msra.mxu0 %v2004
  %2038 = vmatprep.subr.bf16.mxu0 %v2009
  %2039 = vmatpush1.bf16.msra.mxu0 %v2008
  %2040 = vmatprep.subr.bf16.mxu0 %v2013
  %2041 = vmatpush1.bf16.msra.mxu0 %v2012
  %2042 = vmatprep.subr.bf16.mxu0 %v2017
  %2043 = vmatpush1.bf16.msra.mxu0 %v2016
  %2044 = vmatprep.subr.bf16.mxu0 %v2021
  %2045 = vmatpush1.bf16.msra.mxu0 %v2020
  %2046 = vmatprep.subr.bf16.mxu0 %v2025
  %2047 = vmatpush1.bf16.msra.mxu0 %v2024
  %2048 = vmatprep.subr.bf16.mxu0 %v2029
  %2049 = vmatpush1.bf16.msra.mxu0 %v2028
  %2050 = vmatprep.subr.bf16.mxu0 %v2033
  %2051 = vmatpush1.bf16.msra.mxu0 %v2032
  %2052 = vmatprep.subr.bf16.mxu0 0
  %2053 = vmatpush1.bf16.msra.mxu0 0
  %2054 = vmatprep.subr.bf16.mxu0 0
  %2055 = vmatpush1.bf16.msra.mxu0 0
  %2056 = vmatprep.subr.bf16.mxu0 0
  %2057 = vmatpush1.bf16.msra.mxu0 0
  %2058 = vmatprep.subr.bf16.mxu0 0
  %2059 = vmatpush1.bf16.msra.mxu0 0
  %2060 = vmatprep.subr.bf16.mxu0 0
  %2061 = vmatpush1.bf16.msra.mxu0 0
  %2062 = vmatprep.subr.bf16.mxu0 0
  %2063 = vmatpush1.bf16.msra.mxu0 0
  %2064 = vmatprep.subr.bf16.mxu0 0
  %2065 = vmatpush1.bf16.msra.mxu0 0
  %2066 = vmatprep.subr.bf16.mxu0 0
  %2067 = vmatpush1.bf16.msra.mxu0 0
  %2068 = vmatprep.mubr.bf16.mxu0 0
  %2069 = vmatmul.mubr.bf16.gmra.mrb[0].mxu0 %v2003
  %v2070 = vpop.f32.mrb[0].mxu0
  %v2071 = vadd.f32 0.0, %v2070
  %v2072 = vpop.f32.mrb[0].mxu0
  %v2073 = vadd.f32 0.0, %v2072
  %v2074 = vpop.f32.mrb[0].mxu0
  %v2075 = vpop.f32.mrb[0].mxu0
  %2076 = vdwg.mxu0
  %2077 = vmatprep.subr.bf16.mxu0 %v2007
  %2078 = vmatpush1.bf16.msra.mxu0 %v2006
  %2079 = vmatprep.subr.bf16.mxu0 %v2011
  %2080 = vmatpush1.bf16.msra.mxu0 %v2010
  %2081 = vmatprep.subr.bf16.mxu0 %v2015
  %2082 = vmatpush1.bf16.msra.mxu0 %v2014
  %2083 = vmatprep.subr.bf16.mxu0 %v2019
  %2084 = vmatpush1.bf16.msra.mxu0 %v2018
  %2085 = vmatprep.subr.bf16.mxu0 %v2023
  %2086 = vmatpush1.bf16.msra.mxu0 %v2022
  %2087 = vmatprep.subr.bf16.mxu0 %v2027
  %2088 = vmatpush1.bf16.msra.mxu0 %v2026
  %2089 = vmatprep.subr.bf16.mxu0 %v2031
  %2090 = vmatpush1.bf16.msra.mxu0 %v2030
  %2091 = vmatprep.subr.bf16.mxu0 %v2035
  %2092 = vmatpush1.bf16.msra.mxu0 %v2034
  %2093 = vmatprep.subr.bf16.mxu0 0
  %2094 = vmatpush1.bf16.msra.mxu0 0
  %2095 = vmatprep.subr.bf16.mxu0 0
  %2096 = vmatpush1.bf16.msra.mxu0 0
  %2097 = vmatprep.subr.bf16.mxu0 0
  %2098 = vmatpush1.bf16.msra.mxu0 0
  %2099 = vmatprep.subr.bf16.mxu0 0
  %2100 = vmatpush1.bf16.msra.mxu0 0
  %2101 = vmatprep.subr.bf16.mxu0 0
  %2102 = vmatpush1.bf16.msra.mxu0 0
  %2103 = vmatprep.subr.bf16.mxu0 0
  %2104 = vmatpush1.bf16.msra.mxu0 0
  %2105 = vmatprep.subr.bf16.mxu0 0
  %2106 = vmatpush1.bf16.msra.mxu0 0
  %2107 = vmatprep.subr.bf16.mxu0 0
  %2108 = vmatpush1.bf16.msra.mxu0 0
  %2109 = vmatprep.mubr.bf16.mxu0 0
  %2110 = vmatmul.mubr.bf16.gmra.mrb[0].mxu0 %v2003
  %v2111 = vpop.f32.mrb[0].mxu0
  %v2112 = vadd.f32 0.0, %v2111
  %v2113 = vpop.f32.mrb[0].mxu0
  %v2114 = vadd.f32 0.0, %v2113
  %v2115 = vpop.f32.mrb[0].mxu0
  %v2116 = vpop.f32.mrb[0].mxu0
  %2117 = vdwg.mxu0
  %v2118 = vadd.f32 %v1999, %v2071
  %v2119 = vadd.f32 %v2000, %v2073
  %v2120 = vadd.f32 %v2001, %v2112
  %v2121 = vadd.f32 %v2002, %v2114
  %v2122 = vxor.u32 %v2118, 2147483648
  %v2123 = vmul.f32 %v2122, 1.442695
  %v2124 = vpow.pop %v2123
  %v2125 = vadd.f32 %v2124, 1.0
  %v2126 = vrcp.pop %v2125
  %v2127 = vmul.f32 1.0, %v2126
  %v2128 = vxor.u32 %v2119, 2147483648
  %v2129 = vmul.f32 %v2128, 1.442695
  %v2130 = vpow.pop %v2129
  %v2131 = vadd.f32 %v2130, 1.0
  %v2132 = vrcp.pop %v2131
  %v2133 = vmul.f32 1.0, %v2132
  %v2134 = vtanh.pop %v2120
  %v2135 = vxor.u32 %v2121, 2147483648
  %v2136 = vmul.f32 %v2135, 1.442695
  %v2137 = vpow.pop %v2136
  %v2138 = vadd.f32 %v2137, 1.0
  %v2139 = vrcp.pop %v2138
  %v2140 = vmul.f32 1.0, %v2139
  %v2141 = vmul.f32 %v2133, %v1991
  %v2142 = vmul.f32 %v2127, %v2134
  %v2143 = vadd.f32 %v2141, %v2142
  %v2144 = vtanh.pop %v2143
  %v2145 = vmul.f32 %v2140, %v2144
  %s2146 = scalar_lea.vmem %s2, 88
  %2147 = vst [vmem:[%s2146] sm:$0xff] %v2145
  %s2148 = scalar_lea.vmem %s0, 192
  %v2149 = vld [vmem:[%s2148] sm:$0xff]
  %v2150 = vld [vmem:[%s2148 + $0x8] sm:$0xff]
  %v2151 = vunpack.c.l.bf16 %v2149
  %v2152 = vunpack.c.h.bf16 %v2149
  %v2153 = vunpack.c.l.bf16 %v2150
  %v2154 = vunpack.c.h.bf16 %v2150
  %v2155 = vpack.c.bf16 %v2145, %v2145
  %v2156 = vld [vmem:[#allocation2] sm:$0xff]
  %v2157 = vld [vmem:[#allocation2 + $0x8] sm:$0xff]
  %v2158 = vld [vmem:[#allocation2 + $0x10] sm:$0xff]
  %v2159 = vld [vmem:[#allocation2 + $0x18] sm:$0xff]
  %v2160 = vld [vmem:[#allocation2 + $0x20] sm:$0xff]
  %v2161 = vld [vmem:[#allocation2 + $0x28] sm:$0xff]
  %v2162 = vld [vmem:[#allocation2 + $0x30] sm:$0xff]
  %v2163 = vld [vmem:[#allocation2 + $0x38] sm:$0xff]
  %v2164 = vld [vmem:[#allocation2 + $0x40] sm:$0xff]
  %v2165 = vld [vmem:[#allocation2 + $0x48] sm:$0xff]
  %v2166 = vld [vmem:[#allocation2 + $0x50] sm:$0xff]
  %v2167 = vld [vmem:[#allocation2 + $0x58] sm:$0xff]
  %v2168 = vld [vmem:[#allocation2 + $0x60] sm:$0xff]
  %v2169 = vld [vmem:[#allocation2 + $0x68] sm:$0xff]
  %v2170 = vld [vmem:[#allocation2 + $0x70] sm:$0xff]
  %v2171 = vld [vmem:[#allocation2 + $0x78] sm:$0xff]
  %v2172 = vld [vmem:[#allocation2 + $0x80] sm:$0xff]
  %v2173 = vld [vmem:[#allocation2 + $0x88] sm:$0xff]
  %v2174 = vld [vmem:[#allocation2 + $0x90] sm:$0xff]
  %v2175 = vld [vmem:[#allocation2 + $0x98] sm:$0xff]
  %v2176 = vld [vmem:[#allocation2 + $0xa0] sm:$0xff]
  %v2177 = vld [vmem:[#allocation2 + $0xa8] sm:$0xff]
  %v2178 = vld [vmem:[#allocation2 + $0xb0] sm:$0xff]
  %v2179 = vld [vmem:[#allocation2 + $0xb8] sm:$0xff]
  %v2180 = vld [vmem:[#allocation2 + $0xc0] sm:$0xff]
  %v2181 = vld [vmem:[#allocation2 + $0xc8] sm:$0xff]
  %v2182 = vld [vmem:[#allocation2 + $0xd0] sm:$0xff]
  %v2183 = vld [vmem:[#allocation2 + $0xd8] sm:$0xff]
  %v2184 = vld [vmem:[#allocation2 + $0xe0] sm:$0xff]
  %v2185 = vld [vmem:[#allocation2 + $0xe8] sm:$0xff]
  %v2186 = vld [vmem:[#allocation2 + $0xf0] sm:$0xff]
  %v2187 = vld [vmem:[#allocation2 + $0xf8] sm:$0xff]
  %2188 = vmatprep.subr.bf16.mxu0 %v2157
  %2189 = vmatpush1.bf16.msra.mxu0 %v2156
  %2190 = vmatprep.subr.bf16.mxu0 %v2161
  %2191 = vmatpush1.bf16.msra.mxu0 %v2160
  %2192 = vmatprep.subr.bf16.mxu0 %v2165
  %2193 = vmatpush1.bf16.msra.mxu0 %v2164
  %2194 = vmatprep.subr.bf16.mxu0 %v2169
  %2195 = vmatpush1.bf16.msra.mxu0 %v2168
  %2196 = vmatprep.subr.bf16.mxu0 %v2173
  %2197 = vmatpush1.bf16.msra.mxu0 %v2172
  %2198 = vmatprep.subr.bf16.mxu0 %v2177
  %2199 = vmatpush1.bf16.msra.mxu0 %v2176
  %2200 = vmatprep.subr.bf16.mxu0 %v2181
  %2201 = vmatpush1.bf16.msra.mxu0 %v2180
  %2202 = vmatprep.subr.bf16.mxu0 %v2185
  %2203 = vmatpush1.bf16.msra.mxu0 %v2184
  %2204 = vmatprep.subr.bf16.mxu0 0
  %2205 = vmatpush1.bf16.msra.mxu0 0
  %2206 = vmatprep.subr.bf16.mxu0 0
  %2207 = vmatpush1.bf16.msra.mxu0 0
  %2208 = vmatprep.subr.bf16.mxu0 0
  %2209 = vmatpush1.bf16.msra.mxu0 0
  %2210 = vmatprep.subr.bf16.mxu0 0
  %2211 = vmatpush1.bf16.msra.mxu0 0
  %2212 = vmatprep.subr.bf16.mxu0 0
  %2213 = vmatpush1.bf16.msra.mxu0 0
  %2214 = vmatprep.subr.bf16.mxu0 0
  %2215 = vmatpush1.bf16.msra.mxu0 0
  %2216 = vmatprep.subr.bf16.mxu0 0
  %2217 = vmatpush1.bf16.msra.mxu0 0
  %2218 = vmatprep.subr.bf16.mxu0 0
  %2219 = vmatpush1.bf16.msra.mxu0 0
  %2220 = vmatprep.mubr.bf16.mxu0 0
  %2221 = vmatmul.mubr.bf16.gmra.mrb[0].mxu0 %v2155
  %v2222 = vpop.f32.mrb[0].mxu0
  %v2223 = vadd.f32 0.0, %v2222
  %v2224 = vpop.f32.mrb[0].mxu0
  %v2225 = vadd.f32 0.0, %v2224
  %v2226 = vpop.f32.mrb[0].mxu0
  %v2227 = vpop.f32.mrb[0].mxu0
  %2228 = vdwg.mxu0
  %2229 = vmatprep.subr.bf16.mxu0 %v2159
  %2230 = vmatpush1.bf16.msra.mxu0 %v2158
  %2231 = vmatprep.subr.bf16.mxu0 %v2163
  %2232 = vmatpush1.bf16.msra.mxu0 %v2162
  %2233 = vmatprep.subr.bf16.mxu0 %v2167
  %2234 = vmatpush1.bf16.msra.mxu0 %v2166
  %2235 = vmatprep.subr.bf16.mxu0 %v2171
  %2236 = vmatpush1.bf16.msra.mxu0 %v2170
  %2237 = vmatprep.subr.bf16.mxu0 %v2175
  %2238 = vmatpush1.bf16.msra.mxu0 %v2174
  %2239 = vmatprep.subr.bf16.mxu0 %v2179
  %2240 = vmatpush1.bf16.msra.mxu0 %v2178
  %2241 = vmatprep.subr.bf16.mxu0 %v2183
  %2242 = vmatpush1.bf16.msra.mxu0 %v2182
  %2243 = vmatprep.subr.bf16.mxu0 %v2187
  %2244 = vmatpush1.bf16.msra.mxu0 %v2186
  %2245 = vmatprep.subr.bf16.mxu0 0
  %2246 = vmatpush1.bf16.msra.mxu0 0
  %2247 = vmatprep.subr.bf16.mxu0 0
  %2248 = vmatpush1.bf16.msra.mxu0 0
  %2249 = vmatprep.subr.bf16.mxu0 0
  %2250 = vmatpush1.bf16.msra.mxu0 0
  %2251 = vmatprep.subr.bf16.mxu0 0
  %2252 = vmatpush1.bf16.msra.mxu0 0
  %2253 = vmatprep.subr.bf16.mxu0 0
  %2254 = vmatpush1.bf16.msra.mxu0 0
  %2255 = vmatprep.subr.bf16.mxu0 0
  %2256 = vmatpush1.bf16.msra.mxu0 0
  %2257 = vmatprep.subr.bf16.mxu0 0
  %2258 = vmatpush1.bf16.msra.mxu0 0
  %2259 = vmatprep.subr.bf16.mxu0 0
  %2260 = vmatpush1.bf16.msra.mxu0 0
  %2261 = vmatprep.mubr.bf16.mxu0 0
  %2262 = vmatmul.mubr.bf16.gmra.mrb[0].mxu0 %v2155
  %v2263 = vpop.f32.mrb[0].mxu0
  %v2264 = vadd.f32 0.0, %v2263
  %v2265 = vpop.f32.mrb[0].mxu0
  %v2266 = vadd.f32 0.0, %v2265
  %v2267 = vpop.f32.mrb[0].mxu0
  %v2268 = vpop.f32.mrb[0].mxu0
  %2269 = vdwg.mxu0
  %v2270 = vadd.f32 %v2151, %v2223
  %v2271 = vadd.f32 %v2152, %v2225
  %v2272 = vadd.f32 %v2153, %v2264
  %v2273 = vadd.f32 %v2154, %v2266
  %v2274 = vxor.u32 %v2270, 2147483648
  %v2275 = vmul.f32 %v2274, 1.442695
  %v2276 = vpow.pop %v2275
  %v2277 = vadd.f32 %v2276, 1.0
  %v2278 = vrcp.pop %v2277
  %v2279 = vmul.f32 1.0, %v2278
  %v2280 = vxor.u32 %v2271, 2147483648
  %v2281 = vmul.f32 %v2280, 1.442695
  %v2282 = vpow.pop %v2281
  %v2283 = vadd.f32 %v2282, 1.0
  %v2284 = vrcp.pop %v2283
  %v2285 = vmul.f32 1.0, %v2284
  %v2286 = vtanh.pop %v2272
  %v2287 = vxor.u32 %v2273, 2147483648
  %v2288 = vmul.f32 %v2287, 1.442695
  %v2289 = vpow.pop %v2288
  %v2290 = vadd.f32 %v2289, 1.0
  %v2291 = vrcp.pop %v2290
  %v2292 = vmul.f32 1.0, %v2291
  %v2293 = vmul.f32 %v2285, %v2143
  %v2294 = vmul.f32 %v2279, %v2286
  %v2295 = vadd.f32 %v2293, %v2294
  %v2296 = vtanh.pop %v2295
  %v2297 = vmul.f32 %v2292, %v2296
  %s2298 = scalar_lea.vmem %s2, 96
  %2299 = vst [vmem:[%s2298] sm:$0xff] %v2297
  %s2300 = scalar_lea.vmem %s0, 208
  %v2301 = vld [vmem:[%s2300] sm:$0xff]
  %v2302 = vld [vmem:[%s2300 + $0x8] sm:$0xff]
  %v2303 = vunpack.c.l.bf16 %v2301
  %v2304 = vunpack.c.h.bf16 %v2301
  %v2305 = vunpack.c.l.bf16 %v2302
  %v2306 = vunpack.c.h.bf16 %v2302
  %v2307 = vpack.c.bf16 %v2297, %v2297
  %v2308 = vld [vmem:[#allocation2] sm:$0xff]
  %v2309 = vld [vmem:[#allocation2 + $0x8] sm:$0xff]
  %v2310 = vld [vmem:[#allocation2 + $0x10] sm:$0xff]
  %v2311 = vld [vmem:[#allocation2 + $0x18] sm:$0xff]
  %v2312 = vld [vmem:[#allocation2 + $0x20] sm:$0xff]
  %v2313 = vld [vmem:[#allocation2 + $0x28] sm:$0xff]
  %v2314 = vld [vmem:[#allocation2 + $0x30] sm:$0xff]
  %v2315 = vld [vmem:[#allocation2 + $0x38] sm:$0xff]
  %v2316 = vld [vmem:[#allocation2 + $0x40] sm:$0xff]
  %v2317 = vld [vmem:[#allocation2 + $0x48] sm:$0xff]
  %v2318 = vld [vmem:[#allocation2 + $0x50] sm:$0xff]
  %v2319 = vld [vmem:[#allocation2 + $0x58] sm:$0xff]
  %v2320 = vld [vmem:[#allocation2 + $0x60] sm:$0xff]
  %v2321 = vld [vmem:[#allocation2 + $0x68] sm:$0xff]
  %v2322 = vld [vmem:[#allocation2 + $0x70] sm:$0xff]
  %v2323 = vld [vmem:[#allocation2 + $0x78] sm:$0xff]
  %v2324 = vld [vmem:[#allocation2 + $0x80] sm:$0xff]
  %v2325 = vld [vmem:[#allocation2 + $0x88] sm:$0xff]
  %v2326 = vld [vmem:[#allocation2 + $0x90] sm:$0xff]
  %v2327 = vld [vmem:[#allocation2 + $0x98] sm:$0xff]
  %v2328 = vld [vmem:[#allocation2 + $0xa0] sm:$0xff]
  %v2329 = vld [vmem:[#allocation2 + $0xa8] sm:$0xff]
  %v2330 = vld [vmem:[#allocation2 + $0xb0] sm:$0xff]
  %v2331 = vld [vmem:[#allocation2 + $0xb8] sm:$0xff]
  %v2332 = vld [vmem:[#allocation2 + $0xc0] sm:$0xff]
  %v2333 = vld [vmem:[#allocation2 + $0xc8] sm:$0xff]
  %v2334 = vld [vmem:[#allocation2 + $0xd0] sm:$0xff]
  %v2335 = vld [vmem:[#allocation2 + $0xd8] sm:$0xff]
  %v2336 = vld [vmem:[#allocation2 + $0xe0] sm:$0xff]
  %v2337 = vld [vmem:[#allocation2 + $0xe8] sm:$0xff]
  %v2338 = vld [vmem:[#allocation2 + $0xf0] sm:$0xff]
  %v2339 = vld [vmem:[#allocation2 + $0xf8] sm:$0xff]
  %2340 = vmatprep.subr.bf16.mxu0 %v2309
  %2341 = vmatpush1.bf16.msra.mxu0 %v2308
  %2342 = vmatprep.subr.bf16.mxu0 %v2313
  %2343 = vmatpush1.bf16.msra.mxu0 %v2312
  %2344 = vmatprep.subr.bf16.mxu0 %v2317
  %2345 = vmatpush1.bf16.msra.mxu0 %v2316
  %2346 = vmatprep.subr.bf16.mxu0 %v2321
  %2347 = vmatpush1.bf16.msra.mxu0 %v2320
  %2348 = vmatprep.subr.bf16.mxu0 %v2325
  %2349 = vmatpush1.bf16.msra.mxu0 %v2324
  %2350 = vmatprep.subr.bf16.mxu0 %v2329
  %2351 = vmatpush1.bf16.msra.mxu0 %v2328
  %2352 = vmatprep.subr.bf16.mxu0 %v2333
  %2353 = vmatpush1.bf16.msra.mxu0 %v2332
  %2354 = vmatprep.subr.bf16.mxu0 %v2337
  %2355 = vmatpush1.bf16.msra.mxu0 %v2336
  %2356 = vmatprep.subr.bf16.mxu0 0
  %2357 = vmatpush1.bf16.msra.mxu0 0
  %2358 = vmatprep.subr.bf16.mxu0 0
  %2359 = vmatpush1.bf16.msra.mxu0 0
  %2360 = vmatprep.subr.bf16.mxu0 0
  %2361 = vmatpush1.bf16.msra.mxu0 0
  %2362 = vmatprep.subr.bf16.mxu0 0
  %2363 = vmatpush1.bf16.msra.mxu0 0
  %2364 = vmatprep.subr.bf16.mxu0 0
  %2365 = vmatpush1.bf16.msra.mxu0 0
  %2366 = vmatprep.subr.bf16.mxu0 0
  %2367 = vmatpush1.bf16.msra.mxu0 0
  %2368 = vmatprep.subr.bf16.mxu0 0
  %2369 = vmatpush1.bf16.msra.mxu0 0
  %2370 = vmatprep.subr.bf16.mxu0 0
  %2371 = vmatpush1.bf16.msra.mxu0 0
  %2372 = vmatprep.mubr.bf16.mxu0 0
  %2373 = vmatmul.mubr.bf16.gmra.mrb[0].mxu0 %v2307
  %v2374 = vpop.f32.mrb[0].mxu0
  %v2375 = vadd.f32 0.0, %v2374
  %v2376 = vpop.f32.mrb[0].mxu0
  %v2377 = vadd.f32 0.0, %v2376
  %v2378 = vpop.f32.mrb[0].mxu0
  %v2379 = vpop.f32.mrb[0].mxu0
  %2380 = vdwg.mxu0
  %2381 = vmatprep.subr.bf16.mxu0 %v2311
  %2382 = vmatpush1.bf16.msra.mxu0 %v2310
  %2383 = vmatprep.subr.bf16.mxu0 %v2315
  %2384 = vmatpush1.bf16.msra.mxu0 %v2314
  %2385 = vmatprep.subr.bf16.mxu0 %v2319
  %2386 = vmatpush1.bf16.msra.mxu0 %v2318
  %2387 = vmatprep.subr.bf16.mxu0 %v2323
  %2388 = vmatpush1.bf16.msra.mxu0 %v2322
  %2389 = vmatprep.subr.bf16.mxu0 %v2327
  %2390 = vmatpush1.bf16.msra.mxu0 %v2326
  %2391 = vmatprep.subr.bf16.mxu0 %v2331
  %2392 = vmatpush1.bf16.msra.mxu0 %v2330
  %2393 = vmatprep.subr.bf16.mxu0 %v2335
  %2394 = vmatpush1.bf16.msra.mxu0 %v2334
  %2395 = vmatprep.subr.bf16.mxu0 %v2339
  %2396 = vmatpush1.bf16.msra.mxu0 %v2338
  %2397 = vmatprep.subr.bf16.mxu0 0
  %2398 = vmatpush1.bf16.msra.mxu0 0
  %2399 = vmatprep.subr.bf16.mxu0 0
  %2400 = vmatpush1.bf16.msra.mxu0 0
  %2401 = vmatprep.subr.bf16.mxu0 0
  %2402 = vmatpush1.bf16.msra.mxu0 0
  %2403 = vmatprep.subr.bf16.mxu0 0
  %2404 = vmatpush1.bf16.msra.mxu0 0
  %2405 = vmatprep.subr.bf16.mxu0 0
  %2406 = vmatpush1.bf16.msra.mxu0 0
  %2407 = vmatprep.subr.bf16.mxu0 0
  %2408 = vmatpush1.bf16.msra.mxu0 0
  %2409 = vmatprep.subr.bf16.mxu0 0
  %2410 = vmatpush1.bf16.msra.mxu0 0
  %2411 = vmatprep.subr.bf16.mxu0 0
  %2412 = vmatpush1.bf16.msra.mxu0 0
  %2413 = vmatprep.mubr.bf16.mxu0 0
  %2414 = vmatmul.mubr.bf16.gmra.mrb[0].mxu0 %v2307
  %v2415 = vpop.f32.mrb[0].mxu0
  %v2416 = vadd.f32 0.0, %v2415
  %v2417 = vpop.f32.mrb[0].mxu0
  %v2418 = vadd.f32 0.0, %v2417
  %v2419 = vpop.f32.mrb[0].mxu0
  %v2420 = vpop.f32.mrb[0].mxu0
  %2421 = vdwg.mxu0
  %v2422 = vadd.f32 %v2303, %v2375
  %v2423 = vadd.f32 %v2304, %v2377
  %v2424 = vadd.f32 %v2305, %v2416
  %v2425 = vadd.f32 %v2306, %v2418
  %v2426 = vxor.u32 %v2422, 2147483648
  %v2427 = vmul.f32 %v2426, 1.442695
  %v2428 = vpow.pop %v2427
  %v2429 = vadd.f32 %v2428, 1.0
  %v2430 = vrcp.pop %v2429
  %v2431 = vmul.f32 1.0, %v2430
  %v2432 = vxor.u32 %v2423, 2147483648
  %v2433 = vmul.f32 %v2432, 1.442695
  %v2434 = vpow.pop %v2433
  %v2435 = vadd.f32 %v2434, 1.0
  %v2436 = vrcp.pop %v2435
  %v2437 = vmul.f32 1.0, %v2436
  %v2438 = vtanh.pop %v2424
  %v2439 = vxor.u32 %v2425, 2147483648
  %v2440 = vmul.f32 %v2439, 1.442695
  %v2441 = vpow.pop %v2440
  %v2442 = vadd.f32 %v2441, 1.0
  %v2443 = vrcp.pop %v2442
  %v2444 = vmul.f32 1.0, %v2443
  %v2445 = vmul.f32 %v2437, %v2295
  %v2446 = vmul.f32 %v2431, %v2438
  %v2447 = vadd.f32 %v2445, %v2446
  %v2448 = vtanh.pop %v2447
  %v2449 = vmul.f32 %v2444, %v2448
  %s2450 = scalar_lea.vmem %s2, 104
  %2451 = vst [vmem:[%s2450] sm:$0xff] %v2449
  %s2452 = scalar_lea.vmem %s0, 224
  %v2453 = vld [vmem:[%s2452] sm:$0xff]
  %v2454 = vld [vmem:[%s2452 + $0x8] sm:$0xff]
  %v2455 = vunpack.c.l.bf16 %v2453
  %v2456 = vunpack.c.h.bf16 %v2453
  %v2457 = vunpack.c.l.bf16 %v2454
  %v2458 = vunpack.c.h.bf16 %v2454
  %v2459 = vpack.c.bf16 %v2449, %v2449
  %v2460 = vld [vmem:[#allocation2] sm:$0xff]
  %v2461 = vld [vmem:[#allocation2 + $0x8] sm:$0xff]
  %v2462 = vld [vmem:[#allocation2 + $0x10] sm:$0xff]
  %v2463 = vld [vmem:[#allocation2 + $0x18] sm:$0xff]
  %v2464 = vld [vmem:[#allocation2 + $0x20] sm:$0xff]
  %v2465 = vld [vmem:[#allocation2 + $0x28] sm:$0xff]
  %v2466 = vld [vmem:[#allocation2 + $0x30] sm:$0xff]
  %v2467 = vld [vmem:[#allocation2 + $0x38] sm:$0xff]
  %v2468 = vld [vmem:[#allocation2 + $0x40] sm:$0xff]
  %v2469 = vld [vmem:[#allocation2 + $0x48] sm:$0xff]
  %v2470 = vld [vmem:[#allocation2 + $0x50] sm:$0xff]
  %v2471 = vld [vmem:[#allocation2 + $0x58] sm:$0xff]
  %v2472 = vld [vmem:[#allocation2 + $0x60] sm:$0xff]
  %v2473 = vld [vmem:[#allocation2 + $0x68] sm:$0xff]
  %v2474 = vld [vmem:[#allocation2 + $0x70] sm:$0xff]
  %v2475 = vld [vmem:[#allocation2 + $0x78] sm:$0xff]
  %v2476 = vld [vmem:[#allocation2 + $0x80] sm:$0xff]
  %v2477 = vld [vmem:[#allocation2 + $0x88] sm:$0xff]
  %v2478 = vld [vmem:[#allocation2 + $0x90] sm:$0xff]
  %v2479 = vld [vmem:[#allocation2 + $0x98] sm:$0xff]
  %v2480 = vld [vmem:[#allocation2 + $0xa0] sm:$0xff]
  %v2481 = vld [vmem:[#allocation2 + $0xa8] sm:$0xff]
  %v2482 = vld [vmem:[#allocation2 + $0xb0] sm:$0xff]
  %v2483 = vld [vmem:[#allocation2 + $0xb8] sm:$0xff]
  %v2484 = vld [vmem:[#allocation2 + $0xc0] sm:$0xff]
  %v2485 = vld [vmem:[#allocation2 + $0xc8] sm:$0xff]
  %v2486 = vld [vmem:[#allocation2 + $0xd0] sm:$0xff]
  %v2487 = vld [vmem:[#allocation2 + $0xd8] sm:$0xff]
  %v2488 = vld [vmem:[#allocation2 + $0xe0] sm:$0xff]
  %v2489 = vld [vmem:[#allocation2 + $0xe8] sm:$0xff]
  %v2490 = vld [vmem:[#allocation2 + $0xf0] sm:$0xff]
  %v2491 = vld [vmem:[#allocation2 + $0xf8] sm:$0xff]
  %2492 = vmatprep.subr.bf16.mxu0 %v2461
  %2493 = vmatpush1.bf16.msra.mxu0 %v2460
  %2494 = vmatprep.subr.bf16.mxu0 %v2465
  %2495 = vmatpush1.bf16.msra.mxu0 %v2464
  %2496 = vmatprep.subr.bf16.mxu0 %v2469
  %2497 = vmatpush1.bf16.msra.mxu0 %v2468
  %2498 = vmatprep.subr.bf16.mxu0 %v2473
  %2499 = vmatpush1.bf16.msra.mxu0 %v2472
  %2500 = vmatprep.subr.bf16.mxu0 %v2477
  %2501 = vmatpush1.bf16.msra.mxu0 %v2476
  %2502 = vmatprep.subr.bf16.mxu0 %v2481
  %2503 = vmatpush1.bf16.msra.mxu0 %v2480
  %2504 = vmatprep.subr.bf16.mxu0 %v2485
  %2505 = vmatpush1.bf16.msra.mxu0 %v2484
  %2506 = vmatprep.subr.bf16.mxu0 %v2489
  %2507 = vmatpush1.bf16.msra.mxu0 %v2488
  %2508 = vmatprep.subr.bf16.mxu0 0
  %2509 = vmatpush1.bf16.msra.mxu0 0
  %2510 = vmatprep.subr.bf16.mxu0 0
  %2511 = vmatpush1.bf16.msra.mxu0 0
  %2512 = vmatprep.subr.bf16.mxu0 0
  %2513 = vmatpush1.bf16.msra.mxu0 0
  %2514 = vmatprep.subr.bf16.mxu0 0
  %2515 = vmatpush1.bf16.msra.mxu0 0
  %2516 = vmatprep.subr.bf16.mxu0 0
  %2517 = vmatpush1.bf16.msra.mxu0 0
  %2518 = vmatprep.subr.bf16.mxu0 0
  %2519 = vmatpush1.bf16.msra.mxu0 0
  %2520 = vmatprep.subr.bf16.mxu0 0
  %2521 = vmatpush1.bf16.msra.mxu0 0
  %2522 = vmatprep.subr.bf16.mxu0 0
  %2523 = vmatpush1.bf16.msra.mxu0 0
  %2524 = vmatprep.mubr.bf16.mxu0 0
  %2525 = vmatmul.mubr.bf16.gmra.mrb[0].mxu0 %v2459
  %v2526 = vpop.f32.mrb[0].mxu0
  %v2527 = vadd.f32 0.0, %v2526
  %v2528 = vpop.f32.mrb[0].mxu0
  %v2529 = vadd.f32 0.0, %v2528
  %v2530 = vpop.f32.mrb[0].mxu0
  %v2531 = vpop.f32.mrb[0].mxu0
  %2532 = vdwg.mxu0
  %2533 = vmatprep.subr.bf16.mxu0 %v2463
  %2534 = vmatpush1.bf16.msra.mxu0 %v2462
  %2535 = vmatprep.subr.bf16.mxu0 %v2467
  %2536 = vmatpush1.bf16.msra.mxu0 %v2466
  %2537 = vmatprep.subr.bf16.mxu0 %v2471
  %2538 = vmatpush1.bf16.msra.mxu0 %v2470
  %2539 = vmatprep.subr.bf16.mxu0 %v2475
  %2540 = vmatpush1.bf16.msra.mxu0 %v2474
  %2541 = vmatprep.subr.bf16.mxu0 %v2479
  %2542 = vmatpush1.bf16.msra.mxu0 %v2478
  %2543 = vmatprep.subr.bf16.mxu0 %v2483
  %2544 = vmatpush1.bf16.msra.mxu0 %v2482
  %2545 = vmatprep.subr.bf16.mxu0 %v2487
  %2546 = vmatpush1.bf16.msra.mxu0 %v2486
  %2547 = vmatprep.subr.bf16.mxu0 %v2491
  %2548 = vmatpush1.bf16.msra.mxu0 %v2490
  %2549 = vmatprep.subr.bf16.mxu0 0
  %2550 = vmatpush1.bf16.msra.mxu0 0
  %2551 = vmatprep.subr.bf16.mxu0 0
  %2552 = vmatpush1.bf16.msra.mxu0 0
  %2553 = vmatprep.subr.bf16.mxu0 0
  %2554 = vmatpush1.bf16.msra.mxu0 0
  %2555 = vmatprep.subr.bf16.mxu0 0
  %2556 = vmatpush1.bf16.msra.mxu0 0
  %2557 = vmatprep.subr.bf16.mxu0 0
  %2558 = vmatpush1.bf16.msra.mxu0 0
  %2559 = vmatprep.subr.bf16.mxu0 0
  %2560 = vmatpush1.bf16.msra.mxu0 0
  %2561 = vmatprep.subr.bf16.mxu0 0
  %2562 = vmatpush1.bf16.msra.mxu0 0
  %2563 = vmatprep.subr.bf16.mxu0 0
  %2564 = vmatpush1.bf16.msra.mxu0 0
  %2565 = vmatprep.mubr.bf16.mxu0 0
  %2566 = vmatmul.mubr.bf16.gmra.mrb[0].mxu0 %v2459
  %v2567 = vpop.f32.mrb[0].mxu0
  %v2568 = vadd.f32 0.0, %v2567
  %v2569 = vpop.f32.mrb[0].mxu0
  %v2570 = vadd.f32 0.0, %v2569
  %v2571 = vpop.f32.mrb[0].mxu0
  %v2572 = vpop.f32.mrb[0].mxu0
  %2573 = vdwg.mxu0
  %v2574 = vadd.f32 %v2455, %v2527
  %v2575 = vadd.f32 %v2456, %v2529
  %v2576 = vadd.f32 %v2457, %v2568
  %v2577 = vadd.f32 %v2458, %v2570
  %v2578 = vxor.u32 %v2574, 2147483648
  %v2579 = vmul.f32 %v2578, 1.442695
  %v2580 = vpow.pop %v2579
  %v2581 = vadd.f32 %v2580, 1.0
  %v2582 = vrcp.pop %v2581
  %v2583 = vmul.f32 1.0, %v2582
  %v2584 = vxor.u32 %v2575, 2147483648
  %v2585 = vmul.f32 %v2584, 1.442695
  %v2586 = vpow.pop %v2585
  %v2587 = vadd.f32 %v2586, 1.0
  %v2588 = vrcp.pop %v2587
  %v2589 = vmul.f32 1.0, %v2588
  %v2590 = vtanh.pop %v2576
  %v2591 = vxor.u32 %v2577, 2147483648
  %v2592 = vmul.f32 %v2591, 1.442695
  %v2593 = vpow.pop %v2592
  %v2594 = vadd.f32 %v2593, 1.0
  %v2595 = vrcp.pop %v2594
  %v2596 = vmul.f32 1.0, %v2595
  %v2597 = vmul.f32 %v2589, %v2447
  %v2598 = vmul.f32 %v2583, %v2590
  %v2599 = vadd.f32 %v2597, %v2598
  %v2600 = vtanh.pop %v2599
  %v2601 = vmul.f32 %v2596, %v2600
  %s2602 = scalar_lea.vmem %s2, 112
  %2603 = vst [vmem:[%s2602] sm:$0xff] %v2601
  %s2604 = scalar_lea.vmem %s0, 240
  %v2605 = vld [vmem:[%s2604] sm:$0xff]
  %v2606 = vld [vmem:[%s2604 + $0x8] sm:$0xff]
  %v2607 = vunpack.c.l.bf16 %v2605
  %v2608 = vunpack.c.h.bf16 %v2605
  %v2609 = vunpack.c.l.bf16 %v2606
  %v2610 = vunpack.c.h.bf16 %v2606
  %v2611 = vpack.c.bf16 %v2601, %v2601
  %v2612 = vld [vmem:[#allocation2] sm:$0xff]
  %v2613 = vld [vmem:[#allocation2 + $0x8] sm:$0xff]
  %v2614 = vld [vmem:[#allocation2 + $0x10] sm:$0xff]
  %v2615 = vld [vmem:[#allocation2 + $0x18] sm:$0xff]
  %v2616 = vld [vmem:[#allocation2 + $0x20] sm:$0xff]
  %v2617 = vld [vmem:[#allocation2 + $0x28] sm:$0xff]
  %v2618 = vld [vmem:[#allocation2 + $0x30] sm:$0xff]
  %v2619 = vld [vmem:[#allocation2 + $0x38] sm:$0xff]
  %v2620 = vld [vmem:[#allocation2 + $0x40] sm:$0xff]
  %v2621 = vld [vmem:[#allocation2 + $0x48] sm:$0xff]
  %v2622 = vld [vmem:[#allocation2 + $0x50] sm:$0xff]
  %v2623 = vld [vmem:[#allocation2 + $0x58] sm:$0xff]
  %v2624 = vld [vmem:[#allocation2 + $0x60] sm:$0xff]
  %v2625 = vld [vmem:[#allocation2 + $0x68] sm:$0xff]
  %v2626 = vld [vmem:[#allocation2 + $0x70] sm:$0xff]
  %v2627 = vld [vmem:[#allocation2 + $0x78] sm:$0xff]
  %v2628 = vld [vmem:[#allocation2 + $0x80] sm:$0xff]
  %v2629 = vld [vmem:[#allocation2 + $0x88] sm:$0xff]
  %v2630 = vld [vmem:[#allocation2 + $0x90] sm:$0xff]
  %v2631 = vld [vmem:[#allocation2 + $0x98] sm:$0xff]
  %v2632 = vld [vmem:[#allocation2 + $0xa0] sm:$0xff]
  %v2633 = vld [vmem:[#allocation2 + $0xa8] sm:$0xff]
  %v2634 = vld [vmem:[#allocation2 + $0xb0] sm:$0xff]
  %v2635 = vld [vmem:[#allocation2 + $0xb8] sm:$0xff]
  %v2636 = vld [vmem:[#allocation2 + $0xc0] sm:$0xff]
  %v2637 = vld [vmem:[#allocation2 + $0xc8] sm:$0xff]
  %v2638 = vld [vmem:[#allocation2 + $0xd0] sm:$0xff]
  %v2639 = vld [vmem:[#allocation2 + $0xd8] sm:$0xff]
  %v2640 = vld [vmem:[#allocation2 + $0xe0] sm:$0xff]
  %v2641 = vld [vmem:[#allocation2 + $0xe8] sm:$0xff]
  %v2642 = vld [vmem:[#allocation2 + $0xf0] sm:$0xff]
  %v2643 = vld [vmem:[#allocation2 + $0xf8] sm:$0xff]
  %2644 = vmatprep.subr.bf16.mxu0 %v2613
  %2645 = vmatpush1.bf16.msra.mxu0 %v2612
  %2646 = vmatprep.subr.bf16.mxu0 %v2617
  %2647 = vmatpush1.bf16.msra.mxu0 %v2616
  %2648 = vmatprep.subr.bf16.mxu0 %v2621
  %2649 = vmatpush1.bf16.msra.mxu0 %v2620
  %2650 = vmatprep.subr.bf16.mxu0 %v2625
  %2651 = vmatpush1.bf16.msra.mxu0 %v2624
  %2652 = vmatprep.subr.bf16.mxu0 %v2629
  %2653 = vmatpush1.bf16.msra.mxu0 %v2628
  %2654 = vmatprep.subr.bf16.mxu0 %v2633
  %2655 = vmatpush1.bf16.msra.mxu0 %v2632
  %2656 = vmatprep.subr.bf16.mxu0 %v2637
  %2657 = vmatpush1.bf16.msra.mxu0 %v2636
  %2658 = vmatprep.subr.bf16.mxu0 %v2641
  %2659 = vmatpush1.bf16.msra.mxu0 %v2640
  %2660 = vmatprep.subr.bf16.mxu0 0
  %2661 = vmatpush1.bf16.msra.mxu0 0
  %2662 = vmatprep.subr.bf16.mxu0 0
  %2663 = vmatpush1.bf16.msra.mxu0 0
  %2664 = vmatprep.subr.bf16.mxu0 0
  %2665 = vmatpush1.bf16.msra.mxu0 0
  %2666 = vmatprep.subr.bf16.mxu0 0
  %2667 = vmatpush1.bf16.msra.mxu0 0
  %2668 = vmatprep.subr.bf16.mxu0 0
  %2669 = vmatpush1.bf16.msra.mxu0 0
  %2670 = vmatprep.subr.bf16.mxu0 0
  %2671 = vmatpush1.bf16.msra.mxu0 0
  %2672 = vmatprep.subr.bf16.mxu0 0
  %2673 = vmatpush1.bf16.msra.mxu0 0
  %2674 = vmatprep.subr.bf16.mxu0 0
  %2675 = vmatpush1.bf16.msra.mxu0 0
  %2676 = vmatprep.mubr.bf16.mxu0 0
  %2677 = vmatmul.mubr.bf16.gmra.mrb[0].mxu0 %v2611
  %v2678 = vpop.f32.mrb[0].mxu0
  %v2679 = vadd.f32 0.0, %v2678
  %v2680 = vpop.f32.mrb[0].mxu0
  %v2681 = vadd.f32 0.0, %v2680
  %v2682 = vpop.f32.mrb[0].mxu0
  %v2683 = vpop.f32.mrb[0].mxu0
  %2684 = vdwg.mxu0
  %2685 = vmatprep.subr.bf16.mxu0 %v2615
  %2686 = vmatpush1.bf16.msra.mxu0 %v2614
  %2687 = vmatprep.subr.bf16.mxu0 %v2619
  %2688 = vmatpush1.bf16.msra.mxu0 %v2618
  %2689 = vmatprep.subr.bf16.mxu0 %v2623
  %2690 = vmatpush1.bf16.msra.mxu0 %v2622
  %2691 = vmatprep.subr.bf16.mxu0 %v2627
  %2692 = vmatpush1.bf16.msra.mxu0 %v2626
  %2693 = vmatprep.subr.bf16.mxu0 %v2631
  %2694 = vmatpush1.bf16.msra.mxu0 %v2630
  %2695 = vmatprep.subr.bf16.mxu0 %v2635
  %2696 = vmatpush1.bf16.msra.mxu0 %v2634
  %2697 = vmatprep.subr.bf16.mxu0 %v2639
  %2698 = vmatpush1.bf16.msra.mxu0 %v2638
  %2699 = vmatprep.subr.bf16.mxu0 %v2643
  %2700 = vmatpush1.bf16.msra.mxu0 %v2642
  %2701 = vmatprep.subr.bf16.mxu0 0
  %2702 = vmatpush1.bf16.msra.mxu0 0
  %2703 = vmatprep.subr.bf16.mxu0 0
  %2704 = vmatpush1.bf16.msra.mxu0 0
  %2705 = vmatprep.subr.bf16.mxu0 0
  %2706 = vmatpush1.bf16.msra.mxu0 0
  %2707 = vmatprep.subr.bf16.mxu0 0
  %2708 = vmatpush1.bf16.msra.mxu0 0
  %2709 = vmatprep.subr.bf16.mxu0 0
  %2710 = vmatpush1.bf16.msra.mxu0 0
  %2711 = vmatprep.subr.bf16.mxu0 0
  %2712 = vmatpush1.bf16.msra.mxu0 0
  %2713 = vmatprep.subr.bf16.mxu0 0
  %2714 = vmatpush1.bf16.msra.mxu0 0
  %2715 = vmatprep.subr.bf16.mxu0 0
  %2716 = vmatpush1.bf16.msra.mxu0 0
  %2717 = vmatprep.mubr.bf16.mxu0 0
  %2718 = vmatmul.mubr.bf16.gmra.mrb[0].mxu0 %v2611
  %v2719 = vpop.f32.mrb[0].mxu0
  %v2720 = vadd.f32 0.0, %v2719
  %v2721 = vpop.f32.mrb[0].mxu0
  %v2722 = vadd.f32 0.0, %v2721
  %v2723 = vpop.f32.mrb[0].mxu0
  %v2724 = vpop.f32.mrb[0].mxu0
  %2725 = vdwg.mxu0
  %v2726 = vadd.f32 %v2607, %v2679
  %v2727 = vadd.f32 %v2608, %v2681
  %v2728 = vadd.f32 %v2609, %v2720
  %v2729 = vadd.f32 %v2610, %v2722
  %v2730 = vxor.u32 %v2726, 2147483648
  %v2731 = vmul.f32 %v2730, 1.442695
  %v2732 = vpow.pop %v2731
  %v2733 = vadd.f32 %v2732, 1.0
  %v2734 = vrcp.pop %v2733
  %v2735 = vmul.f32 1.0, %v2734
  %v2736 = vxor.u32 %v2727, 2147483648
  %v2737 = vmul.f32 %v2736, 1.442695
  %v2738 = vpow.pop %v2737
  %v2739 = vadd.f32 %v2738, 1.0
  %v2740 = vrcp.pop %v2739
  %v2741 = vmul.f32 1.0, %v2740
  %v2742 = vtanh.pop %v2728
  %v2743 = vxor.u32 %v2729, 2147483648
  %v2744 = vmul.f32 %v2743, 1.442695
  %v2745 = vpow.pop %v2744
  %v2746 = vadd.f32 %v2745, 1.0
  %v2747 = vrcp.pop %v2746
  %v2748 = vmul.f32 1.0, %v2747
  %v2749 = vmul.f32 %v2741, %v2599
  %v2750 = vmul.f32 %v2735, %v2742
  %v2751 = vadd.f32 %v2749, %v2750
  %v2752 = vtanh.pop %v2751
  %v2753 = vmul.f32 %v2748, %v2752
  %s2754 = scalar_lea.vmem %s2, 120
  %2755 = vst [vmem:[%s2754] sm:$0xff] %v2753
  %2756 = vst [vmem:[#allocation3] sm:$0xff] %v2753
  %2757 = vst [vmem:[#allocation4] sm:$0xff] %v2751
  // Predicated region
  $region48: #{lm_lstm_forward.4} parent=0 // pred_check
    _
  $region49: #{lm_lstm_forward.4} parent=0 // pred_check_branch
    %2759 = sbr.rel (0) target = $region51
  $region50: #{lm_lstm_forward.4} parent=0 // pred_region
    _
  $region51: #{lm_lstm_forward.4} parent=0 // pred_fallthru
    _
  // Predicated region
  $region52: #{lm_lstm_forward.4} parent=0 // pred_check
    _
  $region53: #{lm_lstm_forward.4} parent=0 // pred_check_branch
    %2761 = sbr.rel (0) target = $region55
  $region54: #{lm_lstm_forward.4} parent=0 // pred_region
    _
  $region55: #{lm_lstm_forward.4} parent=0 // pred_fallthru
    _

</llo_original>
